<compile_context>
chip_gen: v7x
topology: tpu7x:2x2x1
jax: 0.10.0
libtpu: 0.0.40
codegen_flags: <defaults>
</compile_context>

<pallas_src>
import functools

import jax
import jax.numpy as jnp
from jax.experimental import pallas as pl
from jax.experimental.pallas import tpu as pltpu

# ---------------- configuration (small sizes consistent with the module) ----------------
B = 2
T = 16
CHANNELS = 8            # must be divisible by 2
HALF = CHANNELS // 2
HIDDEN = 32             # hidden_channels
KSZ = 5                 # kernel_size (odd)
DIL_RATE = 1            # dilation_rate
N_LAYERS = 4            # n_layers
GIN = 16                # gin_channels


def _const_spec(shape):
    nd = len(shape)
    return pl.BlockSpec(shape, lambda b, nd=nd: (0,) * nd)


# =========================== fused Pallas kernel ===========================

def _rcl_kernel(x0_ref, x1_ref, mask_ref, g_ref,
                pre_w, pre_b, in_w, cond_w, cond_b, rs_w, rs_b, post_w, post_b,
                x1o_ref, ls_ref, *, hid, n_layers, ksz, dil_rate, t_len):
    f32 = jnp.float32
    x0 = x0_ref[...]                          # (T, half)
    x1 = x1_ref[...]                          # (T, half)
    msk = mask_ref[...]                       # (T, 1)
    g_row = g_ref[...]                        # (1, GIN)

    # ---- conditioning hoisted out of the layer loop (cond conv + in_layer biases folded)
    cond_t = jnp.dot(g_row, cond_w[0], preferred_element_type=f32) + cond_b[0]  # (1, L*hid)
    cond_s = jnp.dot(g_row, cond_w[1], preferred_element_type=f32) + cond_b[1]  # (1, L*hid)

    # ---- pre 1x1 conv + mask
    h = (jnp.dot(x0, pre_w[...], preferred_element_type=f32) + pre_b[...]) * msk  # (T, hid)

    iota_t = jax.lax.broadcasted_iota(jnp.int32, (t_len, 1), 0)
    out_acc = jnp.zeros((t_len, hid), f32)

    for i in range(n_layers):
        d = dil_rate ** i
        pad = d * (ksz - 1) // 2
        # build unfolded taps via XLU rolls + boundary masks (Conv1d zero padding)
        taps = []
        for k in range(ksz):
            off = k * d - pad
            if off == 0:
                taps.append(h)
            else:
                hk = pltpu.roll(h, (-off) % t_len, axis=0)
                valid = jnp.logical_and(iota_t + off >= 0, iota_t + off < t_len)
                taps.append(jnp.where(valid, hk, 0.0))
        unfolded = jnp.concatenate(taps, axis=-1).astype(jnp.bfloat16)   # (T, ksz*hid)

        # one fat matmul per gate half (K = ksz*hid), bf16 operands, f32 accumulate
        acc_t = (jnp.dot(unfolded, in_w[i, 0], preferred_element_type=f32)
                 + cond_t[:, i * hid:(i + 1) * hid])
        acc_s = (jnp.dot(unfolded, in_w[i, 1], preferred_element_type=f32)
                 + cond_s[:, i * hid:(i + 1) * hid])
        acts = jnp.tanh(acc_t) * jax.nn.sigmoid(acc_s)                   # (T, hid) f32
        # TODO(synk): dropout omitted (p_dropout=0 / eval mode -> identity)

        acts_b = acts.astype(jnp.bfloat16)
        out_acc = (out_acc
                   + jnp.dot(acts_b, rs_w[i, 1], preferred_element_type=f32)
                   + rs_b[i, 1])                                         # skip path
        if i < n_layers - 1:
            res = jnp.dot(acts_b, rs_w[i, 0], preferred_element_type=f32) + rs_b[i, 0]
            h = (h + res) * msk                                          # residual path

    h_out = out_acc * msk                                                # WN output

    # ---- post 1x1 conv, split into m / logs as two separate (hid, half) matmuls
    m = (jnp.dot(h_out, post_w[0], preferred_element_type=f32) + post_b[0]) * msk
    logs = (jnp.dot(h_out, post_w[1], preferred_element_type=f32) + post_b[1]) * msk

    # affine coupling (reverse=False): x1' = m + x1 * exp(logs) * mask
    x1o_ref[...] = m + x1 * jnp.exp(logs) * msk
    # per-row logs sum; the per-batch reduction finishes in the wrapper
    ls_ref[...] = jnp.sum(logs, axis=-1, keepdims=True)


# =========================== wrapper ===========================

def residual_coupling_layer_forward(kp, x, x_mask, g):
    """x: (B, channels, T), x_mask: (B, 1, T), g: (B, gin, 1) -> (x_out, logdet)."""
    bn, ch, t_len = x.shape
    half = ch // 2
    hid = kp["pre_w"].shape[1]
    n_layers = kp["in_w"].shape[0]
    ksz = kp["in_w"].shape[2] // hid
    dil_rate = kp["dil_rate"]

    # channels-last per-sequence layout; grid is one full sequence per block
    x0 = jnp.transpose(x[:, :half, :], (0, 2, 1))        # (B, T, half)
    x1 = jnp.transpose(x[:, half:, :], (0, 2, 1))        # (B, T, half)
    mskf = jnp.transpose(x_mask, (0, 2, 1))              # (B, T, 1)
    g2 = jnp.transpose(g, (0, 2, 1))                     # (B, 1, GIN)

    weights = [kp["pre_w"], kp["pre_b"], kp["in_w"], kp["cond_w"], kp["cond_b"],
               kp["rs_w"], kp["rs_b"], kp["post_w"], kp["post_b"]]

    batched_specs = [
        pl.BlockSpec((None, t_len, half), lambda b: (b, 0, 0)),   # x0
        pl.BlockSpec((None, t_len, half), lambda b: (b, 0, 0)),   # x1
        pl.BlockSpec((None, t_len, 1), lambda b: (b, 0, 0)),      # mask
        pl.BlockSpec((None, 1, g2.shape[-1]), lambda b: (b, 0, 0)),  # g
    ]
    weight_specs = [_const_spec(w.shape) for w in weights]

    kernel = functools.partial(_rcl_kernel, hid=hid, n_layers=n_layers, ksz=ksz,
                               dil_rate=dil_rate, t_len=t_len)

    x1o, ls = pl.pallas_call(
        kernel,
        grid=(bn,),
        in_specs=batched_specs + weight_specs,
        out_specs=[pl.BlockSpec((None, t_len, half), lambda b: (b, 0, 0)),
                   pl.BlockSpec((None, t_len, 1), lambda b: (b, 0, 0))],
        out_shape=(jax.ShapeDtypeStruct((bn, t_len, half), jnp.float32),
                   jax.ShapeDtypeStruct((bn, t_len, 1), jnp.float32)),
        compiler_params=pltpu.CompilerParams(dimension_semantics=("parallel",)),
    )(x0, x1, mskf, g2, *weights)

    # x0 is a pure passthrough: assemble outside the kernel (no lane-sparse concat store)
    x_out = jnp.concatenate([x[:, :half, :], jnp.transpose(x1o, (0, 2, 1))], axis=1)
    logdet = jnp.sum(ls, axis=(1, 2))                    # (B,)
    return x_out, logdet


# =========================== parameters ===========================

def init_params(key):
    """Module-style params (weight_norm folded into plain weights, matmul layout)."""
    keys = iter(jax.random.split(key, 12))

    def nrm(shape, scale=0.1):
        return (jax.random.normal(next(keys), shape) * scale).astype(jnp.float32)

    return dict(
        pre_w=nrm((HALF, HIDDEN)),
        pre_b=jnp.zeros((HIDDEN,), jnp.float32),
        in_w=nrm((N_LAYERS, KSZ, HIDDEN, 2 * HIDDEN)),            # (L, k, in, out)
        in_b=jnp.zeros((N_LAYERS, 2 * HIDDEN), jnp.float32),
        cond_w=nrm((GIN, N_LAYERS * 2 * HIDDEN)),
        cond_b=jnp.zeros((N_LAYERS * 2 * HIDDEN,), jnp.float32),
        rs_w=nrm((N_LAYERS - 1, HIDDEN, 2 * HIDDEN)),
        rs_b=jnp.zeros((N_LAYERS - 1, 2 * HIDDEN), jnp.float32),
        rsl_w=nrm((HIDDEN, HIDDEN)),
        rsl_b=jnp.zeros((HIDDEN,), jnp.float32),
        # NOTE: PyTorch zero-inits `post`; small random weights are used here so the
        # affine-transform / logdet path is actually exercised numerically.
        post_w=nrm((HIDDEN, CHANNELS), scale=0.01),
        post_b=jnp.zeros((CHANNELS,), jnp.float32),
    )


def pack_params(p):
    """Split paired weights (tanh/sigmoid, res/skip, m/logs) and stack per-layer arrays."""
    hid, L, ksz, half = HIDDEN, N_LAYERS, KSZ, HALF
    f32 = jnp.float32

    # in_layer: fuse taps along K, split tanh / sigmoid halves along N
    in_flat = p["in_w"].reshape(L, ksz * hid, 2 * hid)
    in_w = jnp.stack([in_flat[:, :, :hid], in_flat[:, :, hid:]], axis=1)     # (L,2,k*hid,hid)

    # cond 1x1 layer: reorder to per-half stacks; fold in_layer biases into cond bias
    cw = p["cond_w"].reshape(GIN, L, 2, hid)
    cond_w = jnp.stack([cw[:, :, 0, :].reshape(GIN, L * hid),
                        cw[:, :, 1, :].reshape(GIN, L * hid)], axis=0)       # (2,GIN,L*hid)
    cb = (p["cond_b"] + p["in_b"].reshape(-1)).reshape(L, 2, hid)
    cond_b = jnp.stack([cb[:, 0, :].reshape(1, L * hid),
                        cb[:, 1, :].reshape(1, L * hid)], axis=0)            # (2,1,L*hid)

    # res/skip 1x1 layers: split res / skip; last layer is skip-only (res slot unused)
    rs_res_w = jnp.concatenate([p["rs_w"][:, :, :hid],
                                jnp.zeros((1, hid, hid), f32)], axis=0)
    rs_skip_w = jnp.concatenate([p["rs_w"][:, :, hid:], p["rsl_w"][None]], axis=0)
    rs_w = jnp.stack([rs_res_w, rs_skip_w], axis=1)                          # (L,2,hid,hid)
    rs_res_b = jnp.concatenate([p["rs_b"][:, :hid], jnp.zeros((1, hid), f32)], axis=0)
    rs_skip_b = jnp.concatenate([p["rs_b"][:, hid:], p["rsl_b"][None]], axis=0)
    rs_b = jnp.stack([rs_res_b, rs_skip_b], axis=1)[:, :, None, :]           # (L,2,1,hid)

    # post 1x1: split into m / logs halves (avoids the lane-4 slice in-kernel)
    post_w = jnp.stack([p["post_w"][:, :half], p["post_w"][:, half:]], axis=0)       # (2,hid,half)
    post_b = jnp.stack([p["post_b"][:half][None, :], p["post_b"][half:][None, :]], axis=0)

    return dict(
        pre_w=p["pre_w"], pre_b=p["pre_b"][None, :],
        in_w=in_w.astype(jnp.bfloat16),          # bf16 MXU operands, f32 accumulation
        cond_w=cond_w, cond_b=cond_b,
        rs_w=rs_w.astype(jnp.bfloat16),
        rs_b=rs_b,
        post_w=post_w, post_b=post_b,            # post kept f32 (logs / logdet sensitivity)
        dil_rate=DIL_RATE,
    )


# ============================== main ==============================

if __name__ == "__main__":
    key = jax.random.PRNGKey(0)
    pkey, xkey, gkey = jax.random.split(key, 3)
    params = pack_params(init_params(pkey))

    x = jax.random.normal(xkey, (B, CHANNELS, T), jnp.float32)
    lengths = jnp.array([T, T - 4], jnp.int32)
    x_mask = (jnp.arange(T)[None, None, :] < lengths[:, None, None]).astype(jnp.float32)
    g = jax.random.normal(gkey, (B, GIN, 1), jnp.float32)

    x_out, logdet = residual_coupling_layer_forward(params, x, x_mask, g)
    jax.block_until_ready((x_out, logdet))
    print("KERNEL_OK")
</pallas_src>

<mosaic_0001>
module attributes {stable_mosaic.version = 11 : i64} {
  func.func @_rcl_kernel(%arg0: i32, %arg1: memref<1x16x4xf32, #tpu.memory_space<vmem>>, %arg2: memref<1x16x4xf32, #tpu.memory_space<vmem>>, %arg3: memref<1x16x1xf32, #tpu.memory_space<vmem>>, %arg4: memref<1x1x16xf32, #tpu.memory_space<vmem>>, %arg5: memref<4x32xf32, #tpu.memory_space<vmem>>, %arg6: memref<1x32xf32, #tpu.memory_space<vmem>>, %arg7: memref<4x2x160x32xbf16, #tpu.memory_space<vmem>>, %arg8: memref<2x16x128xf32, #tpu.memory_space<vmem>>, %arg9: memref<2x1x128xf32, #tpu.memory_space<vmem>>, %arg10: memref<4x2x32x32xbf16, #tpu.memory_space<vmem>>, %arg11: memref<4x2x1x32xf32, #tpu.memory_space<vmem>>, %arg12: memref<2x32x4xf32, #tpu.memory_space<vmem>>, %arg13: memref<2x1x4xf32, #tpu.memory_space<vmem>>, %arg14: memref<1x16x4xf32, #tpu.memory_space<vmem>>, %arg15: memref<1x16x1xf32, #tpu.memory_space<vmem>>) attributes {dimension_semantics = [#tpu.dimension_semantics<parallel>], iteration_bounds = array<i64: 2>, scalar_prefetch = 0 : i64, scratch_operands = 0 : i64, tpu.core_type = #tpu.core_type<tc>, window_params = [{transform_indices = @transform_0, window_bounds = array<i64: 1, 16, 4>}, {transform_indices = @transform_1, window_bounds = array<i64: 1, 16, 4>}, {transform_indices = @transform_2, window_bounds = array<i64: 1, 16, 1>}, {transform_indices = @transform_3, window_bounds = array<i64: 1, 1, 16>}, {pipeline_mode = #tpu.pipeline_mode<synchronous>, transform_indices = @transform_4, window_bounds = array<i64: 4, 32>}, {pipeline_mode = #tpu.pipeline_mode<synchronous>, transform_indices = @transform_5, window_bounds = array<i64: 1, 32>}, {pipeline_mode = #tpu.pipeline_mode<synchronous>, transform_indices = @transform_6, window_bounds = array<i64: 4, 2, 160, 32>}, {pipeline_mode = #tpu.pipeline_mode<synchronous>, transform_indices = @transform_7, window_bounds = array<i64: 2, 16, 128>}, {pipeline_mode = #tpu.pipeline_mode<synchronous>, transform_indices = @transform_8, window_bounds = array<i64: 2, 1, 128>}, {pipeline_mode = #tpu.pipeline_mode<synchronous>, transform_indices = @transform_9, window_bounds = array<i64: 4, 2, 32, 32>}, {pipeline_mode = #tpu.pipeline_mode<synchronous>, transform_indices = @transform_10, window_bounds = array<i64: 4, 2, 1, 32>}, {pipeline_mode = #tpu.pipeline_mode<synchronous>, transform_indices = @transform_11, window_bounds = array<i64: 2, 32, 4>}, {pipeline_mode = #tpu.pipeline_mode<synchronous>, transform_indices = @transform_12, window_bounds = array<i64: 2, 1, 4>}, {transform_indices = @transform_13, window_bounds = array<i64: 1, 16, 4>}, {transform_indices = @transform_14, window_bounds = array<i64: 1, 16, 1>}]} {
    %c0 = arith.constant 0 : index
    %c0_0 = arith.constant 0 : index
    %c0_1 = arith.constant 0 : index
    %0 = vector.load %arg1[%c0, %c0_0, %c0_1] : memref<1x16x4xf32, #tpu.memory_space<vmem>>, vector<1x16x4xf32>
    %1 = vector.shape_cast %0 : vector<1x16x4xf32> to vector<16x4xf32>
    %c0_2 = arith.constant 0 : index
    %c0_3 = arith.constant 0 : index
    %c0_4 = arith.constant 0 : index
    %2 = vector.load %arg2[%c0_2, %c0_3, %c0_4] : memref<1x16x4xf32, #tpu.memory_space<vmem>>, vector<1x16x4xf32>
    %3 = vector.shape_cast %2 : vector<1x16x4xf32> to vector<16x4xf32>
    %c0_5 = arith.constant 0 : index
    %c0_6 = arith.constant 0 : index
    %c0_7 = arith.constant 0 : index
    %4 = vector.load %arg3[%c0_5, %c0_6, %c0_7] : memref<1x16x1xf32, #tpu.memory_space<vmem>>, vector<1x16x1xf32>
    %5 = vector.shape_cast %4 : vector<1x16x1xf32> to vector<16x1xf32>
    %c0_8 = arith.constant 0 : index
    %c0_9 = arith.constant 0 : index
    %c0_10 = arith.constant 0 : index
    %6 = vector.load %arg4[%c0_8, %c0_9, %c0_10] : memref<1x1x16xf32, #tpu.memory_space<vmem>>, vector<1x1x16xf32>
    %7 = vector.shape_cast %6 : vector<1x1x16xf32> to vector<1x16xf32>
    %c0_11 = arith.constant 0 : index
    %c0_12 = arith.constant 0 : index
    %c0_13 = arith.constant 0 : index
    %8 = vector.load %arg8[%c0_11, %c0_12, %c0_13] : memref<2x16x128xf32, #tpu.memory_space<vmem>>, vector<1x16x128xf32>
    %9 = vector.shape_cast %8 : vector<1x16x128xf32> to vector<16x128xf32>
    %cst = arith.constant dense<0.000000e+00> : vector<1x128xf32>
    %10 = tpu.matmul %7, %9, %cst {dimension_numbers = #tpu.dot_dimension_numbers<[1], [0], [0], [1], [0, 0, 1, 1], [], []>} : vector<1x16xf32>, vector<16x128xf32>, vector<1x128xf32> -> vector<1x128xf32>
    %c0_14 = arith.constant 0 : index
    %c0_15 = arith.constant 0 : index
    %c0_16 = arith.constant 0 : index
    %11 = vector.load %arg9[%c0_14, %c0_15, %c0_16] : memref<2x1x128xf32, #tpu.memory_space<vmem>>, vector<1x1x128xf32>
    %12 = vector.shape_cast %11 : vector<1x1x128xf32> to vector<1x128xf32>
    %13 = arith.addf %10, %12 : vector<1x128xf32>
    %c1 = arith.constant 1 : index
    %c0_17 = arith.constant 0 : index
    %c0_18 = arith.constant 0 : index
    %14 = vector.load %arg8[%c1, %c0_17, %c0_18] : memref<2x16x128xf32, #tpu.memory_space<vmem>>, vector<1x16x128xf32>
    %15 = vector.shape_cast %14 : vector<1x16x128xf32> to vector<16x128xf32>
    %cst_19 = arith.constant dense<0.000000e+00> : vector<1x128xf32>
    %16 = tpu.matmul %7, %15, %cst_19 {dimension_numbers = #tpu.dot_dimension_numbers<[1], [0], [0], [1], [0, 0, 1, 1], [], []>} : vector<1x16xf32>, vector<16x128xf32>, vector<1x128xf32> -> vector<1x128xf32>
    %c1_20 = arith.constant 1 : index
    %c0_21 = arith.constant 0 : index
    %c0_22 = arith.constant 0 : index
    %17 = vector.load %arg9[%c1_20, %c0_21, %c0_22] : memref<2x1x128xf32, #tpu.memory_space<vmem>>, vector<1x1x128xf32>
    %18 = vector.shape_cast %17 : vector<1x1x128xf32> to vector<1x128xf32>
    %19 = arith.addf %16, %18 : vector<1x128xf32>
    %c0_23 = arith.constant 0 : index
    %c0_24 = arith.constant 0 : index
    %20 = vector.load %arg5[%c0_23, %c0_24] : memref<4x32xf32, #tpu.memory_space<vmem>>, vector<4x32xf32>
    %cst_25 = arith.constant dense<0.000000e+00> : vector<16x32xf32>
    %21 = tpu.matmul %1, %20, %cst_25 {dimension_numbers = #tpu.dot_dimension_numbers<[1], [0], [0], [1], [0, 0, 1, 1], [], []>} : vector<16x4xf32>, vector<4x32xf32>, vector<16x32xf32> -> vector<16x32xf32>
    %c0_26 = arith.constant 0 : index
    %c0_27 = arith.constant 0 : index
    %22 = vector.load %arg6[%c0_26, %c0_27] : memref<1x32xf32, #tpu.memory_space<vmem>>, vector<1x32xf32>
    %23 = vector.broadcast %22 : vector<1x32xf32> to vector<16x32xf32>
    %24 = arith.addf %21, %23 : vector<16x32xf32>
    %25 = vector.broadcast %5 : vector<16x1xf32> to vector<16x32xf32>
    %26 = arith.mulf %24, %25 : vector<16x32xf32>
    %27 = tpu.iota {dimensions = array<i32: 0>} : vector<16x1xi32>
    %cst_28 = arith.constant 0.000000e+00 : f32
    %28 = vector.broadcast %cst_28 : f32 to vector<16x32xf32>
    %c2_i32 = arith.constant 2 : i32
    %29 = tpu.dynamic_rotate %26 by %c2_i32 dim 0 : vector<16x32xf32>, i32 -> vector<16x32xf32>
    %c-2_i32 = arith.constant -2 : i32
    %30 = vector.broadcast %c-2_i32 : i32 to vector<16x1xi32>
    %31 = arith.addi %27, %30 : vector<16x1xi32>
    %c0_i32 = arith.constant 0 : i32
    %32 = vector.broadcast %c0_i32 : i32 to vector<16x1xi32>
    %33 = arith.cmpi sge, %31, %32 : vector<16x1xi32>
    %c-2_i32_29 = arith.constant -2 : i32
    %34 = vector.broadcast %c-2_i32_29 : i32 to vector<16x1xi32>
    %35 = arith.addi %27, %34 : vector<16x1xi32>
    %c16_i32 = arith.constant 16 : i32
    %36 = vector.broadcast %c16_i32 : i32 to vector<16x1xi32>
    %37 = arith.cmpi slt, %35, %36 : vector<16x1xi32>
    %38 = arith.andi %33, %37 : vector<16x1xi1>
    %cst_30 = arith.constant 0.000000e+00 : f32
    %39 = vector.shape_cast %38 : vector<16x1xi1> to vector<16x1xi1>
    %40 = vector.broadcast %39 : vector<16x1xi1> to vector<16x32xi1>
    %41 = vector.broadcast %cst_30 : f32 to vector<16x32xf32>
    %42 = arith.select %40, %29, %41 : vector<16x32xi1>, vector<16x32xf32>
    %c1_i32 = arith.constant 1 : i32
    %43 = tpu.dynamic_rotate %26 by %c1_i32 dim 0 : vector<16x32xf32>, i32 -> vector<16x32xf32>
    %c-1_i32 = arith.constant -1 : i32
    %44 = vector.broadcast %c-1_i32 : i32 to vector<16x1xi32>
    %45 = arith.addi %27, %44 : vector<16x1xi32>
    %c0_i32_31 = arith.constant 0 : i32
    %46 = vector.broadcast %c0_i32_31 : i32 to vector<16x1xi32>
    %47 = arith.cmpi sge, %45, %46 : vector<16x1xi32>
    %c-1_i32_32 = arith.constant -1 : i32
    %48 = vector.broadcast %c-1_i32_32 : i32 to vector<16x1xi32>
    %49 = arith.addi %27, %48 : vector<16x1xi32>
    %c16_i32_33 = arith.constant 16 : i32
    %50 = vector.broadcast %c16_i32_33 : i32 to vector<16x1xi32>
    %51 = arith.cmpi slt, %49, %50 : vector<16x1xi32>
    %52 = arith.andi %47, %51 : vector<16x1xi1>
    %cst_34 = arith.constant 0.000000e+00 : f32
    %53 = vector.shape_cast %52 : vector<16x1xi1> to vector<16x1xi1>
    %54 = vector.broadcast %53 : vector<16x1xi1> to vector<16x32xi1>
    %55 = vector.broadcast %cst_34 : f32 to vector<16x32xf32>
    %56 = arith.select %54, %43, %55 : vector<16x32xi1>, vector<16x32xf32>
    %c15_i32 = arith.constant 15 : i32
    %57 = tpu.dynamic_rotate %26 by %c15_i32 dim 0 : vector<16x32xf32>, i32 -> vector<16x32xf32>
    %c1_i32_35 = arith.constant 1 : i32
    %58 = vector.broadcast %c1_i32_35 : i32 to vector<16x1xi32>
    %59 = arith.addi %27, %58 : vector<16x1xi32>
    %c0_i32_36 = arith.constant 0 : i32
    %60 = vector.broadcast %c0_i32_36 : i32 to vector<16x1xi32>
    %61 = arith.cmpi sge, %59, %60 : vector<16x1xi32>
    %c1_i32_37 = arith.constant 1 : i32
    %62 = vector.broadcast %c1_i32_37 : i32 to vector<16x1xi32>
    %63 = arith.addi %27, %62 : vector<16x1xi32>
    %c16_i32_38 = arith.constant 16 : i32
    %64 = vector.broadcast %c16_i32_38 : i32 to vector<16x1xi32>
    %65 = arith.cmpi slt, %63, %64 : vector<16x1xi32>
    %66 = arith.andi %61, %65 : vector<16x1xi1>
    %cst_39 = arith.constant 0.000000e+00 : f32
    %67 = vector.shape_cast %66 : vector<16x1xi1> to vector<16x1xi1>
    %68 = vector.broadcast %67 : vector<16x1xi1> to vector<16x32xi1>
    %69 = vector.broadcast %cst_39 : f32 to vector<16x32xf32>
    %70 = arith.select %68, %57, %69 : vector<16x32xi1>, vector<16x32xf32>
    %c14_i32 = arith.constant 14 : i32
    %71 = tpu.dynamic_rotate %26 by %c14_i32 dim 0 : vector<16x32xf32>, i32 -> vector<16x32xf32>
    %c2_i32_40 = arith.constant 2 : i32
    %72 = vector.broadcast %c2_i32_40 : i32 to vector<16x1xi32>
    %73 = arith.addi %27, %72 : vector<16x1xi32>
    %c0_i32_41 = arith.constant 0 : i32
    %74 = vector.broadcast %c0_i32_41 : i32 to vector<16x1xi32>
    %75 = arith.cmpi sge, %73, %74 : vector<16x1xi32>
    %c2_i32_42 = arith.constant 2 : i32
    %76 = vector.broadcast %c2_i32_42 : i32 to vector<16x1xi32>
    %77 = arith.addi %27, %76 : vector<16x1xi32>
    %c16_i32_43 = arith.constant 16 : i32
    %78 = vector.broadcast %c16_i32_43 : i32 to vector<16x1xi32>
    %79 = arith.cmpi slt, %77, %78 : vector<16x1xi32>
    %80 = arith.andi %75, %79 : vector<16x1xi1>
    %cst_44 = arith.constant 0.000000e+00 : f32
    %81 = vector.shape_cast %80 : vector<16x1xi1> to vector<16x1xi1>
    %82 = vector.broadcast %81 : vector<16x1xi1> to vector<16x32xi1>
    %83 = vector.broadcast %cst_44 : f32 to vector<16x32xf32>
    %84 = arith.select %82, %71, %83 : vector<16x32xi1>, vector<16x32xf32>
    %85 = tpu.concatenate %42, %56, %26, %70, %84 in 1 : vector<16x32xf32>, vector<16x32xf32>, vector<16x32xf32>, vector<16x32xf32>, vector<16x32xf32> -> vector<16x160xf32>
    %86 = arith.truncf %85 : vector<16x160xf32> to vector<16x160xbf16>
    %c0_45 = arith.constant 0 : index
    %c0_46 = arith.constant 0 : index
    %c0_47 = arith.constant 0 : index
    %c0_48 = arith.constant 0 : index
    %87 = vector.load %arg7[%c0_45, %c0_46, %c0_47, %c0_48] : memref<4x2x160x32xbf16, #tpu.memory_space<vmem>>, vector<1x1x160x32xbf16>
    %88 = vector.shape_cast %87 : vector<1x1x160x32xbf16> to vector<160x32xbf16>
    %cst_49 = arith.constant dense<0.000000e+00> : vector<16x32xf32>
    %89 = tpu.matmul %86, %88, %cst_49 {dimension_numbers = #tpu.dot_dimension_numbers<[1], [0], [0], [1], [0, 0, 1, 1], [], []>} : vector<16x160xbf16>, vector<160x32xbf16>, vector<16x32xf32> -> vector<16x32xf32>
    %90 = vector.extract_strided_slice %13 {offsets = [0, 0], sizes = [1, 32], strides = [1, 1]} : vector<1x128xf32> to vector<1x32xf32>
    %91 = vector.broadcast %90 : vector<1x32xf32> to vector<16x32xf32>
    %92 = arith.addf %89, %91 : vector<16x32xf32>
    %c0_50 = arith.constant 0 : index
    %c1_51 = arith.constant 1 : index
    %c0_52 = arith.constant 0 : index
    %c0_53 = arith.constant 0 : index
    %93 = vector.load %arg7[%c0_50, %c1_51, %c0_52, %c0_53] : memref<4x2x160x32xbf16, #tpu.memory_space<vmem>>, vector<1x1x160x32xbf16>
    %94 = vector.shape_cast %93 : vector<1x1x160x32xbf16> to vector<160x32xbf16>
    %cst_54 = arith.constant dense<0.000000e+00> : vector<16x32xf32>
    %95 = tpu.matmul %86, %94, %cst_54 {dimension_numbers = #tpu.dot_dimension_numbers<[1], [0], [0], [1], [0, 0, 1, 1], [], []>} : vector<16x160xbf16>, vector<160x32xbf16>, vector<16x32xf32> -> vector<16x32xf32>
    %96 = vector.extract_strided_slice %19 {offsets = [0, 0], sizes = [1, 32], strides = [1, 1]} : vector<1x128xf32> to vector<1x32xf32>
    %97 = vector.broadcast %96 : vector<1x32xf32> to vector<16x32xf32>
    %98 = arith.addf %95, %97 : vector<16x32xf32>
    %99 = math.tanh %92 : vector<16x32xf32>
    %100 = arith.negf %98 : vector<16x32xf32>
    %101 = math.exp %100 : vector<16x32xf32>
    %cst_55 = arith.constant 1.000000e+00 : f32
    %102 = vector.broadcast %cst_55 : f32 to vector<16x32xf32>
    %103 = arith.addf %102, %101 : vector<16x32xf32>
    %104 = arith.divf %102, %103 : vector<16x32xf32>
    %105 = arith.mulf %99, %104 : vector<16x32xf32>
    %106 = arith.truncf %105 : vector<16x32xf32> to vector<16x32xbf16>
    %c0_56 = arith.constant 0 : index
    %c1_57 = arith.constant 1 : index
    %c0_58 = arith.constant 0 : index
    %c0_59 = arith.constant 0 : index
    %107 = vector.load %arg10[%c0_56, %c1_57, %c0_58, %c0_59] : memref<4x2x32x32xbf16, #tpu.memory_space<vmem>>, vector<1x1x32x32xbf16>
    %108 = vector.shape_cast %107 : vector<1x1x32x32xbf16> to vector<32x32xbf16>
    %cst_60 = arith.constant dense<0.000000e+00> : vector<16x32xf32>
    %109 = tpu.matmul %106, %108, %cst_60 {dimension_numbers = #tpu.dot_dimension_numbers<[1], [0], [0], [1], [0, 0, 1, 1], [], []>} : vector<16x32xbf16>, vector<32x32xbf16>, vector<16x32xf32> -> vector<16x32xf32>
    %110 = arith.addf %28, %109 : vector<16x32xf32>
    %c0_61 = arith.constant 0 : index
    %c1_62 = arith.constant 1 : index
    %c0_63 = arith.constant 0 : index
    %c0_64 = arith.constant 0 : index
    %111 = vector.load %arg11[%c0_61, %c1_62, %c0_63, %c0_64] : memref<4x2x1x32xf32, #tpu.memory_space<vmem>>, vector<1x1x1x32xf32>
    %112 = vector.shape_cast %111 : vector<1x1x1x32xf32> to vector<1x32xf32>
    %113 = vector.broadcast %112 : vector<1x32xf32> to vector<16x32xf32>
    %114 = arith.addf %110, %113 : vector<16x32xf32>
    %c0_65 = arith.constant 0 : index
    %c0_66 = arith.constant 0 : index
    %c0_67 = arith.constant 0 : index
    %c0_68 = arith.constant 0 : index
    %115 = vector.load %arg10[%c0_65, %c0_66, %c0_67, %c0_68] : memref<4x2x32x32xbf16, #tpu.memory_space<vmem>>, vector<1x1x32x32xbf16>
    %116 = vector.shape_cast %115 : vector<1x1x32x32xbf16> to vector<32x32xbf16>
    %cst_69 = arith.constant dense<0.000000e+00> : vector<16x32xf32>
    %117 = tpu.matmul %106, %116, %cst_69 {dimension_numbers = #tpu.dot_dimension_numbers<[1], [0], [0], [1], [0, 0, 1, 1], [], []>} : vector<16x32xbf16>, vector<32x32xbf16>, vector<16x32xf32> -> vector<16x32xf32>
    %c0_70 = arith.constant 0 : index
    %c0_71 = arith.constant 0 : index
    %c0_72 = arith.constant 0 : index
    %c0_73 = arith.constant 0 : index
    %118 = vector.load %arg11[%c0_70, %c0_71, %c0_72, %c0_73] : memref<4x2x1x32xf32, #tpu.memory_space<vmem>>, vector<1x1x1x32xf32>
    %119 = vector.shape_cast %118 : vector<1x1x1x32xf32> to vector<1x32xf32>
    %120 = vector.broadcast %119 : vector<1x32xf32> to vector<16x32xf32>
    %121 = arith.addf %117, %120 : vector<16x32xf32>
    %122 = arith.addf %26, %121 : vector<16x32xf32>
    %123 = vector.broadcast %5 : vector<16x1xf32> to vector<16x32xf32>
    %124 = arith.mulf %122, %123 : vector<16x32xf32>
    %c2_i32_74 = arith.constant 2 : i32
    %125 = tpu.dynamic_rotate %124 by %c2_i32_74 dim 0 : vector<16x32xf32>, i32 -> vector<16x32xf32>
    %c-2_i32_75 = arith.constant -2 : i32
    %126 = vector.broadcast %c-2_i32_75 : i32 to vector<16x1xi32>
    %127 = arith.addi %27, %126 : vector<16x1xi32>
    %c0_i32_76 = arith.constant 0 : i32
    %128 = vector.broadcast %c0_i32_76 : i32 to vector<16x1xi32>
    %129 = arith.cmpi sge, %127, %128 : vector<16x1xi32>
    %c-2_i32_77 = arith.constant -2 : i32
    %130 = vector.broadcast %c-2_i32_77 : i32 to vector<16x1xi32>
    %131 = arith.addi %27, %130 : vector<16x1xi32>
    %c16_i32_78 = arith.constant 16 : i32
    %132 = vector.broadcast %c16_i32_78 : i32 to vector<16x1xi32>
    %133 = arith.cmpi slt, %131, %132 : vector<16x1xi32>
    %134 = arith.andi %129, %133 : vector<16x1xi1>
    %cst_79 = arith.constant 0.000000e+00 : f32
    %135 = vector.shape_cast %134 : vector<16x1xi1> to vector<16x1xi1>
    %136 = vector.broadcast %135 : vector<16x1xi1> to vector<16x32xi1>
    %137 = vector.broadcast %cst_79 : f32 to vector<16x32xf32>
    %138 = arith.select %136, %125, %137 : vector<16x32xi1>, vector<16x32xf32>
    %c1_i32_80 = arith.constant 1 : i32
    %139 = tpu.dynamic_rotate %124 by %c1_i32_80 dim 0 : vector<16x32xf32>, i32 -> vector<16x32xf32>
    %c-1_i32_81 = arith.constant -1 : i32
    %140 = vector.broadcast %c-1_i32_81 : i32 to vector<16x1xi32>
    %141 = arith.addi %27, %140 : vector<16x1xi32>
    %c0_i32_82 = arith.constant 0 : i32
    %142 = vector.broadcast %c0_i32_82 : i32 to vector<16x1xi32>
    %143 = arith.cmpi sge, %141, %142 : vector<16x1xi32>
    %c-1_i32_83 = arith.constant -1 : i32
    %144 = vector.broadcast %c-1_i32_83 : i32 to vector<16x1xi32>
    %145 = arith.addi %27, %144 : vector<16x1xi32>
    %c16_i32_84 = arith.constant 16 : i32
    %146 = vector.broadcast %c16_i32_84 : i32 to vector<16x1xi32>
    %147 = arith.cmpi slt, %145, %146 : vector<16x1xi32>
    %148 = arith.andi %143, %147 : vector<16x1xi1>
    %cst_85 = arith.constant 0.000000e+00 : f32
    %149 = vector.shape_cast %148 : vector<16x1xi1> to vector<16x1xi1>
    %150 = vector.broadcast %149 : vector<16x1xi1> to vector<16x32xi1>
    %151 = vector.broadcast %cst_85 : f32 to vector<16x32xf32>
    %152 = arith.select %150, %139, %151 : vector<16x32xi1>, vector<16x32xf32>
    %c15_i32_86 = arith.constant 15 : i32
    %153 = tpu.dynamic_rotate %124 by %c15_i32_86 dim 0 : vector<16x32xf32>, i32 -> vector<16x32xf32>
    %c1_i32_87 = arith.constant 1 : i32
    %154 = vector.broadcast %c1_i32_87 : i32 to vector<16x1xi32>
    %155 = arith.addi %27, %154 : vector<16x1xi32>
    %c0_i32_88 = arith.constant 0 : i32
    %156 = vector.broadcast %c0_i32_88 : i32 to vector<16x1xi32>
    %157 = arith.cmpi sge, %155, %156 : vector<16x1xi32>
    %c1_i32_89 = arith.constant 1 : i32
    %158 = vector.broadcast %c1_i32_89 : i32 to vector<16x1xi32>
    %159 = arith.addi %27, %158 : vector<16x1xi32>
    %c16_i32_90 = arith.constant 16 : i32
    %160 = vector.broadcast %c16_i32_90 : i32 to vector<16x1xi32>
    %161 = arith.cmpi slt, %159, %160 : vector<16x1xi32>
    %162 = arith.andi %157, %161 : vector<16x1xi1>
    %cst_91 = arith.constant 0.000000e+00 : f32
    %163 = vector.shape_cast %162 : vector<16x1xi1> to vector<16x1xi1>
    %164 = vector.broadcast %163 : vector<16x1xi1> to vector<16x32xi1>
    %165 = vector.broadcast %cst_91 : f32 to vector<16x32xf32>
    %166 = arith.select %164, %153, %165 : vector<16x32xi1>, vector<16x32xf32>
    %c14_i32_92 = arith.constant 14 : i32
    %167 = tpu.dynamic_rotate %124 by %c14_i32_92 dim 0 : vector<16x32xf32>, i32 -> vector<16x32xf32>
    %c2_i32_93 = arith.constant 2 : i32
    %168 = vector.broadcast %c2_i32_93 : i32 to vector<16x1xi32>
    %169 = arith.addi %27, %168 : vector<16x1xi32>
    %c0_i32_94 = arith.constant 0 : i32
    %170 = vector.broadcast %c0_i32_94 : i32 to vector<16x1xi32>
    %171 = arith.cmpi sge, %169, %170 : vector<16x1xi32>
    %c2_i32_95 = arith.constant 2 : i32
    %172 = vector.broadcast %c2_i32_95 : i32 to vector<16x1xi32>
    %173 = arith.addi %27, %172 : vector<16x1xi32>
    %c16_i32_96 = arith.constant 16 : i32
    %174 = vector.broadcast %c16_i32_96 : i32 to vector<16x1xi32>
    %175 = arith.cmpi slt, %173, %174 : vector<16x1xi32>
    %176 = arith.andi %171, %175 : vector<16x1xi1>
    %cst_97 = arith.constant 0.000000e+00 : f32
    %177 = vector.shape_cast %176 : vector<16x1xi1> to vector<16x1xi1>
    %178 = vector.broadcast %177 : vector<16x1xi1> to vector<16x32xi1>
    %179 = vector.broadcast %cst_97 : f32 to vector<16x32xf32>
    %180 = arith.select %178, %167, %179 : vector<16x32xi1>, vector<16x32xf32>
    %181 = tpu.concatenate %138, %152, %124, %166, %180 in 1 : vector<16x32xf32>, vector<16x32xf32>, vector<16x32xf32>, vector<16x32xf32>, vector<16x32xf32> -> vector<16x160xf32>
    %182 = arith.truncf %181 : vector<16x160xf32> to vector<16x160xbf16>
    %c1_98 = arith.constant 1 : index
    %c0_99 = arith.constant 0 : index
    %c0_100 = arith.constant 0 : index
    %c0_101 = arith.constant 0 : index
    %183 = vector.load %arg7[%c1_98, %c0_99, %c0_100, %c0_101] : memref<4x2x160x32xbf16, #tpu.memory_space<vmem>>, vector<1x1x160x32xbf16>
    %184 = vector.shape_cast %183 : vector<1x1x160x32xbf16> to vector<160x32xbf16>
    %cst_102 = arith.constant dense<0.000000e+00> : vector<16x32xf32>
    %185 = tpu.matmul %182, %184, %cst_102 {dimension_numbers = #tpu.dot_dimension_numbers<[1], [0], [0], [1], [0, 0, 1, 1], [], []>} : vector<16x160xbf16>, vector<160x32xbf16>, vector<16x32xf32> -> vector<16x32xf32>
    %186 = vector.extract_strided_slice %13 {offsets = [0, 32], sizes = [1, 32], strides = [1, 1]} : vector<1x128xf32> to vector<1x32xf32>
    %187 = vector.broadcast %186 : vector<1x32xf32> to vector<16x32xf32>
    %188 = arith.addf %185, %187 : vector<16x32xf32>
    %c1_103 = arith.constant 1 : index
    %c1_104 = arith.constant 1 : index
    %c0_105 = arith.constant 0 : index
    %c0_106 = arith.constant 0 : index
    %189 = vector.load %arg7[%c1_103, %c1_104, %c0_105, %c0_106] : memref<4x2x160x32xbf16, #tpu.memory_space<vmem>>, vector<1x1x160x32xbf16>
    %190 = vector.shape_cast %189 : vector<1x1x160x32xbf16> to vector<160x32xbf16>
    %cst_107 = arith.constant dense<0.000000e+00> : vector<16x32xf32>
    %191 = tpu.matmul %182, %190, %cst_107 {dimension_numbers = #tpu.dot_dimension_numbers<[1], [0], [0], [1], [0, 0, 1, 1], [], []>} : vector<16x160xbf16>, vector<160x32xbf16>, vector<16x32xf32> -> vector<16x32xf32>
    %192 = vector.extract_strided_slice %19 {offsets = [0, 32], sizes = [1, 32], strides = [1, 1]} : vector<1x128xf32> to vector<1x32xf32>
    %193 = vector.broadcast %192 : vector<1x32xf32> to vector<16x32xf32>
    %194 = arith.addf %191, %193 : vector<16x32xf32>
    %195 = math.tanh %188 : vector<16x32xf32>
    %196 = arith.negf %194 : vector<16x32xf32>
    %197 = math.exp %196 : vector<16x32xf32>
    %cst_108 = arith.constant 1.000000e+00 : f32
    %198 = vector.broadcast %cst_108 : f32 to vector<16x32xf32>
    %199 = arith.addf %198, %197 : vector<16x32xf32>
    %200 = arith.divf %198, %199 : vector<16x32xf32>
    %201 = arith.mulf %195, %200 : vector<16x32xf32>
    %202 = arith.truncf %201 : vector<16x32xf32> to vector<16x32xbf16>
    %c1_109 = arith.constant 1 : index
    %c1_110 = arith.constant 1 : index
    %c0_111 = arith.constant 0 : index
    %c0_112 = arith.constant 0 : index
    %203 = vector.load %arg10[%c1_109, %c1_110, %c0_111, %c0_112] : memref<4x2x32x32xbf16, #tpu.memory_space<vmem>>, vector<1x1x32x32xbf16>
    %204 = vector.shape_cast %203 : vector<1x1x32x32xbf16> to vector<32x32xbf16>
    %cst_113 = arith.constant dense<0.000000e+00> : vector<16x32xf32>
    %205 = tpu.matmul %202, %204, %cst_113 {dimension_numbers = #tpu.dot_dimension_numbers<[1], [0], [0], [1], [0, 0, 1, 1], [], []>} : vector<16x32xbf16>, vector<32x32xbf16>, vector<16x32xf32> -> vector<16x32xf32>
    %206 = arith.addf %114, %205 : vector<16x32xf32>
    %c1_114 = arith.constant 1 : index
    %c1_115 = arith.constant 1 : index
    %c0_116 = arith.constant 0 : index
    %c0_117 = arith.constant 0 : index
    %207 = vector.load %arg11[%c1_114, %c1_115, %c0_116, %c0_117] : memref<4x2x1x32xf32, #tpu.memory_space<vmem>>, vector<1x1x1x32xf32>
    %208 = vector.shape_cast %207 : vector<1x1x1x32xf32> to vector<1x32xf32>
    %209 = vector.broadcast %208 : vector<1x32xf32> to vector<16x32xf32>
    %210 = arith.addf %206, %209 : vector<16x32xf32>
    %c1_118 = arith.constant 1 : index
    %c0_119 = arith.constant 0 : index
    %c0_120 = arith.constant 0 : index
    %c0_121 = arith.constant 0 : index
    %211 = vector.load %arg10[%c1_118, %c0_119, %c0_120, %c0_121] : memref<4x2x32x32xbf16, #tpu.memory_space<vmem>>, vector<1x1x32x32xbf16>
    %212 = vector.shape_cast %211 : vector<1x1x32x32xbf16> to vector<32x32xbf16>
    %cst_122 = arith.constant dense<0.000000e+00> : vector<16x32xf32>
    %213 = tpu.matmul %202, %212, %cst_122 {dimension_numbers = #tpu.dot_dimension_numbers<[1], [0], [0], [1], [0, 0, 1, 1], [], []>} : vector<16x32xbf16>, vector<32x32xbf16>, vector<16x32xf32> -> vector<16x32xf32>
    %c1_123 = arith.constant 1 : index
    %c0_124 = arith.constant 0 : index
    %c0_125 = arith.constant 0 : index
    %c0_126 = arith.constant 0 : index
    %214 = vector.load %arg11[%c1_123, %c0_124, %c0_125, %c0_126] : memref<4x2x1x32xf32, #tpu.memory_space<vmem>>, vector<1x1x1x32xf32>
    %215 = vector.shape_cast %214 : vector<1x1x1x32xf32> to vector<1x32xf32>
    %216 = vector.broadcast %215 : vector<1x32xf32> to vector<16x32xf32>
    %217 = arith.addf %213, %216 : vector<16x32xf32>
    %218 = arith.addf %124, %217 : vector<16x32xf32>
    %219 = vector.broadcast %5 : vector<16x1xf32> to vector<16x32xf32>
    %220 = arith.mulf %218, %219 : vector<16x32xf32>
    %c2_i32_127 = arith.constant 2 : i32
    %221 = tpu.dynamic_rotate %220 by %c2_i32_127 dim 0 : vector<16x32xf32>, i32 -> vector<16x32xf32>
    %c-2_i32_128 = arith.constant -2 : i32
    %222 = vector.broadcast %c-2_i32_128 : i32 to vector<16x1xi32>
    %223 = arith.addi %27, %222 : vector<16x1xi32>
    %c0_i32_129 = arith.constant 0 : i32
    %224 = vector.broadcast %c0_i32_129 : i32 to vector<16x1xi32>
    %225 = arith.cmpi sge, %223, %224 : vector<16x1xi32>
    %c-2_i32_130 = arith.constant -2 : i32
    %226 = vector.broadcast %c-2_i32_130 : i32 to vector<16x1xi32>
    %227 = arith.addi %27, %226 : vector<16x1xi32>
    %c16_i32_131 = arith.constant 16 : i32
    %228 = vector.broadcast %c16_i32_131 : i32 to vector<16x1xi32>
    %229 = arith.cmpi slt, %227, %228 : vector<16x1xi32>
    %230 = arith.andi %225, %229 : vector<16x1xi1>
    %cst_132 = arith.constant 0.000000e+00 : f32
    %231 = vector.shape_cast %230 : vector<16x1xi1> to vector<16x1xi1>
    %232 = vector.broadcast %231 : vector<16x1xi1> to vector<16x32xi1>
    %233 = vector.broadcast %cst_132 : f32 to vector<16x32xf32>
    %234 = arith.select %232, %221, %233 : vector<16x32xi1>, vector<16x32xf32>
    %c1_i32_133 = arith.constant 1 : i32
    %235 = tpu.dynamic_rotate %220 by %c1_i32_133 dim 0 : vector<16x32xf32>, i32 -> vector<16x32xf32>
    %c-1_i32_134 = arith.constant -1 : i32
    %236 = vector.broadcast %c-1_i32_134 : i32 to vector<16x1xi32>
    %237 = arith.addi %27, %236 : vector<16x1xi32>
    %c0_i32_135 = arith.constant 0 : i32
    %238 = vector.broadcast %c0_i32_135 : i32 to vector<16x1xi32>
    %239 = arith.cmpi sge, %237, %238 : vector<16x1xi32>
    %c-1_i32_136 = arith.constant -1 : i32
    %240 = vector.broadcast %c-1_i32_136 : i32 to vector<16x1xi32>
    %241 = arith.addi %27, %240 : vector<16x1xi32>
    %c16_i32_137 = arith.constant 16 : i32
    %242 = vector.broadcast %c16_i32_137 : i32 to vector<16x1xi32>
    %243 = arith.cmpi slt, %241, %242 : vector<16x1xi32>
    %244 = arith.andi %239, %243 : vector<16x1xi1>
    %cst_138 = arith.constant 0.000000e+00 : f32
    %245 = vector.shape_cast %244 : vector<16x1xi1> to vector<16x1xi1>
    %246 = vector.broadcast %245 : vector<16x1xi1> to vector<16x32xi1>
    %247 = vector.broadcast %cst_138 : f32 to vector<16x32xf32>
    %248 = arith.select %246, %235, %247 : vector<16x32xi1>, vector<16x32xf32>
    %c15_i32_139 = arith.constant 15 : i32
    %249 = tpu.dynamic_rotate %220 by %c15_i32_139 dim 0 : vector<16x32xf32>, i32 -> vector<16x32xf32>
    %c1_i32_140 = arith.constant 1 : i32
    %250 = vector.broadcast %c1_i32_140 : i32 to vector<16x1xi32>
    %251 = arith.addi %27, %250 : vector<16x1xi32>
    %c0_i32_141 = arith.constant 0 : i32
    %252 = vector.broadcast %c0_i32_141 : i32 to vector<16x1xi32>
    %253 = arith.cmpi sge, %251, %252 : vector<16x1xi32>
    %c1_i32_142 = arith.constant 1 : i32
    %254 = vector.broadcast %c1_i32_142 : i32 to vector<16x1xi32>
    %255 = arith.addi %27, %254 : vector<16x1xi32>
    %c16_i32_143 = arith.constant 16 : i32
    %256 = vector.broadcast %c16_i32_143 : i32 to vector<16x1xi32>
    %257 = arith.cmpi slt, %255, %256 : vector<16x1xi32>
    %258 = arith.andi %253, %257 : vector<16x1xi1>
    %cst_144 = arith.constant 0.000000e+00 : f32
    %259 = vector.shape_cast %258 : vector<16x1xi1> to vector<16x1xi1>
    %260 = vector.broadcast %259 : vector<16x1xi1> to vector<16x32xi1>
    %261 = vector.broadcast %cst_144 : f32 to vector<16x32xf32>
    %262 = arith.select %260, %249, %261 : vector<16x32xi1>, vector<16x32xf32>
    %c14_i32_145 = arith.constant 14 : i32
    %263 = tpu.dynamic_rotate %220 by %c14_i32_145 dim 0 : vector<16x32xf32>, i32 -> vector<16x32xf32>
    %c2_i32_146 = arith.constant 2 : i32
    %264 = vector.broadcast %c2_i32_146 : i32 to vector<16x1xi32>
    %265 = arith.addi %27, %264 : vector<16x1xi32>
    %c0_i32_147 = arith.constant 0 : i32
    %266 = vector.broadcast %c0_i32_147 : i32 to vector<16x1xi32>
    %267 = arith.cmpi sge, %265, %266 : vector<16x1xi32>
    %c2_i32_148 = arith.constant 2 : i32
    %268 = vector.broadcast %c2_i32_148 : i32 to vector<16x1xi32>
    %269 = arith.addi %27, %268 : vector<16x1xi32>
    %c16_i32_149 = arith.constant 16 : i32
    %270 = vector.broadcast %c16_i32_149 : i32 to vector<16x1xi32>
    %271 = arith.cmpi slt, %269, %270 : vector<16x1xi32>
    %272 = arith.andi %267, %271 : vector<16x1xi1>
    %cst_150 = arith.constant 0.000000e+00 : f32
    %273 = vector.shape_cast %272 : vector<16x1xi1> to vector<16x1xi1>
    %274 = vector.broadcast %273 : vector<16x1xi1> to vector<16x32xi1>
    %275 = vector.broadcast %cst_150 : f32 to vector<16x32xf32>
    %276 = arith.select %274, %263, %275 : vector<16x32xi1>, vector<16x32xf32>
    %277 = tpu.concatenate %234, %248, %220, %262, %276 in 1 : vector<16x32xf32>, vector<16x32xf32>, vector<16x32xf32>, vector<16x32xf32>, vector<16x32xf32> -> vector<16x160xf32>
    %278 = arith.truncf %277 : vector<16x160xf32> to vector<16x160xbf16>
    %c2 = arith.constant 2 : index
    %c0_151 = arith.constant 0 : index
    %c0_152 = arith.constant 0 : index
    %c0_153 = arith.constant 0 : index
    %279 = vector.load %arg7[%c2, %c0_151, %c0_152, %c0_153] : memref<4x2x160x32xbf16, #tpu.memory_space<vmem>>, vector<1x1x160x32xbf16>
    %280 = vector.shape_cast %279 : vector<1x1x160x32xbf16> to vector<160x32xbf16>
    %cst_154 = arith.constant dense<0.000000e+00> : vector<16x32xf32>
    %281 = tpu.matmul %278, %280, %cst_154 {dimension_numbers = #tpu.dot_dimension_numbers<[1], [0], [0], [1], [0, 0, 1, 1], [], []>} : vector<16x160xbf16>, vector<160x32xbf16>, vector<16x32xf32> -> vector<16x32xf32>
    %282 = vector.extract_strided_slice %13 {offsets = [0, 64], sizes = [1, 32], strides = [1, 1]} : vector<1x128xf32> to vector<1x32xf32>
    %283 = vector.broadcast %282 : vector<1x32xf32> to vector<16x32xf32>
    %284 = arith.addf %281, %283 : vector<16x32xf32>
    %c2_155 = arith.constant 2 : index
    %c1_156 = arith.constant 1 : index
    %c0_157 = arith.constant 0 : index
    %c0_158 = arith.constant 0 : index
    %285 = vector.load %arg7[%c2_155, %c1_156, %c0_157, %c0_158] : memref<4x2x160x32xbf16, #tpu.memory_space<vmem>>, vector<1x1x160x32xbf16>
    %286 = vector.shape_cast %285 : vector<1x1x160x32xbf16> to vector<160x32xbf16>
    %cst_159 = arith.constant dense<0.000000e+00> : vector<16x32xf32>
    %287 = tpu.matmul %278, %286, %cst_159 {dimension_numbers = #tpu.dot_dimension_numbers<[1], [0], [0], [1], [0, 0, 1, 1], [], []>} : vector<16x160xbf16>, vector<160x32xbf16>, vector<16x32xf32> -> vector<16x32xf32>
    %288 = vector.extract_strided_slice %19 {offsets = [0, 64], sizes = [1, 32], strides = [1, 1]} : vector<1x128xf32> to vector<1x32xf32>
    %289 = vector.broadcast %288 : vector<1x32xf32> to vector<16x32xf32>
    %290 = arith.addf %287, %289 : vector<16x32xf32>
    %291 = math.tanh %284 : vector<16x32xf32>
    %292 = arith.negf %290 : vector<16x32xf32>
    %293 = math.exp %292 : vector<16x32xf32>
    %cst_160 = arith.constant 1.000000e+00 : f32
    %294 = vector.broadcast %cst_160 : f32 to vector<16x32xf32>
    %295 = arith.addf %294, %293 : vector<16x32xf32>
    %296 = arith.divf %294, %295 : vector<16x32xf32>
    %297 = arith.mulf %291, %296 : vector<16x32xf32>
    %298 = arith.truncf %297 : vector<16x32xf32> to vector<16x32xbf16>
    %c2_161 = arith.constant 2 : index
    %c1_162 = arith.constant 1 : index
    %c0_163 = arith.constant 0 : index
    %c0_164 = arith.constant 0 : index
    %299 = vector.load %arg10[%c2_161, %c1_162, %c0_163, %c0_164] : memref<4x2x32x32xbf16, #tpu.memory_space<vmem>>, vector<1x1x32x32xbf16>
    %300 = vector.shape_cast %299 : vector<1x1x32x32xbf16> to vector<32x32xbf16>
    %cst_165 = arith.constant dense<0.000000e+00> : vector<16x32xf32>
    %301 = tpu.matmul %298, %300, %cst_165 {dimension_numbers = #tpu.dot_dimension_numbers<[1], [0], [0], [1], [0, 0, 1, 1], [], []>} : vector<16x32xbf16>, vector<32x32xbf16>, vector<16x32xf32> -> vector<16x32xf32>
    %302 = arith.addf %210, %301 : vector<16x32xf32>
    %c2_166 = arith.constant 2 : index
    %c1_167 = arith.constant 1 : index
    %c0_168 = arith.constant 0 : index
    %c0_169 = arith.constant 0 : index
    %303 = vector.load %arg11[%c2_166, %c1_167, %c0_168, %c0_169] : memref<4x2x1x32xf32, #tpu.memory_space<vmem>>, vector<1x1x1x32xf32>
    %304 = vector.shape_cast %303 : vector<1x1x1x32xf32> to vector<1x32xf32>
    %305 = vector.broadcast %304 : vector<1x32xf32> to vector<16x32xf32>
    %306 = arith.addf %302, %305 : vector<16x32xf32>
    %c2_170 = arith.constant 2 : index
    %c0_171 = arith.constant 0 : index
    %c0_172 = arith.constant 0 : index
    %c0_173 = arith.constant 0 : index
    %307 = vector.load %arg10[%c2_170, %c0_171, %c0_172, %c0_173] : memref<4x2x32x32xbf16, #tpu.memory_space<vmem>>, vector<1x1x32x32xbf16>
    %308 = vector.shape_cast %307 : vector<1x1x32x32xbf16> to vector<32x32xbf16>
    %cst_174 = arith.constant dense<0.000000e+00> : vector<16x32xf32>
    %309 = tpu.matmul %298, %308, %cst_174 {dimension_numbers = #tpu.dot_dimension_numbers<[1], [0], [0], [1], [0, 0, 1, 1], [], []>} : vector<16x32xbf16>, vector<32x32xbf16>, vector<16x32xf32> -> vector<16x32xf32>
    %c2_175 = arith.constant 2 : index
    %c0_176 = arith.constant 0 : index
    %c0_177 = arith.constant 0 : index
    %c0_178 = arith.constant 0 : index
    %310 = vector.load %arg11[%c2_175, %c0_176, %c0_177, %c0_178] : memref<4x2x1x32xf32, #tpu.memory_space<vmem>>, vector<1x1x1x32xf32>
    %311 = vector.shape_cast %310 : vector<1x1x1x32xf32> to vector<1x32xf32>
    %312 = vector.broadcast %311 : vector<1x32xf32> to vector<16x32xf32>
    %313 = arith.addf %309, %312 : vector<16x32xf32>
    %314 = arith.addf %220, %313 : vector<16x32xf32>
    %315 = vector.broadcast %5 : vector<16x1xf32> to vector<16x32xf32>
    %316 = arith.mulf %314, %315 : vector<16x32xf32>
    %c2_i32_179 = arith.constant 2 : i32
    %317 = tpu.dynamic_rotate %316 by %c2_i32_179 dim 0 : vector<16x32xf32>, i32 -> vector<16x32xf32>
    %c-2_i32_180 = arith.constant -2 : i32
    %318 = vector.broadcast %c-2_i32_180 : i32 to vector<16x1xi32>
    %319 = arith.addi %27, %318 : vector<16x1xi32>
    %c0_i32_181 = arith.constant 0 : i32
    %320 = vector.broadcast %c0_i32_181 : i32 to vector<16x1xi32>
    %321 = arith.cmpi sge, %319, %320 : vector<16x1xi32>
    %c-2_i32_182 = arith.constant -2 : i32
    %322 = vector.broadcast %c-2_i32_182 : i32 to vector<16x1xi32>
    %323 = arith.addi %27, %322 : vector<16x1xi32>
    %c16_i32_183 = arith.constant 16 : i32
    %324 = vector.broadcast %c16_i32_183 : i32 to vector<16x1xi32>
    %325 = arith.cmpi slt, %323, %324 : vector<16x1xi32>
    %326 = arith.andi %321, %325 : vector<16x1xi1>
    %cst_184 = arith.constant 0.000000e+00 : f32
    %327 = vector.shape_cast %326 : vector<16x1xi1> to vector<16x1xi1>
    %328 = vector.broadcast %327 : vector<16x1xi1> to vector<16x32xi1>
    %329 = vector.broadcast %cst_184 : f32 to vector<16x32xf32>
    %330 = arith.select %328, %317, %329 : vector<16x32xi1>, vector<16x32xf32>
    %c1_i32_185 = arith.constant 1 : i32
    %331 = tpu.dynamic_rotate %316 by %c1_i32_185 dim 0 : vector<16x32xf32>, i32 -> vector<16x32xf32>
    %c-1_i32_186 = arith.constant -1 : i32
    %332 = vector.broadcast %c-1_i32_186 : i32 to vector<16x1xi32>
    %333 = arith.addi %27, %332 : vector<16x1xi32>
    %c0_i32_187 = arith.constant 0 : i32
    %334 = vector.broadcast %c0_i32_187 : i32 to vector<16x1xi32>
    %335 = arith.cmpi sge, %333, %334 : vector<16x1xi32>
    %c-1_i32_188 = arith.constant -1 : i32
    %336 = vector.broadcast %c-1_i32_188 : i32 to vector<16x1xi32>
    %337 = arith.addi %27, %336 : vector<16x1xi32>
    %c16_i32_189 = arith.constant 16 : i32
    %338 = vector.broadcast %c16_i32_189 : i32 to vector<16x1xi32>
    %339 = arith.cmpi slt, %337, %338 : vector<16x1xi32>
    %340 = arith.andi %335, %339 : vector<16x1xi1>
    %cst_190 = arith.constant 0.000000e+00 : f32
    %341 = vector.shape_cast %340 : vector<16x1xi1> to vector<16x1xi1>
    %342 = vector.broadcast %341 : vector<16x1xi1> to vector<16x32xi1>
    %343 = vector.broadcast %cst_190 : f32 to vector<16x32xf32>
    %344 = arith.select %342, %331, %343 : vector<16x32xi1>, vector<16x32xf32>
    %c15_i32_191 = arith.constant 15 : i32
    %345 = tpu.dynamic_rotate %316 by %c15_i32_191 dim 0 : vector<16x32xf32>, i32 -> vector<16x32xf32>
    %c1_i32_192 = arith.constant 1 : i32
    %346 = vector.broadcast %c1_i32_192 : i32 to vector<16x1xi32>
    %347 = arith.addi %27, %346 : vector<16x1xi32>
    %c0_i32_193 = arith.constant 0 : i32
    %348 = vector.broadcast %c0_i32_193 : i32 to vector<16x1xi32>
    %349 = arith.cmpi sge, %347, %348 : vector<16x1xi32>
    %c1_i32_194 = arith.constant 1 : i32
    %350 = vector.broadcast %c1_i32_194 : i32 to vector<16x1xi32>
    %351 = arith.addi %27, %350 : vector<16x1xi32>
    %c16_i32_195 = arith.constant 16 : i32
    %352 = vector.broadcast %c16_i32_195 : i32 to vector<16x1xi32>
    %353 = arith.cmpi slt, %351, %352 : vector<16x1xi32>
    %354 = arith.andi %349, %353 : vector<16x1xi1>
    %cst_196 = arith.constant 0.000000e+00 : f32
    %355 = vector.shape_cast %354 : vector<16x1xi1> to vector<16x1xi1>
    %356 = vector.broadcast %355 : vector<16x1xi1> to vector<16x32xi1>
    %357 = vector.broadcast %cst_196 : f32 to vector<16x32xf32>
    %358 = arith.select %356, %345, %357 : vector<16x32xi1>, vector<16x32xf32>
    %c14_i32_197 = arith.constant 14 : i32
    %359 = tpu.dynamic_rotate %316 by %c14_i32_197 dim 0 : vector<16x32xf32>, i32 -> vector<16x32xf32>
    %c2_i32_198 = arith.constant 2 : i32
    %360 = vector.broadcast %c2_i32_198 : i32 to vector<16x1xi32>
    %361 = arith.addi %27, %360 : vector<16x1xi32>
    %c0_i32_199 = arith.constant 0 : i32
    %362 = vector.broadcast %c0_i32_199 : i32 to vector<16x1xi32>
    %363 = arith.cmpi sge, %361, %362 : vector<16x1xi32>
    %c2_i32_200 = arith.constant 2 : i32
    %364 = vector.broadcast %c2_i32_200 : i32 to vector<16x1xi32>
    %365 = arith.addi %27, %364 : vector<16x1xi32>
    %c16_i32_201 = arith.constant 16 : i32
    %366 = vector.broadcast %c16_i32_201 : i32 to vector<16x1xi32>
    %367 = arith.cmpi slt, %365, %366 : vector<16x1xi32>
    %368 = arith.andi %363, %367 : vector<16x1xi1>
    %cst_202 = arith.constant 0.000000e+00 : f32
    %369 = vector.shape_cast %368 : vector<16x1xi1> to vector<16x1xi1>
    %370 = vector.broadcast %369 : vector<16x1xi1> to vector<16x32xi1>
    %371 = vector.broadcast %cst_202 : f32 to vector<16x32xf32>
    %372 = arith.select %370, %359, %371 : vector<16x32xi1>, vector<16x32xf32>
    %373 = tpu.concatenate %330, %344, %316, %358, %372 in 1 : vector<16x32xf32>, vector<16x32xf32>, vector<16x32xf32>, vector<16x32xf32>, vector<16x32xf32> -> vector<16x160xf32>
    %374 = arith.truncf %373 : vector<16x160xf32> to vector<16x160xbf16>
    %c3 = arith.constant 3 : index
    %c0_203 = arith.constant 0 : index
    %c0_204 = arith.constant 0 : index
    %c0_205 = arith.constant 0 : index
    %375 = vector.load %arg7[%c3, %c0_203, %c0_204, %c0_205] : memref<4x2x160x32xbf16, #tpu.memory_space<vmem>>, vector<1x1x160x32xbf16>
    %376 = vector.shape_cast %375 : vector<1x1x160x32xbf16> to vector<160x32xbf16>
    %cst_206 = arith.constant dense<0.000000e+00> : vector<16x32xf32>
    %377 = tpu.matmul %374, %376, %cst_206 {dimension_numbers = #tpu.dot_dimension_numbers<[1], [0], [0], [1], [0, 0, 1, 1], [], []>} : vector<16x160xbf16>, vector<160x32xbf16>, vector<16x32xf32> -> vector<16x32xf32>
    %378 = vector.extract_strided_slice %13 {offsets = [0, 96], sizes = [1, 32], strides = [1, 1]} : vector<1x128xf32> to vector<1x32xf32>
    %379 = vector.broadcast %378 : vector<1x32xf32> to vector<16x32xf32>
    %380 = arith.addf %377, %379 : vector<16x32xf32>
    %c3_207 = arith.constant 3 : index
    %c1_208 = arith.constant 1 : index
    %c0_209 = arith.constant 0 : index
    %c0_210 = arith.constant 0 : index
    %381 = vector.load %arg7[%c3_207, %c1_208, %c0_209, %c0_210] : memref<4x2x160x32xbf16, #tpu.memory_space<vmem>>, vector<1x1x160x32xbf16>
    %382 = vector.shape_cast %381 : vector<1x1x160x32xbf16> to vector<160x32xbf16>
    %cst_211 = arith.constant dense<0.000000e+00> : vector<16x32xf32>
    %383 = tpu.matmul %374, %382, %cst_211 {dimension_numbers = #tpu.dot_dimension_numbers<[1], [0], [0], [1], [0, 0, 1, 1], [], []>} : vector<16x160xbf16>, vector<160x32xbf16>, vector<16x32xf32> -> vector<16x32xf32>
    %384 = vector.extract_strided_slice %19 {offsets = [0, 96], sizes = [1, 32], strides = [1, 1]} : vector<1x128xf32> to vector<1x32xf32>
    %385 = vector.broadcast %384 : vector<1x32xf32> to vector<16x32xf32>
    %386 = arith.addf %383, %385 : vector<16x32xf32>
    %387 = math.tanh %380 : vector<16x32xf32>
    %388 = arith.negf %386 : vector<16x32xf32>
    %389 = math.exp %388 : vector<16x32xf32>
    %cst_212 = arith.constant 1.000000e+00 : f32
    %390 = vector.broadcast %cst_212 : f32 to vector<16x32xf32>
    %391 = arith.addf %390, %389 : vector<16x32xf32>
    %392 = arith.divf %390, %391 : vector<16x32xf32>
    %393 = arith.mulf %387, %392 : vector<16x32xf32>
    %394 = arith.truncf %393 : vector<16x32xf32> to vector<16x32xbf16>
    %c3_213 = arith.constant 3 : index
    %c1_214 = arith.constant 1 : index
    %c0_215 = arith.constant 0 : index
    %c0_216 = arith.constant 0 : index
    %395 = vector.load %arg10[%c3_213, %c1_214, %c0_215, %c0_216] : memref<4x2x32x32xbf16, #tpu.memory_space<vmem>>, vector<1x1x32x32xbf16>
    %396 = vector.shape_cast %395 : vector<1x1x32x32xbf16> to vector<32x32xbf16>
    %cst_217 = arith.constant dense<0.000000e+00> : vector<16x32xf32>
    %397 = tpu.matmul %394, %396, %cst_217 {dimension_numbers = #tpu.dot_dimension_numbers<[1], [0], [0], [1], [0, 0, 1, 1], [], []>} : vector<16x32xbf16>, vector<32x32xbf16>, vector<16x32xf32> -> vector<16x32xf32>
    %398 = arith.addf %306, %397 : vector<16x32xf32>
    %c3_218 = arith.constant 3 : index
    %c1_219 = arith.constant 1 : index
    %c0_220 = arith.constant 0 : index
    %c0_221 = arith.constant 0 : index
    %399 = vector.load %arg11[%c3_218, %c1_219, %c0_220, %c0_221] : memref<4x2x1x32xf32, #tpu.memory_space<vmem>>, vector<1x1x1x32xf32>
    %400 = vector.shape_cast %399 : vector<1x1x1x32xf32> to vector<1x32xf32>
    %401 = vector.broadcast %400 : vector<1x32xf32> to vector<16x32xf32>
    %402 = arith.addf %398, %401 : vector<16x32xf32>
    %403 = vector.broadcast %5 : vector<16x1xf32> to vector<16x32xf32>
    %404 = arith.mulf %402, %403 : vector<16x32xf32>
    %c0_222 = arith.constant 0 : index
    %c0_223 = arith.constant 0 : index
    %c0_224 = arith.constant 0 : index
    %405 = vector.load %arg12[%c0_222, %c0_223, %c0_224] : memref<2x32x4xf32, #tpu.memory_space<vmem>>, vector<1x32x4xf32>
    %406 = vector.shape_cast %405 : vector<1x32x4xf32> to vector<32x4xf32>
    %cst_225 = arith.constant dense<0.000000e+00> : vector<16x4xf32>
    %407 = tpu.matmul %404, %406, %cst_225 {dimension_numbers = #tpu.dot_dimension_numbers<[1], [0], [0], [1], [0, 0, 1, 1], [], []>} : vector<16x32xf32>, vector<32x4xf32>, vector<16x4xf32> -> vector<16x4xf32>
    %c0_226 = arith.constant 0 : index
    %c0_227 = arith.constant 0 : index
    %c0_228 = arith.constant 0 : index
    %408 = vector.load %arg13[%c0_226, %c0_227, %c0_228] : memref<2x1x4xf32, #tpu.memory_space<vmem>>, vector<1x1x4xf32>
    %409 = vector.shape_cast %408 : vector<1x1x4xf32> to vector<1x4xf32>
    %410 = vector.broadcast %409 : vector<1x4xf32> to vector<16x4xf32>
    %411 = arith.addf %407, %410 : vector<16x4xf32>
    %412 = vector.broadcast %5 : vector<16x1xf32> to vector<16x4xf32>
    %413 = arith.mulf %411, %412 : vector<16x4xf32>
    %c1_229 = arith.constant 1 : index
    %c0_230 = arith.constant 0 : index
    %c0_231 = arith.constant 0 : index
    %414 = vector.load %arg12[%c1_229, %c0_230, %c0_231] : memref<2x32x4xf32, #tpu.memory_space<vmem>>, vector<1x32x4xf32>
    %415 = vector.shape_cast %414 : vector<1x32x4xf32> to vector<32x4xf32>
    %cst_232 = arith.constant dense<0.000000e+00> : vector<16x4xf32>
    %416 = tpu.matmul %404, %415, %cst_232 {dimension_numbers = #tpu.dot_dimension_numbers<[1], [0], [0], [1], [0, 0, 1, 1], [], []>} : vector<16x32xf32>, vector<32x4xf32>, vector<16x4xf32> -> vector<16x4xf32>
    %c1_233 = arith.constant 1 : index
    %c0_234 = arith.constant 0 : index
    %c0_235 = arith.constant 0 : index
    %417 = vector.load %arg13[%c1_233, %c0_234, %c0_235] : memref<2x1x4xf32, #tpu.memory_space<vmem>>, vector<1x1x4xf32>
    %418 = vector.shape_cast %417 : vector<1x1x4xf32> to vector<1x4xf32>
    %419 = vector.broadcast %418 : vector<1x4xf32> to vector<16x4xf32>
    %420 = arith.addf %416, %419 : vector<16x4xf32>
    %421 = vector.broadcast %5 : vector<16x1xf32> to vector<16x4xf32>
    %422 = arith.mulf %420, %421 : vector<16x4xf32>
    %423 = math.exp %422 : vector<16x4xf32>
    %424 = arith.mulf %3, %423 : vector<16x4xf32>
    %425 = vector.broadcast %5 : vector<16x1xf32> to vector<16x4xf32>
    %426 = arith.mulf %424, %425 : vector<16x4xf32>
    %427 = arith.addf %413, %426 : vector<16x4xf32>
    %c0_236 = arith.constant 0 : index
    %c0_237 = arith.constant 0 : index
    %c0_238 = arith.constant 0 : index
    %428 = vector.load %arg14[%c0_236, %c0_237, %c0_238] : memref<1x16x4xf32, #tpu.memory_space<vmem>>, vector<1x16x4xf32>
    %429 = vector.shape_cast %428 : vector<1x16x4xf32> to vector<16x4xf32>
    %430 = vector.shape_cast %427 : vector<16x4xf32> to vector<1x16x4xf32>
    tpu.vector_store %arg14[%c0_236, %c0_237, %c0_238], %430 {strides = array<i32>} : memref<1x16x4xf32, #tpu.memory_space<vmem>>, vector<1x16x4xf32>,
    %cst_239 = arith.constant dense<0.000000e+00> : vector<16xf32>
    %431 = vector.multi_reduction <add>, %422, %cst_239 [1] : vector<16x4xf32> to vector<16xf32>
    %432 = vector.shape_cast %431 : vector<16xf32> to vector<16x1xf32>
    %c0_240 = arith.constant 0 : index
    %c0_241 = arith.constant 0 : index
    %c0_242 = arith.constant 0 : index
    %433 = vector.load %arg15[%c0_240, %c0_241, %c0_242] : memref<1x16x1xf32, #tpu.memory_space<vmem>>, vector<1x16x1xf32>
    %434 = vector.shape_cast %433 : vector<1x16x1xf32> to vector<16x1xf32>
    %435 = vector.shape_cast %432 : vector<16x1xf32> to vector<1x16x1xf32>
    tpu.vector_store %arg15[%c0_240, %c0_241, %c0_242], %435 {strides = array<i32>} : memref<1x16x1xf32, #tpu.memory_space<vmem>>, vector<1x16x1xf32>,
    return
  }
  func.func @transform_0(%arg0: i32) -> (i32, i32, i32) {
    %c0_i32 = arith.constant 0 : i32
    %c0_i32_0 = arith.constant 0 : i32
    %c0_i32_1 = arith.constant 0 : i32
    return %arg0, %c0_i32, %c0_i32_0 : i32, i32, i32
  }
  func.func @transform_1(%arg0: i32) -> (i32, i32, i32) {
    %c0_i32 = arith.constant 0 : i32
    %c0_i32_0 = arith.constant 0 : i32
    %c0_i32_1 = arith.constant 0 : i32
    return %arg0, %c0_i32, %c0_i32_0 : i32, i32, i32
  }
  func.func @transform_2(%arg0: i32) -> (i32, i32, i32) {
    %c0_i32 = arith.constant 0 : i32
    %c0_i32_0 = arith.constant 0 : i32
    %c0_i32_1 = arith.constant 0 : i32
    return %arg0, %c0_i32, %c0_i32_0 : i32, i32, i32
  }
  func.func @transform_3(%arg0: i32) -> (i32, i32, i32) {
    %c0_i32 = arith.constant 0 : i32
    %c0_i32_0 = arith.constant 0 : i32
    %c0_i32_1 = arith.constant 0 : i32
    return %arg0, %c0_i32, %c0_i32_0 : i32, i32, i32
  }
  func.func @transform_4(%arg0: i32) -> (i32, i32) {
    %c0_i32 = arith.constant 0 : i32
    %c0_i32_0 = arith.constant 0 : i32
    %c0_i32_1 = arith.constant 0 : i32
    return %c0_i32, %c0_i32_0 : i32, i32
  }
  func.func @transform_5(%arg0: i32) -> (i32, i32) {
    %c0_i32 = arith.constant 0 : i32
    %c0_i32_0 = arith.constant 0 : i32
    %c0_i32_1 = arith.constant 0 : i32
    return %c0_i32, %c0_i32_0 : i32, i32
  }
  func.func @transform_6(%arg0: i32) -> (i32, i32, i32, i32) {
    %c0_i32 = arith.constant 0 : i32
    %c0_i32_0 = arith.constant 0 : i32
    %c0_i32_1 = arith.constant 0 : i32
    %c0_i32_2 = arith.constant 0 : i32
    %c0_i32_3 = arith.constant 0 : i32
    return %c0_i32, %c0_i32_0, %c0_i32_1, %c0_i32_2 : i32, i32, i32, i32
  }
  func.func @transform_7(%arg0: i32) -> (i32, i32, i32) {
    %c0_i32 = arith.constant 0 : i32
    %c0_i32_0 = arith.constant 0 : i32
    %c0_i32_1 = arith.constant 0 : i32
    %c0_i32_2 = arith.constant 0 : i32
    return %c0_i32, %c0_i32_0, %c0_i32_1 : i32, i32, i32
  }
  func.func @transform_8(%arg0: i32) -> (i32, i32, i32) {
    %c0_i32 = arith.constant 0 : i32
    %c0_i32_0 = arith.constant 0 : i32
    %c0_i32_1 = arith.constant 0 : i32
    %c0_i32_2 = arith.constant 0 : i32
    return %c0_i32, %c0_i32_0, %c0_i32_1 : i32, i32, i32
  }
  func.func @transform_9(%arg0: i32) -> (i32, i32, i32, i32) {
    %c0_i32 = arith.constant 0 : i32
    %c0_i32_0 = arith.constant 0 : i32
    %c0_i32_1 = arith.constant 0 : i32
    %c0_i32_2 = arith.constant 0 : i32
    %c0_i32_3 = arith.constant 0 : i32
    return %c0_i32, %c0_i32_0, %c0_i32_1, %c0_i32_2 : i32, i32, i32, i32
  }
  func.func @transform_10(%arg0: i32) -> (i32, i32, i32, i32) {
    %c0_i32 = arith.constant 0 : i32
    %c0_i32_0 = arith.constant 0 : i32
    %c0_i32_1 = arith.constant 0 : i32
    %c0_i32_2 = arith.constant 0 : i32
    %c0_i32_3 = arith.constant 0 : i32
    return %c0_i32, %c0_i32_0, %c0_i32_1, %c0_i32_2 : i32, i32, i32, i32
  }
  func.func @transform_11(%arg0: i32) -> (i32, i32, i32) {
    %c0_i32 = arith.constant 0 : i32
    %c0_i32_0 = arith.constant 0 : i32
    %c0_i32_1 = arith.constant 0 : i32
    %c0_i32_2 = arith.constant 0 : i32
    return %c0_i32, %c0_i32_0, %c0_i32_1 : i32, i32, i32
  }
  func.func @transform_12(%arg0: i32) -> (i32, i32, i32) {
    %c0_i32 = arith.constant 0 : i32
    %c0_i32_0 = arith.constant 0 : i32
    %c0_i32_1 = arith.constant 0 : i32
    %c0_i32_2 = arith.constant 0 : i32
    return %c0_i32, %c0_i32_0, %c0_i32_1 : i32, i32, i32
  }
  func.func @transform_13(%arg0: i32) -> (i32, i32, i32) {
    %c0_i32 = arith.constant 0 : i32
    %c0_i32_0 = arith.constant 0 : i32
    %c0_i32_1 = arith.constant 0 : i32
    return %arg0, %c0_i32, %c0_i32_0 : i32, i32, i32
  }
  func.func @transform_14(%arg0: i32) -> (i32, i32, i32) {
    %c0_i32 = arith.constant 0 : i32
    %c0_i32_0 = arith.constant 0 : i32
    %c0_i32_1 = arith.constant 0 : i32
    return %arg0, %c0_i32, %c0_i32_0 : i32, i32, i32
  }
}

</mosaic_0001>

<llo_original>
// kernel: tpu_custom_call.1
$region0: #{tpu_custom_call.1}
  #allocation0 [shape = 'u32[]', space=smem, size = 0x4, offset = 0x4, fixed_abs, tag = 'smem constant byte address 0x4 - core index']
  #allocation1 [shape = 'u32[144,128]{1,0:T(1,128)}', space=vmem, size = 0x12000, scoped, tag = 'internal scratch']
  %s0 = inlined_call_operand.vmem [shape: f32[2,16,4], index: 0, kind: input, shape index: {}]
  %s1 = inlined_call_operand.vmem [shape: f32[2,16,4], index: 1, kind: input, shape index: {}]
  %s2 = inlined_call_operand.vmem [shape: f32[2,16,1], index: 2, kind: input, shape index: {}]
  %s3 = inlined_call_operand.vmem [shape: f32[2,1,16], index: 3, kind: input, shape index: {}]
  %s4 = inlined_call_operand.vmem [shape: f32[4,32], index: 4, kind: input, shape index: {}]
  %s5 = inlined_call_operand.vmem [shape: f32[1,32], index: 5, kind: input, shape index: {}]
  %s6 = inlined_call_operand.vmem [shape: bf16[4,2,160,32], index: 6, kind: input, shape index: {}]
  %s7 = inlined_call_operand.vmem [shape: f32[2,16,128], index: 7, kind: input, shape index: {}]
  %s8 = inlined_call_operand.vmem [shape: f32[2,1,128], index: 8, kind: input, shape index: {}]
  %s9 = inlined_call_operand.vmem [shape: bf16[4,2,32,32], index: 9, kind: input, shape index: {}]
  %s10 = inlined_call_operand.vmem [shape: f32[4,2,1,32], index: 10, kind: input, shape index: {}]
  %s11 = inlined_call_operand.vmem [shape: f32[2,32,4], index: 11, kind: input, shape index: {}]
  %s12 = inlined_call_operand.vmem [shape: f32[2,1,4], index: 12, kind: input, shape index: {}]
  %s13 = inlined_call_operand.vmem [shape: f32[2,16,4], index: 13, kind: output, shape index: {0}]
  %s14 = inlined_call_operand.vmem [shape: f32[2,16,1], index: 14, kind: output, shape index: {1}]
  %15 = xla_tuple %s13, %s14
  %s16 = sld [smem:[#allocation0]]
  $region93: #{tpu_custom_call.1} parent=0
    _
  %s18 = ssub.s32 1, %s16
  %s19 = scalar_select 0, %s18, %s16
  loop: start=0, step=1, limit=4
  $region2: #{tpu_custom_call.1} parent=0 // loop_pre_header
    _
  $region3: #{tpu_custom_call.1} parent=0 // loop_header
    %s21 = sphi 0, %s25
    %p22 = scmp.ge.s32.totalorder %s21, 4
    %s31 = sphi 0, %s33
    %s34 = sphi 0, %s31
    %s35 = sphi 0, %s34
    %s51 = sphi 0, %s35
    %s57 = sphi 0, %s59
    %s60 = sphi 0, %s57
    %s61 = sphi 0, %s60
    %s77 = sphi 0, %s61
    %s83 = sphi 0, %s85
    %s86 = sphi 0, %s83
    %s87 = sphi 0, %s86
    %s103 = sphi 0, %s87
    %s109 = sphi 0, %s111
    %s112 = sphi 0, %s109
    %s113 = sphi 0, %s112
    %s129 = sphi 0, %s113
    %s133 = sphi 0, %s133
    %s135 = sphi 0, %s133
    %s136 = sphi 0, %s135
    %s150 = sphi 0, %s136
    %s154 = sphi 0, %s154
    %s156 = sphi 0, %s154
    %s157 = sphi 0, %s156
    %s171 = sphi 0, %s157
    %s175 = sphi 0, %s175
    %s177 = sphi 0, %s175
    %s178 = sphi 0, %s177
    %s192 = sphi 0, %s178
    %s196 = sphi 0, %s196
    %s198 = sphi 0, %s196
    %s199 = sphi 0, %s198
    %s213 = sphi 0, %s199
    %s217 = sphi 0, %s217
    %s219 = sphi 0, %s217
    %s220 = sphi 0, %s219
    %s234 = sphi 0, %s220
    %s238 = sphi 0, %s238
    %s240 = sphi 0, %s238
    %s241 = sphi 0, %s240
    %s255 = sphi 0, %s241
    %s259 = sphi 0, %s259
    %s261 = sphi 0, %s259
    %s262 = sphi 0, %s261
    %s276 = sphi 0, %s262
    %s280 = sphi 0, %s280
    %s282 = sphi 0, %s280
    %s283 = sphi 0, %s282
    %s297 = sphi 0, %s283
    %s301 = sphi 0, %s301
    %s303 = sphi 0, %s301
    %s304 = sphi 0, %s303
    %s318 = sphi 0, %s304
    %s324 = sphi 0, %s326
    %s327 = sphi 0, %s324
    %s328 = sphi 0, %s327
    %s344 = sphi 0, %s328
    %s350 = sphi 0, %s352
    %s353 = sphi 0, %s350
    %s354 = sphi 0, %s353
    %s370 = sphi 0, %s354
  $region4: #{tpu_custom_call.1} parent=0 // loop_header_branch
    %24 = sbr.rel (%p22) target = $region8
  $region5: #{tpu_custom_call.1} parent=0 // loop_body
    %s26 = ssub.s32 %s21, 1
    %s27 = ssub.s32 %s21, 2
    %s28 = sadd.s32 %s21, 1
    %s29 = ssub.s32 %s21, %s28
    %p30 = scmp.eq.s32.totalorder %s29, 0
    %s32 = sadd.s32 %s31, 1
    %s33 = scalar_select %p30, %s31, %s32
    %p36 = pneg %p30
    %p37 = scmp.eq.s32.totalorder %s21, 1
    %p38 = por %p36, %p37
    %p39 = scmp.ne.s32.totalorder %s31, %s34
    %p40 = scmp.eq.s32.totalorder %s21, 0
    %p41 = por %p39, %p40
    %p42 = scmp.ne.s32.totalorder %s31, %s34
    %p43 = scmp.eq.s32.totalorder %s26, 1
    %p44 = por %p42, %p43
    %p45 = scmp.ne.s32.totalorder %s34, %s35
    %p46 = scmp.eq.s32.totalorder %s26, 0
    %p47 = por %p45, %p46
    %p48 = scmp.ne.s32.totalorder %s34, %s35
    %p49 = scmp.eq.s32.totalorder %s27, 1
    %p50 = por %p48, %p49
    %p52 = scmp.ne.s32.totalorder %s35, %s51
    %p53 = scmp.eq.s32.totalorder %s27, 0
    %p54 = por %p52, %p53
    %s55 = ssub.s32 %s21, %s28
    %p56 = scmp.eq.s32.totalorder %s55, 0
    %s58 = sadd.s32 %s57, 1
    %s59 = scalar_select %p56, %s57, %s58
    %p62 = pneg %p56
    %p63 = scmp.eq.s32.totalorder %s21, 1
    %p64 = por %p62, %p63
    %p65 = scmp.ne.s32.totalorder %s57, %s60
    %p66 = scmp.eq.s32.totalorder %s21, 0
    %p67 = por %p65, %p66
    %p68 = scmp.ne.s32.totalorder %s57, %s60
    %p69 = scmp.eq.s32.totalorder %s26, 1
    %p70 = por %p68, %p69
    %p71 = scmp.ne.s32.totalorder %s60, %s61
    %p72 = scmp.eq.s32.totalorder %s26, 0
    %p73 = por %p71, %p72
    %p74 = scmp.ne.s32.totalorder %s60, %s61
    %p75 = scmp.eq.s32.totalorder %s27, 1
    %p76 = por %p74, %p75
    %p78 = scmp.ne.s32.totalorder %s61, %s77
    %p79 = scmp.eq.s32.totalorder %s27, 0
    %p80 = por %p78, %p79
    %s81 = ssub.s32 %s21, %s28
    %p82 = scmp.eq.s32.totalorder %s81, 0
    %s84 = sadd.s32 %s83, 1
    %s85 = scalar_select %p82, %s83, %s84
    %p88 = pneg %p82
    %p89 = scmp.eq.s32.totalorder %s21, 1
    %p90 = por %p88, %p89
    %p91 = scmp.ne.s32.totalorder %s83, %s86
    %p92 = scmp.eq.s32.totalorder %s21, 0
    %p93 = por %p91, %p92
    %p94 = scmp.ne.s32.totalorder %s83, %s86
    %p95 = scmp.eq.s32.totalorder %s26, 1
    %p96 = por %p94, %p95
    %p97 = scmp.ne.s32.totalorder %s86, %s87
    %p98 = scmp.eq.s32.totalorder %s26, 0
    %p99 = por %p97, %p98
    %p100 = scmp.ne.s32.totalorder %s86, %s87
    %p101 = scmp.eq.s32.totalorder %s27, 1
    %p102 = por %p100, %p101
    %p104 = scmp.ne.s32.totalorder %s87, %s103
    %p105 = scmp.eq.s32.totalorder %s27, 0
    %p106 = por %p104, %p105
    %s107 = ssub.s32 %s21, %s28
    %p108 = scmp.eq.s32.totalorder %s107, 0
    %s110 = sadd.s32 %s109, 1
    %s111 = scalar_select %p108, %s109, %s110
    %p114 = pneg %p108
    %p115 = scmp.eq.s32.totalorder %s21, 1
    %p116 = por %p114, %p115
    %p117 = scmp.ne.s32.totalorder %s109, %s112
    %p118 = scmp.eq.s32.totalorder %s21, 0
    %p119 = por %p117, %p118
    %p120 = scmp.ne.s32.totalorder %s109, %s112
    %p121 = scmp.eq.s32.totalorder %s26, 1
    %p122 = por %p120, %p121
    %p123 = scmp.ne.s32.totalorder %s112, %s113
    %p124 = scmp.eq.s32.totalorder %s26, 0
    %p125 = por %p123, %p124
    %p126 = scmp.ne.s32.totalorder %s112, %s113
    %p127 = scmp.eq.s32.totalorder %s27, 1
    %p128 = por %p126, %p127
    %p130 = scmp.ne.s32.totalorder %s113, %s129
    %p131 = scmp.eq.s32.totalorder %s27, 0
    %p132 = por %p130, %p131
    %s134 = sadd.s32 %s133, 1
    %p137 = scmp.eq.s32.totalorder %s21, 1
    %p138 = scmp.ne.s32.totalorder %s133, %s135
    %p139 = scmp.eq.s32.totalorder %s21, 0
    %p140 = por %p138, %p139
    %p141 = scmp.ne.s32.totalorder %s133, %s135
    %p142 = scmp.eq.s32.totalorder %s26, 1
    %p143 = por %p141, %p142
    %p144 = scmp.ne.s32.totalorder %s135, %s136
    %p145 = scmp.eq.s32.totalorder %s26, 0
    %p146 = por %p144, %p145
    %p147 = scmp.ne.s32.totalorder %s135, %s136
    %p148 = scmp.eq.s32.totalorder %s27, 1
    %p149 = por %p147, %p148
    %p151 = scmp.ne.s32.totalorder %s136, %s150
    %p152 = scmp.eq.s32.totalorder %s27, 0
    %p153 = por %p151, %p152
    %s155 = sadd.s32 %s154, 1
    %p158 = scmp.eq.s32.totalorder %s21, 1
    %p159 = scmp.ne.s32.totalorder %s154, %s156
    %p160 = scmp.eq.s32.totalorder %s21, 0
    %p161 = por %p159, %p160
    %p162 = scmp.ne.s32.totalorder %s154, %s156
    %p163 = scmp.eq.s32.totalorder %s26, 1
    %p164 = por %p162, %p163
    %p165 = scmp.ne.s32.totalorder %s156, %s157
    %p166 = scmp.eq.s32.totalorder %s26, 0
    %p167 = por %p165, %p166
    %p168 = scmp.ne.s32.totalorder %s156, %s157
    %p169 = scmp.eq.s32.totalorder %s27, 1
    %p170 = por %p168, %p169
    %p172 = scmp.ne.s32.totalorder %s157, %s171
    %p173 = scmp.eq.s32.totalorder %s27, 0
    %p174 = por %p172, %p173
    %s176 = sadd.s32 %s175, 1
    %p179 = scmp.eq.s32.totalorder %s21, 1
    %p180 = scmp.ne.s32.totalorder %s175, %s177
    %p181 = scmp.eq.s32.totalorder %s21, 0
    %p182 = por %p180, %p181
    %p183 = scmp.ne.s32.totalorder %s175, %s177
    %p184 = scmp.eq.s32.totalorder %s26, 1
    %p185 = por %p183, %p184
    %p186 = scmp.ne.s32.totalorder %s177, %s178
    %p187 = scmp.eq.s32.totalorder %s26, 0
    %p188 = por %p186, %p187
    %p189 = scmp.ne.s32.totalorder %s177, %s178
    %p190 = scmp.eq.s32.totalorder %s27, 1
    %p191 = por %p189, %p190
    %p193 = scmp.ne.s32.totalorder %s178, %s192
    %p194 = scmp.eq.s32.totalorder %s27, 0
    %p195 = por %p193, %p194
    %s197 = sadd.s32 %s196, 1
    %p200 = scmp.eq.s32.totalorder %s21, 1
    %p201 = scmp.ne.s32.totalorder %s196, %s198
    %p202 = scmp.eq.s32.totalorder %s21, 0
    %p203 = por %p201, %p202
    %p204 = scmp.ne.s32.totalorder %s196, %s198
    %p205 = scmp.eq.s32.totalorder %s26, 1
    %p206 = por %p204, %p205
    %p207 = scmp.ne.s32.totalorder %s198, %s199
    %p208 = scmp.eq.s32.totalorder %s26, 0
    %p209 = por %p207, %p208
    %p210 = scmp.ne.s32.totalorder %s198, %s199
    %p211 = scmp.eq.s32.totalorder %s27, 1
    %p212 = por %p210, %p211
    %p214 = scmp.ne.s32.totalorder %s199, %s213
    %p215 = scmp.eq.s32.totalorder %s27, 0
    %p216 = por %p214, %p215
    %s218 = sadd.s32 %s217, 1
    %p221 = scmp.eq.s32.totalorder %s21, 1
    %p222 = scmp.ne.s32.totalorder %s217, %s219
    %p223 = scmp.eq.s32.totalorder %s21, 0
    %p224 = por %p222, %p223
    %p225 = scmp.ne.s32.totalorder %s217, %s219
    %p226 = scmp.eq.s32.totalorder %s26, 1
    %p227 = por %p225, %p226
    %p228 = scmp.ne.s32.totalorder %s219, %s220
    %p229 = scmp.eq.s32.totalorder %s26, 0
    %p230 = por %p228, %p229
    %p231 = scmp.ne.s32.totalorder %s219, %s220
    %p232 = scmp.eq.s32.totalorder %s27, 1
    %p233 = por %p231, %p232
    %p235 = scmp.ne.s32.totalorder %s220, %s234
    %p236 = scmp.eq.s32.totalorder %s27, 0
    %p237 = por %p235, %p236
    %s239 = sadd.s32 %s238, 1
    %p242 = scmp.eq.s32.totalorder %s21, 1
    %p243 = scmp.ne.s32.totalorder %s238, %s240
    %p244 = scmp.eq.s32.totalorder %s21, 0
    %p245 = por %p243, %p244
    %p246 = scmp.ne.s32.totalorder %s238, %s240
    %p247 = scmp.eq.s32.totalorder %s26, 1
    %p248 = por %p246, %p247
    %p249 = scmp.ne.s32.totalorder %s240, %s241
    %p250 = scmp.eq.s32.totalorder %s26, 0
    %p251 = por %p249, %p250
    %p252 = scmp.ne.s32.totalorder %s240, %s241
    %p253 = scmp.eq.s32.totalorder %s27, 1
    %p254 = por %p252, %p253
    %p256 = scmp.ne.s32.totalorder %s241, %s255
    %p257 = scmp.eq.s32.totalorder %s27, 0
    %p258 = por %p256, %p257
    %s260 = sadd.s32 %s259, 1
    %p263 = scmp.eq.s32.totalorder %s21, 1
    %p264 = scmp.ne.s32.totalorder %s259, %s261
    %p265 = scmp.eq.s32.totalorder %s21, 0
    %p266 = por %p264, %p265
    %p267 = scmp.ne.s32.totalorder %s259, %s261
    %p268 = scmp.eq.s32.totalorder %s26, 1
    %p269 = por %p267, %p268
    %p270 = scmp.ne.s32.totalorder %s261, %s262
    %p271 = scmp.eq.s32.totalorder %s26, 0
    %p272 = por %p270, %p271
    %p273 = scmp.ne.s32.totalorder %s261, %s262
    %p274 = scmp.eq.s32.totalorder %s27, 1
    %p275 = por %p273, %p274
    %p277 = scmp.ne.s32.totalorder %s262, %s276
    %p278 = scmp.eq.s32.totalorder %s27, 0
    %p279 = por %p277, %p278
    %s281 = sadd.s32 %s280, 1
    %p284 = scmp.eq.s32.totalorder %s21, 1
    %p285 = scmp.ne.s32.totalorder %s280, %s282
    %p286 = scmp.eq.s32.totalorder %s21, 0
    %p287 = por %p285, %p286
    %p288 = scmp.ne.s32.totalorder %s280, %s282
    %p289 = scmp.eq.s32.totalorder %s26, 1
    %p290 = por %p288, %p289
    %p291 = scmp.ne.s32.totalorder %s282, %s283
    %p292 = scmp.eq.s32.totalorder %s26, 0
    %p293 = por %p291, %p292
    %p294 = scmp.ne.s32.totalorder %s282, %s283
    %p295 = scmp.eq.s32.totalorder %s27, 1
    %p296 = por %p294, %p295
    %p298 = scmp.ne.s32.totalorder %s283, %s297
    %p299 = scmp.eq.s32.totalorder %s27, 0
    %p300 = por %p298, %p299
    %s302 = sadd.s32 %s301, 1
    %p305 = scmp.eq.s32.totalorder %s21, 1
    %p306 = scmp.ne.s32.totalorder %s301, %s303
    %p307 = scmp.eq.s32.totalorder %s21, 0
    %p308 = por %p306, %p307
    %p309 = scmp.ne.s32.totalorder %s301, %s303
    %p310 = scmp.eq.s32.totalorder %s26, 1
    %p311 = por %p309, %p310
    %p312 = scmp.ne.s32.totalorder %s303, %s304
    %p313 = scmp.eq.s32.totalorder %s26, 0
    %p314 = por %p312, %p313
    %p315 = scmp.ne.s32.totalorder %s303, %s304
    %p316 = scmp.eq.s32.totalorder %s27, 1
    %p317 = por %p315, %p316
    %p319 = scmp.ne.s32.totalorder %s304, %s318
    %p320 = scmp.eq.s32.totalorder %s27, 0
    %p321 = por %p319, %p320
    %s322 = ssub.s32 %s21, %s28
    %p323 = scmp.eq.s32.totalorder %s322, 0
    %s325 = sadd.s32 %s324, 1
    %s326 = scalar_select %p323, %s324, %s325
    %p329 = pneg %p323
    %p330 = scmp.eq.s32.totalorder %s21, 1
    %p331 = por %p329, %p330
    %p332 = scmp.ne.s32.totalorder %s324, %s327
    %p333 = scmp.eq.s32.totalorder %s21, 0
    %p334 = por %p332, %p333
    %p335 = scmp.ne.s32.totalorder %s324, %s327
    %p336 = scmp.eq.s32.totalorder %s26, 1
    %p337 = por %p335, %p336
    %p338 = scmp.ne.s32.totalorder %s327, %s328
    %p339 = scmp.eq.s32.totalorder %s26, 0
    %p340 = por %p338, %p339
    %p341 = scmp.ne.s32.totalorder %s327, %s328
    %p342 = scmp.eq.s32.totalorder %s27, 1
    %p343 = por %p341, %p342
    %p345 = scmp.ne.s32.totalorder %s328, %s344
    %p346 = scmp.eq.s32.totalorder %s27, 0
    %p347 = por %p345, %p346
    %s348 = ssub.s32 %s21, %s28
    %p349 = scmp.eq.s32.totalorder %s348, 0
    %s351 = sadd.s32 %s350, 1
    %s352 = scalar_select %p349, %s350, %s351
    %p355 = pneg %p349
    %p356 = scmp.eq.s32.totalorder %s21, 1
    %p357 = por %p355, %p356
    %p358 = scmp.ne.s32.totalorder %s350, %s353
    %p359 = scmp.eq.s32.totalorder %s21, 0
    %p360 = por %p358, %p359
    %p361 = scmp.ne.s32.totalorder %s350, %s353
    %p362 = scmp.eq.s32.totalorder %s26, 1
    %p363 = por %p361, %p362
    %p364 = scmp.ne.s32.totalorder %s353, %s354
    %p365 = scmp.eq.s32.totalorder %s26, 0
    %p366 = por %p364, %p365
    %p367 = scmp.ne.s32.totalorder %s353, %s354
    %p368 = scmp.eq.s32.totalorder %s27, 1
    %p369 = por %p367, %p368
    %p371 = scmp.ne.s32.totalorder %s354, %s370
    %p372 = scmp.eq.s32.totalorder %s27, 0
    %p373 = por %p371, %p372
    %p374 = scmp.le.s32.totalorder 1, %s21
    %p375 = scmp.lt.s32.totalorder %s21, 3
    %p376 = pnand %p374, %p375
    %p377 = pneg %p376
    // Predicated region
    $region9: #{tpu_custom_call.1} parent=5 // pred_check
      _
    $region10: #{tpu_custom_call.1} parent=5 // pred_check_branch
      %379 = sbr.rel (%p376) target = $region12
    $region11: #{tpu_custom_call.1} parent=5 // pred_region
      %s380 = ssub.s32 %s21, 1
      // Predicated region
      $region13: #{tpu_custom_call.1} parent=11 // pred_check
        %p381 = pneg %p146
      $region14: #{tpu_custom_call.1} parent=11 // pred_check_branch
        %383 = sbr.rel (%p381) target = $region16
      $region15: #{tpu_custom_call.1} parent=11 // pred_region
        _
      $region16: #{tpu_custom_call.1} parent=11 // pred_fallthru
        _
      // Predicated region
      $region17: #{tpu_custom_call.1} parent=11 // pred_check
        %p384 = pneg %p167
      $region18: #{tpu_custom_call.1} parent=11 // pred_check_branch
        %386 = sbr.rel (%p384) target = $region20
      $region19: #{tpu_custom_call.1} parent=11 // pred_region
        _
      $region20: #{tpu_custom_call.1} parent=11 // pred_fallthru
        _
      // Predicated region
      $region21: #{tpu_custom_call.1} parent=11 // pred_check
        %p387 = pneg %p188
      $region22: #{tpu_custom_call.1} parent=11 // pred_check_branch
        %389 = sbr.rel (%p387) target = $region24
      $region23: #{tpu_custom_call.1} parent=11 // pred_region
        _
      $region24: #{tpu_custom_call.1} parent=11 // pred_fallthru
        _
      // Predicated region
      $region25: #{tpu_custom_call.1} parent=11 // pred_check
        %p390 = pneg %p209
      $region26: #{tpu_custom_call.1} parent=11 // pred_check_branch
        %392 = sbr.rel (%p390) target = $region28
      $region27: #{tpu_custom_call.1} parent=11 // pred_region
        _
      $region28: #{tpu_custom_call.1} parent=11 // pred_fallthru
        _
      // Predicated region
      $region29: #{tpu_custom_call.1} parent=11 // pred_check
        %p393 = pneg %p230
      $region30: #{tpu_custom_call.1} parent=11 // pred_check_branch
        %395 = sbr.rel (%p393) target = $region32
      $region31: #{tpu_custom_call.1} parent=11 // pred_region
        _
      $region32: #{tpu_custom_call.1} parent=11 // pred_fallthru
        _
      // Predicated region
      $region33: #{tpu_custom_call.1} parent=11 // pred_check
        %p396 = pneg %p251
      $region34: #{tpu_custom_call.1} parent=11 // pred_check_branch
        %398 = sbr.rel (%p396) target = $region36
      $region35: #{tpu_custom_call.1} parent=11 // pred_region
        _
      $region36: #{tpu_custom_call.1} parent=11 // pred_fallthru
        _
      // Predicated region
      $region37: #{tpu_custom_call.1} parent=11 // pred_check
        %p399 = pneg %p272
      $region38: #{tpu_custom_call.1} parent=11 // pred_check_branch
        %401 = sbr.rel (%p399) target = $region40
      $region39: #{tpu_custom_call.1} parent=11 // pred_region
        _
      $region40: #{tpu_custom_call.1} parent=11 // pred_fallthru
        _
      // Predicated region
      $region41: #{tpu_custom_call.1} parent=11 // pred_check
        %p402 = pneg %p293
      $region42: #{tpu_custom_call.1} parent=11 // pred_check_branch
        %404 = sbr.rel (%p402) target = $region44
      $region43: #{tpu_custom_call.1} parent=11 // pred_region
        _
      $region44: #{tpu_custom_call.1} parent=11 // pred_fallthru
        _
      // Predicated region
      $region45: #{tpu_custom_call.1} parent=11 // pred_check
        %p405 = pneg %p314
      $region46: #{tpu_custom_call.1} parent=11 // pred_check_branch
        %407 = sbr.rel (%p405) target = $region48
      $region47: #{tpu_custom_call.1} parent=11 // pred_region
        _
      $region48: #{tpu_custom_call.1} parent=11 // pred_fallthru
        _
    $region12: #{tpu_custom_call.1} parent=5 // pred_fallthru
      _
    %p408 = scmp.lt.s32.totalorder %s21, 2
    // Predicated region
    $region49: #{tpu_custom_call.1} parent=5 // pred_check
      %p409 = pneg %p408
    $region50: #{tpu_custom_call.1} parent=5 // pred_check_branch
      %411 = sbr.rel (%p409) target = $region52
    $region51: #{tpu_custom_call.1} parent=5 // pred_region
      // Predicated region
      $region53: #{tpu_custom_call.1} parent=51 // pred_check
        %p412 = pneg %p41
      $region54: #{tpu_custom_call.1} parent=51 // pred_check_branch
        %414 = sbr.rel (%p412) target = $region56
      $region55: #{tpu_custom_call.1} parent=51 // pred_region
        %p415 = scmp.lt.s32.totalorder %s21, 1
        %s416 = scalar_select %p415, %s21, 1
        %s417 = smul.addr %s416, 2
        %s418 = smul.addr %s417, 8
        %s419 = scalar_lea.vmem %s0, %s418
      $region56: #{tpu_custom_call.1} parent=51 // pred_fallthru
        _
      // Predicated region
      $region57: #{tpu_custom_call.1} parent=51 // pred_check
        %p420 = pneg %p67
      $region58: #{tpu_custom_call.1} parent=51 // pred_check_branch
        %422 = sbr.rel (%p420) target = $region60
      $region59: #{tpu_custom_call.1} parent=51 // pred_region
        %p423 = scmp.lt.s32.totalorder %s21, 1
        %s424 = scalar_select %p423, %s21, 1
        %s425 = smul.addr %s424, 2
        %s426 = smul.addr %s425, 8
        %s427 = scalar_lea.vmem %s1, %s426
      $region60: #{tpu_custom_call.1} parent=51 // pred_fallthru
        _
      // Predicated region
      $region61: #{tpu_custom_call.1} parent=51 // pred_check
        %p428 = pneg %p93
      $region62: #{tpu_custom_call.1} parent=51 // pred_check_branch
        %430 = sbr.rel (%p428) target = $region64
      $region63: #{tpu_custom_call.1} parent=51 // pred_region
        %p431 = scmp.lt.s32.totalorder %s21, 1
        %s432 = scalar_select %p431, %s21, 1
        %s433 = smul.addr %s432, 2
        %s434 = smul.addr %s433, 8
        %s435 = scalar_lea.vmem %s2, %s434
      $region64: #{tpu_custom_call.1} parent=51 // pred_fallthru
        _
      // Predicated region
      $region65: #{tpu_custom_call.1} parent=51 // pred_check
        %p436 = pneg %p119
      $region66: #{tpu_custom_call.1} parent=51 // pred_check_branch
        %438 = sbr.rel (%p436) target = $region68
      $region67: #{tpu_custom_call.1} parent=51 // pred_region
        %p439 = scmp.lt.s32.totalorder %s21, 1
        %s440 = scalar_select %p439, %s21, 1
        %s441 = scalar_lea.vmem %s3, %s440
      $region68: #{tpu_custom_call.1} parent=51 // pred_fallthru
        _
    $region52: #{tpu_custom_call.1} parent=5 // pred_fallthru
      _
    %p442 = scmp.le.s32.totalorder 1, %s21
    %p443 = scmp.lt.s32.totalorder %s21, 3
    %p444 = pnand %p442, %p443
    %p445 = pneg %p444
    // Predicated region
    $region69: #{tpu_custom_call.1} parent=5 // pred_check
      _
    $region70: #{tpu_custom_call.1} parent=5 // pred_check_branch
      %447 = sbr.rel (%p444) target = $region72
    $region71: #{tpu_custom_call.1} parent=5 // pred_region
      %s448 = ssub.s32 %s21, 1
      %p449 = scmp.lt.s32.totalorder %s26, 1
      %s450 = scalar_select %p449, %s26, 1
      %s451 = smul.addr %s450, 2
      %s452 = smul.addr %s451, 8
      %s453 = scalar_lea.vmem %s0, %s452
      %p454 = pneg %p47
      %p455 = pneg %p44
      %p456 = scmp.lt.s32.totalorder %s26, 1
      %s457 = scalar_select %p456, %s26, 1
      %s458 = smul.addr %s457, 2
      %s459 = smul.addr %s458, 8
      %s460 = scalar_lea.vmem %s1, %s459
      %p461 = pneg %p73
      %p462 = pneg %p70
      %p463 = scmp.lt.s32.totalorder %s26, 1
      %s464 = scalar_select %p463, %s26, 1
      %s465 = smul.addr %s464, 2
      %s466 = smul.addr %s465, 8
      %s467 = scalar_lea.vmem %s2, %s466
      %p468 = pneg %p99
      %p469 = pneg %p96
      %p470 = scmp.lt.s32.totalorder %s26, 1
      %s471 = scalar_select %p470, %s26, 1
      %s472 = scalar_lea.vmem %s3, %s471
      %p473 = pneg %p125
      %p474 = pneg %p122
      %p475 = pneg %p146
      %p476 = pneg %p143
      %p477 = pneg %p167
      %p478 = pneg %p164
      %p479 = pneg %p188
      %p480 = pneg %p185
      %p481 = pneg %p209
      %p482 = pneg %p206
      %p483 = pneg %p230
      %p484 = pneg %p227
      %p485 = pneg %p251
      %p486 = pneg %p248
      %p487 = pneg %p272
      %p488 = pneg %p269
      %p489 = pneg %p293
      %p490 = pneg %p290
      %p491 = pneg %p314
      %p492 = pneg %p311
      %p493 = pneg %p340
      %p494 = pneg %p337
      %p495 = scmp.lt.s32.totalorder %s26, 1
      %s496 = scalar_select %p495, %s26, 1
      %s497 = smul.addr %s496, 2
      %s498 = smul.addr %s497, 8
      %s499 = scalar_lea.vmem %s13, %s498
      %p500 = pneg %p366
      %p501 = pneg %p363
      %p502 = scmp.lt.s32.totalorder %s26, 1
      %s503 = scalar_select %p502, %s26, 1
      %s504 = smul.addr %s503, 2
      %s505 = smul.addr %s504, 8
      %s506 = scalar_lea.vmem %s14, %s505
      %p507 = scmp.lt.s32.totalorder %s26, 1
      %s508 = scalar_select %p507, %s26, 1
      %s509 = smul.addr %s508, 2
      %s510 = smul.addr %s509, 8
      %s511 = scalar_lea.vmem %s0, %s510
      %p512 = scmp.lt.s32.totalorder %s26, 1
      %s513 = scalar_select %p512, %s26, 1
      %s514 = smul.addr %s513, 2
      %s515 = smul.addr %s514, 8
      %s516 = scalar_lea.vmem %s1, %s515
      %p517 = scmp.lt.s32.totalorder %s26, 1
      %s518 = scalar_select %p517, %s26, 1
      %s519 = smul.addr %s518, 2
      %s520 = smul.addr %s519, 8
      %s521 = scalar_lea.vmem %s2, %s520
      %p522 = scmp.lt.s32.totalorder %s26, 1
      %s523 = scalar_select %p522, %s26, 1
      %s524 = scalar_lea.vmem %s3, %s523
      %p525 = scmp.lt.s32.totalorder %s26, 1
      %s526 = scalar_select %p525, %s26, 1
      %s527 = smul.addr %s526, 2
      %s528 = smul.addr %s527, 8
      %s529 = scalar_lea.vmem %s13, %s528
      %p530 = scmp.lt.s32.totalorder %s26, 1
      %s531 = scalar_select %p530, %s26, 1
      %s532 = smul.addr %s531, 2
      %s533 = smul.addr %s532, 8
      %s534 = scalar_lea.vmem %s14, %s533
      %v536 = vld [vmem:[%s511] sm:$0xff]
      %v537 = vld [vmem:[%s511 + $0x8] sm:$0xff]
      %v538 = vld [vmem:[%s516] sm:$0xff]
      %v539 = vld [vmem:[%s516 + $0x8] sm:$0xff]
      %v540 = vld [vmem:[%s521] sm:$0xff]
      %v541 = vld [vmem:[%s521 + $0x8] sm:$0xff]
      %v542 = vld [vmem:[%s524] sm:$0x1]
      %v543 = vld [vmem:[%s7] sm:$0xff]
      %v544 = vld [vmem:[%s7 + $0x8] sm:$0xff]
      %v545 = vld [vmem:[%s8] sm:$0x1]
      %vm546 = vcmask 130048
      %v548 = vsel %vm546, %v542, 0
      %550 = vmatprep.subr.mxu0 0.0
      %551 = vmatpush1.msra.mxu0 %v543
      %552 = vmatprep.subr.mxu0 0.0
      %553 = vmatpush1.msra.mxu0 %v544
      %554 = vmatprep.subr.mxu0 0.0
      %555 = vmatpush1.msra.mxu0 0.0
      %556 = vmatprep.subr.mxu0 0.0
      %557 = vmatpush1.msra.mxu0 0.0
      %558 = vmatprep.subr.mxu0 0.0
      %559 = vmatpush1.msra.mxu0 0.0
      %560 = vmatprep.subr.mxu0 0.0
      %561 = vmatpush1.msra.mxu0 0.0
      %562 = vmatprep.subr.mxu0 0.0
      %563 = vmatpush1.msra.mxu0 0.0
      %564 = vmatprep.subr.mxu0 0.0
      %565 = vmatpush1.msra.mxu0 0.0
      %566 = vmatprep.subr.mxu0 0.0
      %567 = vmatpush1.msra.mxu0 0.0
      %568 = vmatprep.subr.mxu0 0.0
      %569 = vmatpush1.msra.mxu0 0.0
      %570 = vmatprep.subr.mxu0 0.0
      %571 = vmatpush1.msra.mxu0 0.0
      %572 = vmatprep.subr.mxu0 0.0
      %573 = vmatpush1.msra.mxu0 0.0
      %574 = vmatprep.subr.mxu0 0.0
      %575 = vmatpush1.msra.mxu0 0.0
      %576 = vmatprep.subr.mxu0 0.0
      %577 = vmatpush1.msra.mxu0 0.0
      %578 = vmatprep.subr.mxu0 0.0
      %579 = vmatpush1.msra.mxu0 0.0
      %580 = vmatprep.subr.mxu0 0.0
      %581 = vmatpush1.msra.mxu0 0.0
      %582 = vmatprep.subr.mxu0 0.0
      %583 = vmatpush1.msra.mxu0 0.0
      %584 = vmatprep.subr.mxu0 0.0
      %585 = vmatpush1.msra.mxu0 0.0
      %586 = vmatprep.subr.mxu0 0.0
      %587 = vmatpush1.msra.mxu0 0.0
      %588 = vmatprep.subr.mxu0 0.0
      %589 = vmatpush1.msra.mxu0 0.0
      %590 = vmatprep.subr.mxu0 0.0
      %591 = vmatpush1.msra.mxu0 0.0
      %592 = vmatprep.subr.mxu0 0.0
      %593 = vmatpush1.msra.mxu0 0.0
      %594 = vmatprep.subr.mxu0 0.0
      %595 = vmatpush1.msra.mxu0 0.0
      %596 = vmatprep.subr.mxu0 0.0
      %597 = vmatpush1.msra.mxu0 0.0
      %598 = vmatprep.subr.mxu0 0.0
      %599 = vmatpush1.msra.mxu0 0.0
      %600 = vmatprep.subr.mxu0 0.0
      %601 = vmatpush1.msra.mxu0 0.0
      %602 = vmatprep.subr.mxu0 0.0
      %603 = vmatpush1.msra.mxu0 0.0
      %604 = vmatprep.subr.mxu0 0.0
      %605 = vmatpush1.msra.mxu0 0.0
      %606 = vmatprep.subr.mxu0 0.0
      %607 = vmatpush1.msra.mxu0 0.0
      %608 = vmatprep.subr.mxu0 0.0
      %609 = vmatpush1.msra.mxu0 0.0
      %610 = vmatprep.subr.mxu0 0.0
      %611 = vmatpush1.msra.mxu0 0.0
      %612 = vmatprep.subr.mxu0 0.0
      %613 = vmatpush1.msra.mxu0 0.0
      %614 = vmatprep.mubr.f32.mxu0 0.0
      %615 = vmatmul.mubr.f32.gmra.mrb[0].mxu0 %v548
      %v616 = vpop.f32.mrb[0].mxu0
      %v617 = vadd.f32 %v545, %v616
      %v618 = vpop.f32.mrb[0].mxu0
      %619 = vdwg.mxu0
      %s620 = scalar_lea.vmem %s7, 16
      %v621 = vld [vmem:[%s620] sm:$0xff]
      %v622 = vld [vmem:[%s620 + $0x8] sm:$0xff]
      %s623 = scalar_lea.vmem %s8, 1
      %v624 = vld [vmem:[%s623] sm:$0x1]
      %625 = vmatprep.subr.mxu0 0.0
      %626 = vmatpush1.msra.mxu0 %v621
      %627 = vmatprep.subr.mxu0 0.0
      %628 = vmatpush1.msra.mxu0 %v622
      %629 = vmatprep.subr.mxu0 0.0
      %630 = vmatpush1.msra.mxu0 0.0
      %631 = vmatprep.subr.mxu0 0.0
      %632 = vmatpush1.msra.mxu0 0.0
      %633 = vmatprep.subr.mxu0 0.0
      %634 = vmatpush1.msra.mxu0 0.0
      %635 = vmatprep.subr.mxu0 0.0
      %636 = vmatpush1.msra.mxu0 0.0
      %637 = vmatprep.subr.mxu0 0.0
      %638 = vmatpush1.msra.mxu0 0.0
      %639 = vmatprep.subr.mxu0 0.0
      %640 = vmatpush1.msra.mxu0 0.0
      %641 = vmatprep.subr.mxu0 0.0
      %642 = vmatpush1.msra.mxu0 0.0
      %643 = vmatprep.subr.mxu0 0.0
      %644 = vmatpush1.msra.mxu0 0.0
      %645 = vmatprep.subr.mxu0 0.0
      %646 = vmatpush1.msra.mxu0 0.0
      %647 = vmatprep.subr.mxu0 0.0
      %648 = vmatpush1.msra.mxu0 0.0
      %649 = vmatprep.subr.mxu0 0.0
      %650 = vmatpush1.msra.mxu0 0.0
      %651 = vmatprep.subr.mxu0 0.0
      %652 = vmatpush1.msra.mxu0 0.0
      %653 = vmatprep.subr.mxu0 0.0
      %654 = vmatpush1.msra.mxu0 0.0
      %655 = vmatprep.subr.mxu0 0.0
      %656 = vmatpush1.msra.mxu0 0.0
      %657 = vmatprep.subr.mxu0 0.0
      %658 = vmatpush1.msra.mxu0 0.0
      %659 = vmatprep.subr.mxu0 0.0
      %660 = vmatpush1.msra.mxu0 0.0
      %661 = vmatprep.subr.mxu0 0.0
      %662 = vmatpush1.msra.mxu0 0.0
      %663 = vmatprep.subr.mxu0 0.0
      %664 = vmatpush1.msra.mxu0 0.0
      %665 = vmatprep.subr.mxu0 0.0
      %666 = vmatpush1.msra.mxu0 0.0
      %667 = vmatprep.subr.mxu0 0.0
      %668 = vmatpush1.msra.mxu0 0.0
      %669 = vmatprep.subr.mxu0 0.0
      %670 = vmatpush1.msra.mxu0 0.0
      %671 = vmatprep.subr.mxu0 0.0
      %672 = vmatpush1.msra.mxu0 0.0
      %673 = vmatprep.subr.mxu0 0.0
      %674 = vmatpush1.msra.mxu0 0.0
      %675 = vmatprep.subr.mxu0 0.0
      %676 = vmatpush1.msra.mxu0 0.0
      %677 = vmatprep.subr.mxu0 0.0
      %678 = vmatpush1.msra.mxu0 0.0
      %679 = vmatprep.subr.mxu0 0.0
      %680 = vmatpush1.msra.mxu0 0.0
      %681 = vmatprep.subr.mxu0 0.0
      %682 = vmatpush1.msra.mxu0 0.0
      %683 = vmatprep.subr.mxu0 0.0
      %684 = vmatpush1.msra.mxu0 0.0
      %685 = vmatprep.subr.mxu0 0.0
      %686 = vmatpush1.msra.mxu0 0.0
      %687 = vmatprep.subr.mxu0 0.0
      %688 = vmatpush1.msra.mxu0 0.0
      %689 = vmatprep.mubr.f32.mxu0 0.0
      %690 = vmatmul.mubr.f32.gmra.mrb[0].mxu0 %v548
      %v691 = vpop.f32.mrb[0].mxu0
      %v692 = vadd.f32 %v624, %v691
      %v693 = vpop.f32.mrb[0].mxu0
      %694 = vdwg.mxu0
      %v695 = vld [vmem:[%s4] sm:$0xf]
      %v696 = vld [vmem:[%s5] sm:$0x1]
      %v698 = vlaneseq
      %v699 = vshrl.u32 %v698, 7
      %v700 = vsub.s32 0, %v699
      %v701 = vrot.slane %v696, %v700
      %vm703 = vcmask 31744
      %v705 = vsel %vm703, %v536, 0
      %v708 = vsel %vm703, %v537, 0
      %vm710 = vcmask 1043456
      %v712 = vsel %vm710, %v695, 0
      %714 = vmatprep.subr.mxu0 0.0
      %715 = vmatpush1.msra.mxu0 %v712
      %716 = vmatprep.subr.mxu0 0.0
      %717 = vmatpush1.msra.mxu0 0.0
      %718 = vmatprep.subr.mxu0 0.0
      %719 = vmatpush1.msra.mxu0 0.0
      %720 = vmatprep.subr.mxu0 0.0
      %721 = vmatpush1.msra.mxu0 0.0
      %722 = vmatprep.subr.mxu0 0.0
      %723 = vmatpush1.msra.mxu0 0.0
      %724 = vmatprep.subr.mxu0 0.0
      %725 = vmatpush1.msra.mxu0 0.0
      %726 = vmatprep.subr.mxu0 0.0
      %727 = vmatpush1.msra.mxu0 0.0
      %728 = vmatprep.subr.mxu0 0.0
      %729 = vmatpush1.msra.mxu0 0.0
      %730 = vmatprep.subr.mxu0 0.0
      %731 = vmatpush1.msra.mxu0 0.0
      %732 = vmatprep.subr.mxu0 0.0
      %733 = vmatpush1.msra.mxu0 0.0
      %734 = vmatprep.subr.mxu0 0.0
      %735 = vmatpush1.msra.mxu0 0.0
      %736 = vmatprep.subr.mxu0 0.0
      %737 = vmatpush1.msra.mxu0 0.0
      %738 = vmatprep.subr.mxu0 0.0
      %739 = vmatpush1.msra.mxu0 0.0
      %740 = vmatprep.subr.mxu0 0.0
      %741 = vmatpush1.msra.mxu0 0.0
      %742 = vmatprep.subr.mxu0 0.0
      %743 = vmatpush1.msra.mxu0 0.0
      %744 = vmatprep.subr.mxu0 0.0
      %745 = vmatpush1.msra.mxu0 0.0
      %746 = vmatprep.subr.mxu0 0.0
      %747 = vmatpush1.msra.mxu0 0.0
      %748 = vmatprep.subr.mxu0 0.0
      %749 = vmatpush1.msra.mxu0 0.0
      %750 = vmatprep.subr.mxu0 0.0
      %751 = vmatpush1.msra.mxu0 0.0
      %752 = vmatprep.subr.mxu0 0.0
      %753 = vmatpush1.msra.mxu0 0.0
      %754 = vmatprep.subr.mxu0 0.0
      %755 = vmatpush1.msra.mxu0 0.0
      %756 = vmatprep.subr.mxu0 0.0
      %757 = vmatpush1.msra.mxu0 0.0
      %758 = vmatprep.subr.mxu0 0.0
      %759 = vmatpush1.msra.mxu0 0.0
      %760 = vmatprep.subr.mxu0 0.0
      %761 = vmatpush1.msra.mxu0 0.0
      %762 = vmatprep.subr.mxu0 0.0
      %763 = vmatpush1.msra.mxu0 0.0
      %764 = vmatprep.subr.mxu0 0.0
      %765 = vmatpush1.msra.mxu0 0.0
      %766 = vmatprep.subr.mxu0 0.0
      %767 = vmatpush1.msra.mxu0 0.0
      %768 = vmatprep.subr.mxu0 0.0
      %769 = vmatpush1.msra.mxu0 0.0
      %770 = vmatprep.subr.mxu0 0.0
      %771 = vmatpush1.msra.mxu0 0.0
      %772 = vmatprep.subr.mxu0 0.0
      %773 = vmatpush1.msra.mxu0 0.0
      %774 = vmatprep.subr.mxu0 0.0
      %775 = vmatpush1.msra.mxu0 0.0
      %776 = vmatprep.subr.mxu0 0.0
      %777 = vmatpush1.msra.mxu0 0.0
      %778 = vmatprep.mubr.f32.mxu0 0.0
      %779 = vmatmul.mubr.f32.gmra.mrb[0].mxu0 %v705
      %v780 = vpop.f32.mrb[0].mxu0
      %v781 = vadd.f32 %v701, %v780
      %v782 = vpop.f32.mrb[0].mxu0
      %783 = vmatprep.mubr.f32.mxu0 0.0
      %784 = vmatmul.mubr.f32.gmra.mrb[0].mxu0 %v708
      %v785 = vpop.f32.mrb[0].mxu0
      %v786 = vadd.f32 %v701, %v785
      %v787 = vpop.f32.mrb[0].mxu0
      %788 = vdwg.mxu0
      %790 = vset.pattern.permute.xlu0 0
      %791 = vperm.xlu0 %790, %v540
      %v792 = vpop.permute.xlu0 %791
      %795 = vset.pattern.permute.xlu0 0
      %796 = vperm.xlu0 %795, %v541
      %v797 = vpop.permute.xlu0 %796
      %v799 = vmul.f32 %v781, %v792
      %v800 = vmul.f32 %v786, %v797
      %v801 = vlaneseq
      %v802 = vshrl.u32 %v801, 7
      %v803 = vadd.s32 %v802, 8
      %v804 = vrot.slane %v799, 6
      %v805 = vrot.slane %v800, 6
      %vm806 = vcmp.lt.s32.totalorder %v802, 2
      %v807 = vsel %vm806, %v804, %v805
      %v808 = vsel %vm806, %v805, %v804
      %v809 = vadd.s32 %v802, 4294967294
      %v810 = vadd.s32 %v803, 4294967294
      %vm811 = vcmp.ge.s32.totalorder %v809, 0
      %vm812 = vcmp.ge.s32.totalorder %v810, 0
      %vm813 = vcmp.lt.s32.totalorder %v809, 16
      %vm814 = vcmp.lt.s32.totalorder %v810, 16
      %vm815 = vmand %vm811, %vm813
      %vm816 = vmand %vm812, %vm814
      %v817 = vsel %vm815, 1, 0
      %v818 = vsel %vm816, 1, 0
      %vm819 = vcmp.eq.s32.totalorder %v817, 1
      %vm820 = vcmp.eq.s32.totalorder %v818, 1
      %v821 = vsel %vm819, %v808, 0.0
      %v822 = vsel %vm820, %v807, 0.0
      %v823 = vrot.slane %v799, 7
      %v824 = vrot.slane %v800, 7
      %vm825 = vcmp.lt.s32.totalorder %v802, 1
      %v826 = vsel %vm825, %v823, %v824
      %v827 = vsel %vm825, %v824, %v823
      %v828 = vadd.s32 %v802, 4294967295
      %v829 = vadd.s32 %v803, 4294967295
      %vm830 = vcmp.ge.s32.totalorder %v828, 0
      %vm831 = vcmp.ge.s32.totalorder %v829, 0
      %vm832 = vcmp.lt.s32.totalorder %v828, 16
      %vm833 = vcmp.lt.s32.totalorder %v829, 16
      %vm834 = vmand %vm830, %vm832
      %vm835 = vmand %vm831, %vm833
      %v836 = vsel %vm834, 1, 0
      %v837 = vsel %vm835, 1, 0
      %vm838 = vcmp.eq.s32.totalorder %v836, 1
      %vm839 = vcmp.eq.s32.totalorder %v837, 1
      %v840 = vsel %vm838, %v827, 0.0
      %v841 = vsel %vm839, %v826, 0.0
      %v842 = vrot.slane %v799, 1
      %v843 = vrot.slane %v800, 1
      %vm844 = vcmp.lt.s32.totalorder %v802, 7
      %v845 = vsel %vm844, %v842, %v843
      %v846 = vsel %vm844, %v843, %v842
      %v847 = vadd.s32 %v802, 1
      %v848 = vadd.s32 %v803, 1
      %vm849 = vcmp.ge.s32.totalorder %v847, 0
      %vm850 = vcmp.ge.s32.totalorder %v848, 0
      %vm851 = vcmp.lt.s32.totalorder %v847, 16
      %vm852 = vcmp.lt.s32.totalorder %v848, 16
      %vm853 = vmand %vm849, %vm851
      %vm854 = vmand %vm850, %vm852
      %v855 = vsel %vm853, 1, 0
      %v856 = vsel %vm854, 1, 0
      %vm857 = vcmp.eq.s32.totalorder %v855, 1
      %vm858 = vcmp.eq.s32.totalorder %v856, 1
      %v859 = vsel %vm857, %v845, 0.0
      %v860 = vsel %vm858, %v846, 0.0
      %v861 = vrot.slane %v799, 2
      %v862 = vrot.slane %v800, 2
      %vm863 = vcmp.lt.s32.totalorder %v802, 6
      %v864 = vsel %vm863, %v861, %v862
      %v865 = vsel %vm863, %v862, %v861
      %v866 = vadd.s32 %v802, 2
      %v867 = vadd.s32 %v803, 2
      %vm868 = vcmp.ge.s32.totalorder %v866, 0
      %vm869 = vcmp.ge.s32.totalorder %v867, 0
      %vm870 = vcmp.lt.s32.totalorder %v866, 16
      %vm871 = vcmp.lt.s32.totalorder %v867, 16
      %vm872 = vmand %vm868, %vm870
      %vm873 = vmand %vm869, %vm871
      %v874 = vsel %vm872, 1, 0
      %v875 = vsel %vm873, 1, 0
      %vm876 = vcmp.eq.s32.totalorder %v874, 1
      %vm877 = vcmp.eq.s32.totalorder %v875, 1
      %v878 = vsel %vm876, %v864, 0.0
      %v879 = vsel %vm877, %v865, 0.0
      %882 = vrot.lane.b32.xlu0 %v840, 32
      %v883 = vpop.permute.xlu0 %882
      %884 = vrot.lane.b32.xlu0 %v841, 32
      %v885 = vpop.permute.xlu0 %884
      %890 = vrot.lane.b32.xlu0 %v799, 64
      %v891 = vpop.permute.xlu0 %890
      %892 = vrot.lane.b32.xlu0 %v800, 64
      %v893 = vpop.permute.xlu0 %892
      %898 = vrot.lane.b32.xlu0 %v859, 96
      %v899 = vpop.permute.xlu0 %898
      %900 = vrot.lane.b32.xlu0 %v860, 96
      %v901 = vpop.permute.xlu0 %900
      %vm904 = vcmask 261120
      %v905 = vsel %vm904, %v821, %v883
      %v906 = vsel %vm904, %v822, %v885
      %vm907 = vcmask 523264
      %v908 = vsel %vm907, %v905, %v891
      %v909 = vsel %vm907, %v906, %v893
      %vm910 = vcmask 785408
      %v911 = vsel %vm910, %v908, %v899
      %v912 = vsel %vm910, %v909, %v901
      %v913 = vpack.c.bf16 %v912, %v911
      %v914 = vpack.c.bf16 %v879, %v878
      %v915 = vld [vmem:[%s6] sm:$0xf]
      %v916 = vld [vmem:[%s6 + $0x4] sm:$0xf]
      %v917 = vld [vmem:[%s6 + $0x8] sm:$0xf]
      %v918 = vld [vmem:[%s6 + $0xc] sm:$0xf]
      %v919 = vld [vmem:[%s6 + $0x10] sm:$0xf]
      %v920 = vld [vmem:[%s6 + $0x14] sm:$0xf]
      %v921 = vld [vmem:[%s6 + $0x18] sm:$0xf]
      %v922 = vld [vmem:[%s6 + $0x1c] sm:$0xf]
      %v923 = vld [vmem:[%s6 + $0x20] sm:$0xf]
      %v924 = vld [vmem:[%s6 + $0x24] sm:$0xf]
      %v925 = vld [vmem:[%s6 + $0x28] sm:$0xf]
      %v926 = vld [vmem:[%s6 + $0x2c] sm:$0xf]
      %v927 = vld [vmem:[%s6 + $0x30] sm:$0xf]
      %v928 = vld [vmem:[%s6 + $0x34] sm:$0xf]
      %v929 = vld [vmem:[%s6 + $0x38] sm:$0xf]
      %v930 = vld [vmem:[%s6 + $0x3c] sm:$0xf]
      %v931 = vld [vmem:[%s6 + $0x40] sm:$0xf]
      %v932 = vld [vmem:[%s6 + $0x44] sm:$0xf]
      %v933 = vld [vmem:[%s6 + $0x48] sm:$0xf]
      %v934 = vld [vmem:[%s6 + $0x4c] sm:$0xf]
      %v935 = vlaneseq
      %v936 = vshrl.u32 %v935, 7
      %v937 = vsub.s32 0, %v936
      %v938 = vrot.slane %v617, %v937
      %v959 = vunpack.c.l.b16 %v915
      %v960 = vunpack.c.l.b16 %v916
      %v961 = vunpack.c.l.b16 %v917
      %v962 = vunpack.c.l.b16 %v918
      %v963 = vunpack.c.l.b16 %v919
      %v964 = vunpack.c.l.b16 %v920
      %v965 = vunpack.c.l.b16 %v921
      %v966 = vunpack.c.l.b16 %v922
      %v967 = vunpack.c.l.b16 %v923
      %v968 = vunpack.c.l.b16 %v924
      %v969 = vunpack.c.l.b16 %v925
      %v970 = vunpack.c.l.b16 %v926
      %v971 = vunpack.c.l.b16 %v927
      %v972 = vunpack.c.l.b16 %v928
      %v973 = vunpack.c.l.b16 %v929
      %v974 = vunpack.c.l.b16 %v930
      %v975 = vunpack.c.l.b16 %v931
      %v976 = vunpack.c.l.b16 %v932
      %v977 = vunpack.c.l.b16 %v933
      %v978 = vunpack.c.l.b16 %v934
      %v979 = vpack.c.b16 %v960, %v959
      %v980 = vpack.c.b16 %v962, %v961
      %v981 = vpack.c.b16 %v964, %v963
      %v982 = vpack.c.b16 %v966, %v965
      %v983 = vpack.c.b16 %v968, %v967
      %v984 = vpack.c.b16 %v970, %v969
      %v985 = vpack.c.b16 %v972, %v971
      %v986 = vpack.c.b16 %v974, %v973
      %v987 = vpack.c.b16 %v976, %v975
      %v988 = vpack.c.b16 %v978, %v977
      %v1000 = vsel %vm904, %v914, 0
      %1002 = vmatprep.subr.bf16.mxu0 0
      %1003 = vmatpush1.bf16.msra.mxu0 %v979
      %1004 = vmatprep.subr.bf16.mxu0 0
      %1005 = vmatpush1.bf16.msra.mxu0 %v980
      %1006 = vmatprep.subr.bf16.mxu0 0
      %1007 = vmatpush1.bf16.msra.mxu0 %v981
      %1008 = vmatprep.subr.bf16.mxu0 0
      %1009 = vmatpush1.bf16.msra.mxu0 %v982
      %1010 = vmatprep.subr.bf16.mxu0 0
      %1011 = vmatpush1.bf16.msra.mxu0 %v983
      %1012 = vmatprep.subr.bf16.mxu0 0
      %1013 = vmatpush1.bf16.msra.mxu0 %v984
      %1014 = vmatprep.subr.bf16.mxu0 0
      %1015 = vmatpush1.bf16.msra.mxu0 %v985
      %1016 = vmatprep.subr.bf16.mxu0 0
      %1017 = vmatpush1.bf16.msra.mxu0 %v986
      %1018 = vmatprep.subr.bf16.mxu0 0
      %1019 = vmatpush1.bf16.msra.mxu0 %v987
      %1020 = vmatprep.subr.bf16.mxu0 0
      %1021 = vmatpush1.bf16.msra.mxu0 %v988
      %1022 = vmatprep.subr.bf16.mxu0 0
      %1023 = vmatpush1.bf16.msra.mxu0 0
      %1024 = vmatprep.subr.bf16.mxu0 0
      %1025 = vmatpush1.bf16.msra.mxu0 0
      %1026 = vmatprep.subr.bf16.mxu0 0
      %1027 = vmatpush1.bf16.msra.mxu0 0
      %1028 = vmatprep.subr.bf16.mxu0 0
      %1029 = vmatpush1.bf16.msra.mxu0 0
      %1030 = vmatprep.subr.bf16.mxu0 0
      %1031 = vmatpush1.bf16.msra.mxu0 0
      %1032 = vmatprep.subr.bf16.mxu0 0
      %1033 = vmatpush1.bf16.msra.mxu0 0
      %1034 = vmatprep.mubr.bf16.mxu0 %v1000
      %1035 = vmatmul.mubr.bf16.gmra.mrb[0].mxu0 %v913
      %v1036 = vpop.f32.mrb[0].mxu0
      %v1037 = vadd.f32 %v938, %v1036
      %v1038 = vpop.f32.mrb[0].mxu0
      %v1039 = vpop.f32.mrb[0].mxu0
      %v1040 = vadd.f32 %v938, %v1039
      %v1041 = vpop.f32.mrb[0].mxu0
      %1042 = vdwg.mxu0
      %s1043 = scalar_lea.vmem %s6, 80
      %v1044 = vld [vmem:[%s1043] sm:$0xf]
      %v1045 = vld [vmem:[%s1043 + $0x4] sm:$0xf]
      %v1046 = vld [vmem:[%s1043 + $0x8] sm:$0xf]
      %v1047 = vld [vmem:[%s1043 + $0xc] sm:$0xf]
      %v1048 = vld [vmem:[%s1043 + $0x10] sm:$0xf]
      %v1049 = vld [vmem:[%s1043 + $0x14] sm:$0xf]
      %v1050 = vld [vmem:[%s1043 + $0x18] sm:$0xf]
      %v1051 = vld [vmem:[%s1043 + $0x1c] sm:$0xf]
      %v1052 = vld [vmem:[%s1043 + $0x20] sm:$0xf]
      %v1053 = vld [vmem:[%s1043 + $0x24] sm:$0xf]
      %v1054 = vld [vmem:[%s1043 + $0x28] sm:$0xf]
      %v1055 = vld [vmem:[%s1043 + $0x2c] sm:$0xf]
      %v1056 = vld [vmem:[%s1043 + $0x30] sm:$0xf]
      %v1057 = vld [vmem:[%s1043 + $0x34] sm:$0xf]
      %v1058 = vld [vmem:[%s1043 + $0x38] sm:$0xf]
      %v1059 = vld [vmem:[%s1043 + $0x3c] sm:$0xf]
      %v1060 = vld [vmem:[%s1043 + $0x40] sm:$0xf]
      %v1061 = vld [vmem:[%s1043 + $0x44] sm:$0xf]
      %v1062 = vld [vmem:[%s1043 + $0x48] sm:$0xf]
      %v1063 = vld [vmem:[%s1043 + $0x4c] sm:$0xf]
      %v1064 = vlaneseq
      %v1065 = vshrl.u32 %v1064, 7
      %v1066 = vsub.s32 0, %v1065
      %v1067 = vrot.slane %v692, %v1066
      %v1088 = vunpack.c.l.b16 %v1044
      %v1089 = vunpack.c.l.b16 %v1045
      %v1090 = vunpack.c.l.b16 %v1046
      %v1091 = vunpack.c.l.b16 %v1047
      %v1092 = vunpack.c.l.b16 %v1048
      %v1093 = vunpack.c.l.b16 %v1049
      %v1094 = vunpack.c.l.b16 %v1050
      %v1095 = vunpack.c.l.b16 %v1051
      %v1096 = vunpack.c.l.b16 %v1052
      %v1097 = vunpack.c.l.b16 %v1053
      %v1098 = vunpack.c.l.b16 %v1054
      %v1099 = vunpack.c.l.b16 %v1055
      %v1100 = vunpack.c.l.b16 %v1056
      %v1101 = vunpack.c.l.b16 %v1057
      %v1102 = vunpack.c.l.b16 %v1058
      %v1103 = vunpack.c.l.b16 %v1059
      %v1104 = vunpack.c.l.b16 %v1060
      %v1105 = vunpack.c.l.b16 %v1061
      %v1106 = vunpack.c.l.b16 %v1062
      %v1107 = vunpack.c.l.b16 %v1063
      %v1108 = vpack.c.b16 %v1089, %v1088
      %v1109 = vpack.c.b16 %v1091, %v1090
      %v1110 = vpack.c.b16 %v1093, %v1092
      %v1111 = vpack.c.b16 %v1095, %v1094
      %v1112 = vpack.c.b16 %v1097, %v1096
      %v1113 = vpack.c.b16 %v1099, %v1098
      %v1114 = vpack.c.b16 %v1101, %v1100
      %v1115 = vpack.c.b16 %v1103, %v1102
      %v1116 = vpack.c.b16 %v1105, %v1104
      %v1117 = vpack.c.b16 %v1107, %v1106
      %1128 = vmatprep.subr.bf16.mxu0 0
      %1129 = vmatpush1.bf16.msra.mxu0 %v1108
      %1130 = vmatprep.subr.bf16.mxu0 0
      %1131 = vmatpush1.bf16.msra.mxu0 %v1109
      %1132 = vmatprep.subr.bf16.mxu0 0
      %1133 = vmatpush1.bf16.msra.mxu0 %v1110
      %1134 = vmatprep.subr.bf16.mxu0 0
      %1135 = vmatpush1.bf16.msra.mxu0 %v1111
      %1136 = vmatprep.subr.bf16.mxu0 0
      %1137 = vmatpush1.bf16.msra.mxu0 %v1112
      %1138 = vmatprep.subr.bf16.mxu0 0
      %1139 = vmatpush1.bf16.msra.mxu0 %v1113
      %1140 = vmatprep.subr.bf16.mxu0 0
      %1141 = vmatpush1.bf16.msra.mxu0 %v1114
      %1142 = vmatprep.subr.bf16.mxu0 0
      %1143 = vmatpush1.bf16.msra.mxu0 %v1115
      %1144 = vmatprep.subr.bf16.mxu0 0
      %1145 = vmatpush1.bf16.msra.mxu0 %v1116
      %1146 = vmatprep.subr.bf16.mxu0 0
      %1147 = vmatpush1.bf16.msra.mxu0 %v1117
      %1148 = vmatprep.subr.bf16.mxu0 0
      %1149 = vmatpush1.bf16.msra.mxu0 0
      %1150 = vmatprep.subr.bf16.mxu0 0
      %1151 = vmatpush1.bf16.msra.mxu0 0
      %1152 = vmatprep.subr.bf16.mxu0 0
      %1153 = vmatpush1.bf16.msra.mxu0 0
      %1154 = vmatprep.subr.bf16.mxu0 0
      %1155 = vmatpush1.bf16.msra.mxu0 0
      %1156 = vmatprep.subr.bf16.mxu0 0
      %1157 = vmatpush1.bf16.msra.mxu0 0
      %1158 = vmatprep.subr.bf16.mxu0 0
      %1159 = vmatpush1.bf16.msra.mxu0 0
      %1160 = vmatprep.mubr.bf16.mxu0 %v1000
      %1161 = vmatmul.mubr.bf16.gmra.mrb[0].mxu0 %v913
      %v1162 = vpop.f32.mrb[0].mxu0
      %v1163 = vadd.f32 %v1067, %v1162
      %v1164 = vpop.f32.mrb[0].mxu0
      %v1165 = vpop.f32.mrb[0].mxu0
      %v1166 = vadd.f32 %v1067, %v1165
      %v1167 = vpop.f32.mrb[0].mxu0
      %1168 = vdwg.mxu0
      %v1169 = vtanh.pop %v1037
      %v1170 = vtanh.pop %v1040
      %v1171 = vxor.u32 %v1163, 2147483648
      %v1172 = vxor.u32 %v1166, 2147483648
      %v1173 = vmul.f32 %v1171, 1.442695
      %v1174 = vpow.pop %v1173
      %v1175 = vmul.f32 %v1172, 1.442695
      %v1176 = vpow.pop %v1175
      %v1177 = vadd.f32 %v1174, 1.0
      %v1178 = vadd.f32 %v1176, 1.0
      %v1179 = vrcp.pop %v1177
      %v1180 = vmul.f32 1.0, %v1179
      %v1181 = vrcp.pop %v1178
      %v1182 = vmul.f32 1.0, %v1181
      %v1183 = vmul.f32 %v1169, %v1180
      %v1184 = vmul.f32 %v1170, %v1182
      %v1185 = vpack.c.bf16 %v1184, %v1183
      %s1186 = scalar_lea.vmem %s9, 16
      %v1187 = vld [vmem:[%s1186] sm:$0xf]
      %v1188 = vld [vmem:[%s1186 + $0x4] sm:$0xf]
      %v1189 = vld [vmem:[%s1186 + $0x8] sm:$0xf]
      %v1190 = vld [vmem:[%s1186 + $0xc] sm:$0xf]
      %s1191 = scalar_lea.vmem %s10, 1
      %v1192 = vld [vmem:[%s1191] sm:$0x1]
      %v1194 = vlaneseq
      %v1195 = vshrl.u32 %v1194, 7
      %v1196 = vsub.s32 0, %v1195
      %v1197 = vrot.slane %v1192, %v1196
      %v1203 = vunpack.c.l.b16 %v1187
      %v1204 = vunpack.c.l.b16 %v1188
      %v1205 = vunpack.c.l.b16 %v1189
      %v1206 = vunpack.c.l.b16 %v1190
      %v1207 = vpack.c.b16 %v1204, %v1203
      %v1208 = vpack.c.b16 %v1206, %v1205
      %v1212 = vsel %vm904, %v1185, 0
      %1214 = vmatprep.subr.bf16.mxu0 0
      %1215 = vmatpush1.bf16.msra.mxu0 %v1207
      %1216 = vmatprep.subr.bf16.mxu0 0
      %1217 = vmatpush1.bf16.msra.mxu0 %v1208
      %1218 = vmatprep.subr.bf16.mxu0 0
      %1219 = vmatpush1.bf16.msra.mxu0 0
      %1220 = vmatprep.subr.bf16.mxu0 0
      %1221 = vmatpush1.bf16.msra.mxu0 0
      %1222 = vmatprep.subr.bf16.mxu0 0
      %1223 = vmatpush1.bf16.msra.mxu0 0
      %1224 = vmatprep.subr.bf16.mxu0 0
      %1225 = vmatpush1.bf16.msra.mxu0 0
      %1226 = vmatprep.subr.bf16.mxu0 0
      %1227 = vmatpush1.bf16.msra.mxu0 0
      %1228 = vmatprep.subr.bf16.mxu0 0
      %1229 = vmatpush1.bf16.msra.mxu0 0
      %1230 = vmatprep.subr.bf16.mxu0 0
      %1231 = vmatpush1.bf16.msra.mxu0 0
      %1232 = vmatprep.subr.bf16.mxu0 0
      %1233 = vmatpush1.bf16.msra.mxu0 0
      %1234 = vmatprep.subr.bf16.mxu0 0
      %1235 = vmatpush1.bf16.msra.mxu0 0
      %1236 = vmatprep.subr.bf16.mxu0 0
      %1237 = vmatpush1.bf16.msra.mxu0 0
      %1238 = vmatprep.subr.bf16.mxu0 0
      %1239 = vmatpush1.bf16.msra.mxu0 0
      %1240 = vmatprep.subr.bf16.mxu0 0
      %1241 = vmatpush1.bf16.msra.mxu0 0
      %1242 = vmatprep.subr.bf16.mxu0 0
      %1243 = vmatpush1.bf16.msra.mxu0 0
      %1244 = vmatprep.subr.bf16.mxu0 0
      %1245 = vmatpush1.bf16.msra.mxu0 0
      %1246 = vmatprep.mubr.bf16.mxu0 0
      %1247 = vmatmul.mubr.bf16.gmra.mrb[0].mxu0 %v1212
      %v1248 = vpop.f32.mrb[0].mxu0
      %v1249 = vadd.f32 %v1197, %v1248
      %v1250 = vpop.f32.mrb[0].mxu0
      %v1251 = vpop.f32.mrb[0].mxu0
      %v1252 = vadd.f32 %v1197, %v1251
      %v1253 = vpop.f32.mrb[0].mxu0
      %1254 = vdwg.mxu0
      %v1255 = vld [vmem:[%s9] sm:$0xf]
      %v1256 = vld [vmem:[%s9 + $0x4] sm:$0xf]
      %v1257 = vld [vmem:[%s9 + $0x8] sm:$0xf]
      %v1258 = vld [vmem:[%s9 + $0xc] sm:$0xf]
      %v1259 = vld [vmem:[%s10] sm:$0x1]
      %v1261 = vlaneseq
      %v1262 = vshrl.u32 %v1261, 7
      %v1263 = vsub.s32 0, %v1262
      %v1264 = vrot.slane %v1259, %v1263
      %v1270 = vunpack.c.l.b16 %v1255
      %v1271 = vunpack.c.l.b16 %v1256
      %v1272 = vunpack.c.l.b16 %v1257
      %v1273 = vunpack.c.l.b16 %v1258
      %v1274 = vpack.c.b16 %v1271, %v1270
      %v1275 = vpack.c.b16 %v1273, %v1272
      %1278 = vmatprep.subr.bf16.mxu0 0
      %1279 = vmatpush1.bf16.msra.mxu0 %v1274
      %1280 = vmatprep.subr.bf16.mxu0 0
      %1281 = vmatpush1.bf16.msra.mxu0 %v1275
      %1282 = vmatprep.subr.bf16.mxu0 0
      %1283 = vmatpush1.bf16.msra.mxu0 0
      %1284 = vmatprep.subr.bf16.mxu0 0
      %1285 = vmatpush1.bf16.msra.mxu0 0
      %1286 = vmatprep.subr.bf16.mxu0 0
      %1287 = vmatpush1.bf16.msra.mxu0 0
      %1288 = vmatprep.subr.bf16.mxu0 0
      %1289 = vmatpush1.bf16.msra.mxu0 0
      %1290 = vmatprep.subr.bf16.mxu0 0
      %1291 = vmatpush1.bf16.msra.mxu0 0
      %1292 = vmatprep.subr.bf16.mxu0 0
      %1293 = vmatpush1.bf16.msra.mxu0 0
      %1294 = vmatprep.subr.bf16.mxu0 0
      %1295 = vmatpush1.bf16.msra.mxu0 0
      %1296 = vmatprep.subr.bf16.mxu0 0
      %1297 = vmatpush1.bf16.msra.mxu0 0
      %1298 = vmatprep.subr.bf16.mxu0 0
      %1299 = vmatpush1.bf16.msra.mxu0 0
      %1300 = vmatprep.subr.bf16.mxu0 0
      %1301 = vmatpush1.bf16.msra.mxu0 0
      %1302 = vmatprep.subr.bf16.mxu0 0
      %1303 = vmatpush1.bf16.msra.mxu0 0
      %1304 = vmatprep.subr.bf16.mxu0 0
      %1305 = vmatpush1.bf16.msra.mxu0 0
      %1306 = vmatprep.subr.bf16.mxu0 0
      %1307 = vmatpush1.bf16.msra.mxu0 0
      %1308 = vmatprep.subr.bf16.mxu0 0
      %1309 = vmatpush1.bf16.msra.mxu0 0
      %1310 = vmatprep.mubr.bf16.mxu0 0
      %1311 = vmatmul.mubr.bf16.gmra.mrb[0].mxu0 %v1212
      %v1312 = vpop.f32.mrb[0].mxu0
      %v1313 = vadd.f32 %v1264, %v1312
      %v1314 = vpop.f32.mrb[0].mxu0
      %v1315 = vpop.f32.mrb[0].mxu0
      %v1316 = vadd.f32 %v1264, %v1315
      %v1317 = vpop.f32.mrb[0].mxu0
      %1318 = vdwg.mxu0
      %v1319 = vadd.f32 %v799, %v1313
      %v1320 = vadd.f32 %v800, %v1316
      %v1321 = vmul.f32 %v1319, %v792
      %v1322 = vmul.f32 %v1320, %v797
      %v1323 = vrot.slane %v1321, 6
      %v1324 = vrot.slane %v1322, 6
      %v1325 = vsel %vm806, %v1323, %v1324
      %v1326 = vsel %vm806, %v1324, %v1323
      %v1327 = vsel %vm819, %v1326, 0.0
      %v1328 = vsel %vm820, %v1325, 0.0
      %v1329 = vrot.slane %v1321, 7
      %v1330 = vrot.slane %v1322, 7
      %v1331 = vsel %vm825, %v1329, %v1330
      %v1332 = vsel %vm825, %v1330, %v1329
      %v1333 = vsel %vm838, %v1332, 0.0
      %v1334 = vsel %vm839, %v1331, 0.0
      %v1335 = vrot.slane %v1321, 1
      %v1336 = vrot.slane %v1322, 1
      %v1337 = vsel %vm844, %v1335, %v1336
      %v1338 = vsel %vm844, %v1336, %v1335
      %v1339 = vsel %vm857, %v1337, 0.0
      %v1340 = vsel %vm858, %v1338, 0.0
      %v1341 = vrot.slane %v1321, 2
      %v1342 = vrot.slane %v1322, 2
      %v1343 = vsel %vm863, %v1341, %v1342
      %v1344 = vsel %vm863, %v1342, %v1341
      %v1345 = vsel %vm876, %v1343, 0.0
      %v1346 = vsel %vm877, %v1344, 0.0
      %1349 = vrot.lane.b32.xlu0 %v1333, 32
      %v1350 = vpop.permute.xlu0 %1349
      %1351 = vrot.lane.b32.xlu0 %v1334, 32
      %v1352 = vpop.permute.xlu0 %1351
      %1357 = vrot.lane.b32.xlu0 %v1321, 64
      %v1358 = vpop.permute.xlu0 %1357
      %1359 = vrot.lane.b32.xlu0 %v1322, 64
      %v1360 = vpop.permute.xlu0 %1359
      %1365 = vrot.lane.b32.xlu0 %v1339, 96
      %v1366 = vpop.permute.xlu0 %1365
      %1367 = vrot.lane.b32.xlu0 %v1340, 96
      %v1368 = vpop.permute.xlu0 %1367
      %v1371 = vsel %vm904, %v1327, %v1350
      %v1372 = vsel %vm904, %v1328, %v1352
      %v1373 = vsel %vm907, %v1371, %v1358
      %v1374 = vsel %vm907, %v1372, %v1360
      %v1375 = vsel %vm910, %v1373, %v1366
      %v1376 = vsel %vm910, %v1374, %v1368
      %v1377 = vpack.c.bf16 %v1376, %v1375
      %v1378 = vpack.c.bf16 %v1346, %v1345
      %s1379 = scalar_lea.vmem %s6, 160
      %v1380 = vld [vmem:[%s1379] sm:$0xf]
      %v1381 = vld [vmem:[%s1379 + $0x4] sm:$0xf]
      %v1382 = vld [vmem:[%s1379 + $0x8] sm:$0xf]
      %v1383 = vld [vmem:[%s1379 + $0xc] sm:$0xf]
      %v1384 = vld [vmem:[%s1379 + $0x10] sm:$0xf]
      %v1385 = vld [vmem:[%s1379 + $0x14] sm:$0xf]
      %v1386 = vld [vmem:[%s1379 + $0x18] sm:$0xf]
      %v1387 = vld [vmem:[%s1379 + $0x1c] sm:$0xf]
      %v1388 = vld [vmem:[%s1379 + $0x20] sm:$0xf]
      %v1389 = vld [vmem:[%s1379 + $0x24] sm:$0xf]
      %v1390 = vld [vmem:[%s1379 + $0x28] sm:$0xf]
      %v1391 = vld [vmem:[%s1379 + $0x2c] sm:$0xf]
      %v1392 = vld [vmem:[%s1379 + $0x30] sm:$0xf]
      %v1393 = vld [vmem:[%s1379 + $0x34] sm:$0xf]
      %v1394 = vld [vmem:[%s1379 + $0x38] sm:$0xf]
      %v1395 = vld [vmem:[%s1379 + $0x3c] sm:$0xf]
      %v1396 = vld [vmem:[%s1379 + $0x40] sm:$0xf]
      %v1397 = vld [vmem:[%s1379 + $0x44] sm:$0xf]
      %v1398 = vld [vmem:[%s1379 + $0x48] sm:$0xf]
      %v1399 = vld [vmem:[%s1379 + $0x4c] sm:$0xf]
      %v1420 = vunpack.c.l.b16 %v1380
      %v1421 = vunpack.c.l.b16 %v1381
      %v1422 = vunpack.c.l.b16 %v1382
      %v1423 = vunpack.c.l.b16 %v1383
      %v1424 = vunpack.c.l.b16 %v1384
      %v1425 = vunpack.c.l.b16 %v1385
      %v1426 = vunpack.c.l.b16 %v1386
      %v1427 = vunpack.c.l.b16 %v1387
      %v1428 = vunpack.c.l.b16 %v1388
      %v1429 = vunpack.c.l.b16 %v1389
      %v1430 = vunpack.c.l.b16 %v1390
      %v1431 = vunpack.c.l.b16 %v1391
      %v1432 = vunpack.c.l.b16 %v1392
      %v1433 = vunpack.c.l.b16 %v1393
      %v1434 = vunpack.c.l.b16 %v1394
      %v1435 = vunpack.c.l.b16 %v1395
      %v1436 = vunpack.c.l.b16 %v1396
      %v1437 = vunpack.c.l.b16 %v1397
      %v1438 = vunpack.c.l.b16 %v1398
      %v1439 = vunpack.c.l.b16 %v1399
      %v1440 = vpack.c.b16 %v1421, %v1420
      %v1441 = vpack.c.b16 %v1423, %v1422
      %v1442 = vpack.c.b16 %v1425, %v1424
      %v1443 = vpack.c.b16 %v1427, %v1426
      %v1444 = vpack.c.b16 %v1429, %v1428
      %v1445 = vpack.c.b16 %v1431, %v1430
      %v1446 = vpack.c.b16 %v1433, %v1432
      %v1447 = vpack.c.b16 %v1435, %v1434
      %v1448 = vpack.c.b16 %v1437, %v1436
      %v1449 = vpack.c.b16 %v1439, %v1438
      %1461 = vrot.lane.b32.xlu0 %v938, 96
      %v1462 = vpop.permute.xlu0 %1461
      %v1465 = vsel %vm904, %v1378, 0
      %1467 = vmatprep.subr.bf16.mxu0 0
      %1468 = vmatpush1.bf16.msra.mxu0 %v1440
      %1469 = vmatprep.subr.bf16.mxu0 0
      %1470 = vmatpush1.bf16.msra.mxu0 %v1441
      %1471 = vmatprep.subr.bf16.mxu0 0
      %1472 = vmatpush1.bf16.msra.mxu0 %v1442
      %1473 = vmatprep.subr.bf16.mxu0 0
      %1474 = vmatpush1.bf16.msra.mxu0 %v1443
      %1475 = vmatprep.subr.bf16.mxu0 0
      %1476 = vmatpush1.bf16.msra.mxu0 %v1444
      %1477 = vmatprep.subr.bf16.mxu0 0
      %1478 = vmatpush1.bf16.msra.mxu0 %v1445
      %1479 = vmatprep.subr.bf16.mxu0 0
      %1480 = vmatpush1.bf16.msra.mxu0 %v1446
      %1481 = vmatprep.subr.bf16.mxu0 0
      %1482 = vmatpush1.bf16.msra.mxu0 %v1447
      %1483 = vmatprep.subr.bf16.mxu0 0
      %1484 = vmatpush1.bf16.msra.mxu0 %v1448
      %1485 = vmatprep.subr.bf16.mxu0 0
      %1486 = vmatpush1.bf16.msra.mxu0 %v1449
      %1487 = vmatprep.subr.bf16.mxu0 0
      %1488 = vmatpush1.bf16.msra.mxu0 0
      %1489 = vmatprep.subr.bf16.mxu0 0
      %1490 = vmatpush1.bf16.msra.mxu0 0
      %1491 = vmatprep.subr.bf16.mxu0 0
      %1492 = vmatpush1.bf16.msra.mxu0 0
      %1493 = vmatprep.subr.bf16.mxu0 0
      %1494 = vmatpush1.bf16.msra.mxu0 0
      %1495 = vmatprep.subr.bf16.mxu0 0
      %1496 = vmatpush1.bf16.msra.mxu0 0
      %1497 = vmatprep.subr.bf16.mxu0 0
      %1498 = vmatpush1.bf16.msra.mxu0 0
      %1499 = vmatprep.mubr.bf16.mxu0 %v1465
      %1500 = vmatmul.mubr.bf16.gmra.mrb[0].mxu0 %v1377
      %v1501 = vpop.f32.mrb[0].mxu0
      %v1502 = vadd.f32 %v1462, %v1501
      %v1503 = vpop.f32.mrb[0].mxu0
      %v1504 = vpop.f32.mrb[0].mxu0
      %v1505 = vadd.f32 %v1462, %v1504
      %v1506 = vpop.f32.mrb[0].mxu0
      %1507 = vdwg.mxu0
      %s1508 = scalar_lea.vmem %s6, 240
      %v1509 = vld [vmem:[%s1508] sm:$0xf]
      %v1510 = vld [vmem:[%s1508 + $0x4] sm:$0xf]
      %v1511 = vld [vmem:[%s1508 + $0x8] sm:$0xf]
      %v1512 = vld [vmem:[%s1508 + $0xc] sm:$0xf]
      %v1513 = vld [vmem:[%s1508 + $0x10] sm:$0xf]
      %v1514 = vld [vmem:[%s1508 + $0x14] sm:$0xf]
      %v1515 = vld [vmem:[%s1508 + $0x18] sm:$0xf]
      %v1516 = vld [vmem:[%s1508 + $0x1c] sm:$0xf]
      %v1517 = vld [vmem:[%s1508 + $0x20] sm:$0xf]
      %v1518 = vld [vmem:[%s1508 + $0x24] sm:$0xf]
      %v1519 = vld [vmem:[%s1508 + $0x28] sm:$0xf]
      %v1520 = vld [vmem:[%s1508 + $0x2c] sm:$0xf]
      %v1521 = vld [vmem:[%s1508 + $0x30] sm:$0xf]
      %v1522 = vld [vmem:[%s1508 + $0x34] sm:$0xf]
      %v1523 = vld [vmem:[%s1508 + $0x38] sm:$0xf]
      %v1524 = vld [vmem:[%s1508 + $0x3c] sm:$0xf]
      %v1525 = vld [vmem:[%s1508 + $0x40] sm:$0xf]
      %v1526 = vld [vmem:[%s1508 + $0x44] sm:$0xf]
      %v1527 = vld [vmem:[%s1508 + $0x48] sm:$0xf]
      %v1528 = vld [vmem:[%s1508 + $0x4c] sm:$0xf]
      %v1549 = vunpack.c.l.b16 %v1509
      %v1550 = vunpack.c.l.b16 %v1510
      %v1551 = vunpack.c.l.b16 %v1511
      %v1552 = vunpack.c.l.b16 %v1512
      %v1553 = vunpack.c.l.b16 %v1513
      %v1554 = vunpack.c.l.b16 %v1514
      %v1555 = vunpack.c.l.b16 %v1515
      %v1556 = vunpack.c.l.b16 %v1516
      %v1557 = vunpack.c.l.b16 %v1517
      %v1558 = vunpack.c.l.b16 %v1518
      %v1559 = vunpack.c.l.b16 %v1519
      %v1560 = vunpack.c.l.b16 %v1520
      %v1561 = vunpack.c.l.b16 %v1521
      %v1562 = vunpack.c.l.b16 %v1522
      %v1563 = vunpack.c.l.b16 %v1523
      %v1564 = vunpack.c.l.b16 %v1524
      %v1565 = vunpack.c.l.b16 %v1525
      %v1566 = vunpack.c.l.b16 %v1526
      %v1567 = vunpack.c.l.b16 %v1527
      %v1568 = vunpack.c.l.b16 %v1528
      %v1569 = vpack.c.b16 %v1550, %v1549
      %v1570 = vpack.c.b16 %v1552, %v1551
      %v1571 = vpack.c.b16 %v1554, %v1553
      %v1572 = vpack.c.b16 %v1556, %v1555
      %v1573 = vpack.c.b16 %v1558, %v1557
      %v1574 = vpack.c.b16 %v1560, %v1559
      %v1575 = vpack.c.b16 %v1562, %v1561
      %v1576 = vpack.c.b16 %v1564, %v1563
      %v1577 = vpack.c.b16 %v1566, %v1565
      %v1578 = vpack.c.b16 %v1568, %v1567
      %1590 = vrot.lane.b32.xlu0 %v1067, 96
      %v1591 = vpop.permute.xlu0 %1590
      %1593 = vmatprep.subr.bf16.mxu0 0
      %1594 = vmatpush1.bf16.msra.mxu0 %v1569
      %1595 = vmatprep.subr.bf16.mxu0 0
      %1596 = vmatpush1.bf16.msra.mxu0 %v1570
      %1597 = vmatprep.subr.bf16.mxu0 0
      %1598 = vmatpush1.bf16.msra.mxu0 %v1571
      %1599 = vmatprep.subr.bf16.mxu0 0
      %1600 = vmatpush1.bf16.msra.mxu0 %v1572
      %1601 = vmatprep.subr.bf16.mxu0 0
      %1602 = vmatpush1.bf16.msra.mxu0 %v1573
      %1603 = vmatprep.subr.bf16.mxu0 0
      %1604 = vmatpush1.bf16.msra.mxu0 %v1574
      %1605 = vmatprep.subr.bf16.mxu0 0
      %1606 = vmatpush1.bf16.msra.mxu0 %v1575
      %1607 = vmatprep.subr.bf16.mxu0 0
      %1608 = vmatpush1.bf16.msra.mxu0 %v1576
      %1609 = vmatprep.subr.bf16.mxu0 0
      %1610 = vmatpush1.bf16.msra.mxu0 %v1577
      %1611 = vmatprep.subr.bf16.mxu0 0
      %1612 = vmatpush1.bf16.msra.mxu0 %v1578
      %1613 = vmatprep.subr.bf16.mxu0 0
      %1614 = vmatpush1.bf16.msra.mxu0 0
      %1615 = vmatprep.subr.bf16.mxu0 0
      %1616 = vmatpush1.bf16.msra.mxu0 0
      %1617 = vmatprep.subr.bf16.mxu0 0
      %1618 = vmatpush1.bf16.msra.mxu0 0
      %1619 = vmatprep.subr.bf16.mxu0 0
      %1620 = vmatpush1.bf16.msra.mxu0 0
      %1621 = vmatprep.subr.bf16.mxu0 0
      %1622 = vmatpush1.bf16.msra.mxu0 0
      %1623 = vmatprep.subr.bf16.mxu0 0
      %1624 = vmatpush1.bf16.msra.mxu0 0
      %1625 = vmatprep.mubr.bf16.mxu0 %v1465
      %1626 = vmatmul.mubr.bf16.gmra.mrb[0].mxu0 %v1377
      %v1627 = vpop.f32.mrb[0].mxu0
      %v1628 = vadd.f32 %v1591, %v1627
      %v1629 = vpop.f32.mrb[0].mxu0
      %v1630 = vpop.f32.mrb[0].mxu0
      %v1631 = vadd.f32 %v1591, %v1630
      %v1632 = vpop.f32.mrb[0].mxu0
      %1633 = vdwg.mxu0
      %v1634 = vtanh.pop %v1502
      %v1635 = vtanh.pop %v1505
      %v1636 = vxor.u32 %v1628, 2147483648
      %v1637 = vxor.u32 %v1631, 2147483648
      %v1638 = vmul.f32 %v1636, 1.442695
      %v1639 = vpow.pop %v1638
      %v1640 = vmul.f32 %v1637, 1.442695
      %v1641 = vpow.pop %v1640
      %v1642 = vadd.f32 %v1639, 1.0
      %v1643 = vadd.f32 %v1641, 1.0
      %v1644 = vrcp.pop %v1642
      %v1645 = vmul.f32 1.0, %v1644
      %v1646 = vrcp.pop %v1643
      %v1647 = vmul.f32 1.0, %v1646
      %v1648 = vmul.f32 %v1634, %v1645
      %v1649 = vmul.f32 %v1635, %v1647
      %v1650 = vpack.c.bf16 %v1649, %v1648
      %s1651 = scalar_lea.vmem %s9, 48
      %v1652 = vld [vmem:[%s1651] sm:$0xf]
      %v1653 = vld [vmem:[%s1651 + $0x4] sm:$0xf]
      %v1654 = vld [vmem:[%s1651 + $0x8] sm:$0xf]
      %v1655 = vld [vmem:[%s1651 + $0xc] sm:$0xf]
      %v1660 = vunpack.c.l.b16 %v1652
      %v1661 = vunpack.c.l.b16 %v1653
      %v1662 = vunpack.c.l.b16 %v1654
      %v1663 = vunpack.c.l.b16 %v1655
      %v1664 = vpack.c.b16 %v1661, %v1660
      %v1665 = vpack.c.b16 %v1663, %v1662
      %v1669 = vsel %vm904, %v1650, 0
      %1671 = vmatprep.subr.bf16.mxu0 0
      %1672 = vmatpush1.bf16.msra.mxu0 %v1664
      %1673 = vmatprep.subr.bf16.mxu0 0
      %1674 = vmatpush1.bf16.msra.mxu0 %v1665
      %1675 = vmatprep.subr.bf16.mxu0 0
      %1676 = vmatpush1.bf16.msra.mxu0 0
      %1677 = vmatprep.subr.bf16.mxu0 0
      %1678 = vmatpush1.bf16.msra.mxu0 0
      %1679 = vmatprep.subr.bf16.mxu0 0
      %1680 = vmatpush1.bf16.msra.mxu0 0
      %1681 = vmatprep.subr.bf16.mxu0 0
      %1682 = vmatpush1.bf16.msra.mxu0 0
      %1683 = vmatprep.subr.bf16.mxu0 0
      %1684 = vmatpush1.bf16.msra.mxu0 0
      %1685 = vmatprep.subr.bf16.mxu0 0
      %1686 = vmatpush1.bf16.msra.mxu0 0
      %1687 = vmatprep.subr.bf16.mxu0 0
      %1688 = vmatpush1.bf16.msra.mxu0 0
      %1689 = vmatprep.subr.bf16.mxu0 0
      %1690 = vmatpush1.bf16.msra.mxu0 0
      %1691 = vmatprep.subr.bf16.mxu0 0
      %1692 = vmatpush1.bf16.msra.mxu0 0
      %1693 = vmatprep.subr.bf16.mxu0 0
      %1694 = vmatpush1.bf16.msra.mxu0 0
      %1695 = vmatprep.subr.bf16.mxu0 0
      %1696 = vmatpush1.bf16.msra.mxu0 0
      %1697 = vmatprep.subr.bf16.mxu0 0
      %1698 = vmatpush1.bf16.msra.mxu0 0
      %1699 = vmatprep.subr.bf16.mxu0 0
      %1700 = vmatpush1.bf16.msra.mxu0 0
      %1701 = vmatprep.subr.bf16.mxu0 0
      %1702 = vmatpush1.bf16.msra.mxu0 0
      %1703 = vmatprep.mubr.bf16.mxu0 0
      %1704 = vmatmul.mubr.bf16.gmra.mrb[0].mxu0 %v1669
      %v1705 = vpop.f32.mrb[0].mxu0
      %v1706 = vadd.f32 0.0, %v1705
      %v1707 = vpop.f32.mrb[0].mxu0
      %v1708 = vpop.f32.mrb[0].mxu0
      %v1709 = vadd.f32 0.0, %v1708
      %v1710 = vpop.f32.mrb[0].mxu0
      %1711 = vdwg.mxu0
      %v1712 = vadd.f32 %v1249, %v1706
      %v1713 = vadd.f32 %v1252, %v1709
      %s1714 = scalar_lea.vmem %s10, 3
      %v1715 = vld [vmem:[%s1714] sm:$0x1]
      %v1717 = vlaneseq
      %v1718 = vshrl.u32 %v1717, 7
      %v1719 = vsub.s32 0, %v1718
      %v1720 = vrot.slane %v1715, %v1719
      %v1722 = vadd.f32 %v1712, %v1720
      %v1723 = vadd.f32 %v1713, %v1720
      %s1724 = scalar_lea.vmem %s9, 32
      %v1725 = vld [vmem:[%s1724] sm:$0xf]
      %v1726 = vld [vmem:[%s1724 + $0x4] sm:$0xf]
      %v1727 = vld [vmem:[%s1724 + $0x8] sm:$0xf]
      %v1728 = vld [vmem:[%s1724 + $0xc] sm:$0xf]
      %s1729 = scalar_lea.vmem %s10, 2
      %v1730 = vld [vmem:[%s1729] sm:$0x1]
      %v1732 = vlaneseq
      %v1733 = vshrl.u32 %v1732, 7
      %v1734 = vsub.s32 0, %v1733
      %v1735 = vrot.slane %v1730, %v1734
      %v1741 = vunpack.c.l.b16 %v1725
      %v1742 = vunpack.c.l.b16 %v1726
      %v1743 = vunpack.c.l.b16 %v1727
      %v1744 = vunpack.c.l.b16 %v1728
      %v1745 = vpack.c.b16 %v1742, %v1741
      %v1746 = vpack.c.b16 %v1744, %v1743
      %1749 = vmatprep.subr.bf16.mxu0 0
      %1750 = vmatpush1.bf16.msra.mxu0 %v1745
      %1751 = vmatprep.subr.bf16.mxu0 0
      %1752 = vmatpush1.bf16.msra.mxu0 %v1746
      %1753 = vmatprep.subr.bf16.mxu0 0
      %1754 = vmatpush1.bf16.msra.mxu0 0
      %1755 = vmatprep.subr.bf16.mxu0 0
      %1756 = vmatpush1.bf16.msra.mxu0 0
      %1757 = vmatprep.subr.bf16.mxu0 0
      %1758 = vmatpush1.bf16.msra.mxu0 0
      %1759 = vmatprep.subr.bf16.mxu0 0
      %1760 = vmatpush1.bf16.msra.mxu0 0
      %1761 = vmatprep.subr.bf16.mxu0 0
      %1762 = vmatpush1.bf16.msra.mxu0 0
      %1763 = vmatprep.subr.bf16.mxu0 0
      %1764 = vmatpush1.bf16.msra.mxu0 0
      %1765 = vmatprep.subr.bf16.mxu0 0
      %1766 = vmatpush1.bf16.msra.mxu0 0
      %1767 = vmatprep.subr.bf16.mxu0 0
      %1768 = vmatpush1.bf16.msra.mxu0 0
      %1769 = vmatprep.subr.bf16.mxu0 0
      %1770 = vmatpush1.bf16.msra.mxu0 0
      %1771 = vmatprep.subr.bf16.mxu0 0
      %1772 = vmatpush1.bf16.msra.mxu0 0
      %1773 = vmatprep.subr.bf16.mxu0 0
      %1774 = vmatpush1.bf16.msra.mxu0 0
      %1775 = vmatprep.subr.bf16.mxu0 0
      %1776 = vmatpush1.bf16.msra.mxu0 0
      %1777 = vmatprep.subr.bf16.mxu0 0
      %1778 = vmatpush1.bf16.msra.mxu0 0
      %1779 = vmatprep.subr.bf16.mxu0 0
      %1780 = vmatpush1.bf16.msra.mxu0 0
      %1781 = vmatprep.mubr.bf16.mxu0 0
      %1782 = vmatmul.mubr.bf16.gmra.mrb[0].mxu0 %v1669
      %v1783 = vpop.f32.mrb[0].mxu0
      %v1784 = vadd.f32 %v1735, %v1783
      %v1785 = vpop.f32.mrb[0].mxu0
      %v1786 = vpop.f32.mrb[0].mxu0
      %v1787 = vadd.f32 %v1735, %v1786
      %v1788 = vpop.f32.mrb[0].mxu0
      %1789 = vdwg.mxu0
      %v1790 = vadd.f32 %v1321, %v1784
      %v1791 = vadd.f32 %v1322, %v1787
      %v1792 = vmul.f32 %v1790, %v792
      %v1793 = vmul.f32 %v1791, %v797
      %v1794 = vrot.slane %v1792, 6
      %v1795 = vrot.slane %v1793, 6
      %v1796 = vsel %vm806, %v1794, %v1795
      %v1797 = vsel %vm806, %v1795, %v1794
      %v1798 = vsel %vm819, %v1797, 0.0
      %v1799 = vsel %vm820, %v1796, 0.0
      %v1800 = vrot.slane %v1792, 7
      %v1801 = vrot.slane %v1793, 7
      %v1802 = vsel %vm825, %v1800, %v1801
      %v1803 = vsel %vm825, %v1801, %v1800
      %v1804 = vsel %vm838, %v1803, 0.0
      %v1805 = vsel %vm839, %v1802, 0.0
      %v1806 = vrot.slane %v1792, 1
      %v1807 = vrot.slane %v1793, 1
      %v1808 = vsel %vm844, %v1806, %v1807
      %v1809 = vsel %vm844, %v1807, %v1806
      %v1810 = vsel %vm857, %v1808, 0.0
      %v1811 = vsel %vm858, %v1809, 0.0
      %v1812 = vrot.slane %v1792, 2
      %v1813 = vrot.slane %v1793, 2
      %v1814 = vsel %vm863, %v1812, %v1813
      %v1815 = vsel %vm863, %v1813, %v1812
      %v1816 = vsel %vm876, %v1814, 0.0
      %v1817 = vsel %vm877, %v1815, 0.0
      %1820 = vrot.lane.b32.xlu0 %v1804, 32
      %v1821 = vpop.permute.xlu0 %1820
      %1822 = vrot.lane.b32.xlu0 %v1805, 32
      %v1823 = vpop.permute.xlu0 %1822
      %1828 = vrot.lane.b32.xlu0 %v1792, 64
      %v1829 = vpop.permute.xlu0 %1828
      %1830 = vrot.lane.b32.xlu0 %v1793, 64
      %v1831 = vpop.permute.xlu0 %1830
      %1836 = vrot.lane.b32.xlu0 %v1810, 96
      %v1837 = vpop.permute.xlu0 %1836
      %1838 = vrot.lane.b32.xlu0 %v1811, 96
      %v1839 = vpop.permute.xlu0 %1838
      %v1842 = vsel %vm904, %v1798, %v1821
      %v1843 = vsel %vm904, %v1799, %v1823
      %v1844 = vsel %vm907, %v1842, %v1829
      %v1845 = vsel %vm907, %v1843, %v1831
      %v1846 = vsel %vm910, %v1844, %v1837
      %v1847 = vsel %vm910, %v1845, %v1839
      %v1848 = vpack.c.bf16 %v1847, %v1846
      %v1849 = vpack.c.bf16 %v1817, %v1816
      %s1850 = scalar_lea.vmem %s6, 320
      %v1851 = vld [vmem:[%s1850] sm:$0xf]
      %v1852 = vld [vmem:[%s1850 + $0x4] sm:$0xf]
      %v1853 = vld [vmem:[%s1850 + $0x8] sm:$0xf]
      %v1854 = vld [vmem:[%s1850 + $0xc] sm:$0xf]
      %v1855 = vld [vmem:[%s1850 + $0x10] sm:$0xf]
      %v1856 = vld [vmem:[%s1850 + $0x14] sm:$0xf]
      %v1857 = vld [vmem:[%s1850 + $0x18] sm:$0xf]
      %v1858 = vld [vmem:[%s1850 + $0x1c] sm:$0xf]
      %v1859 = vld [vmem:[%s1850 + $0x20] sm:$0xf]
      %v1860 = vld [vmem:[%s1850 + $0x24] sm:$0xf]
      %v1861 = vld [vmem:[%s1850 + $0x28] sm:$0xf]
      %v1862 = vld [vmem:[%s1850 + $0x2c] sm:$0xf]
      %v1863 = vld [vmem:[%s1850 + $0x30] sm:$0xf]
      %v1864 = vld [vmem:[%s1850 + $0x34] sm:$0xf]
      %v1865 = vld [vmem:[%s1850 + $0x38] sm:$0xf]
      %v1866 = vld [vmem:[%s1850 + $0x3c] sm:$0xf]
      %v1867 = vld [vmem:[%s1850 + $0x40] sm:$0xf]
      %v1868 = vld [vmem:[%s1850 + $0x44] sm:$0xf]
      %v1869 = vld [vmem:[%s1850 + $0x48] sm:$0xf]
      %v1870 = vld [vmem:[%s1850 + $0x4c] sm:$0xf]
      %v1891 = vunpack.c.l.b16 %v1851
      %v1892 = vunpack.c.l.b16 %v1852
      %v1893 = vunpack.c.l.b16 %v1853
      %v1894 = vunpack.c.l.b16 %v1854
      %v1895 = vunpack.c.l.b16 %v1855
      %v1896 = vunpack.c.l.b16 %v1856
      %v1897 = vunpack.c.l.b16 %v1857
      %v1898 = vunpack.c.l.b16 %v1858
      %v1899 = vunpack.c.l.b16 %v1859
      %v1900 = vunpack.c.l.b16 %v1860
      %v1901 = vunpack.c.l.b16 %v1861
      %v1902 = vunpack.c.l.b16 %v1862
      %v1903 = vunpack.c.l.b16 %v1863
      %v1904 = vunpack.c.l.b16 %v1864
      %v1905 = vunpack.c.l.b16 %v1865
      %v1906 = vunpack.c.l.b16 %v1866
      %v1907 = vunpack.c.l.b16 %v1867
      %v1908 = vunpack.c.l.b16 %v1868
      %v1909 = vunpack.c.l.b16 %v1869
      %v1910 = vunpack.c.l.b16 %v1870
      %v1911 = vpack.c.b16 %v1892, %v1891
      %v1912 = vpack.c.b16 %v1894, %v1893
      %v1913 = vpack.c.b16 %v1896, %v1895
      %v1914 = vpack.c.b16 %v1898, %v1897
      %v1915 = vpack.c.b16 %v1900, %v1899
      %v1916 = vpack.c.b16 %v1902, %v1901
      %v1917 = vpack.c.b16 %v1904, %v1903
      %v1918 = vpack.c.b16 %v1906, %v1905
      %v1919 = vpack.c.b16 %v1908, %v1907
      %v1920 = vpack.c.b16 %v1910, %v1909
      %1931 = vrot.lane.b32.xlu0 %v938, 64
      %v1932 = vpop.permute.xlu0 %1931
      %v1935 = vsel %vm904, %v1849, 0
      %1937 = vmatprep.subr.bf16.mxu0 0
      %1938 = vmatpush1.bf16.msra.mxu0 %v1911
      %1939 = vmatprep.subr.bf16.mxu0 0
      %1940 = vmatpush1.bf16.msra.mxu0 %v1912
      %1941 = vmatprep.subr.bf16.mxu0 0
      %1942 = vmatpush1.bf16.msra.mxu0 %v1913
      %1943 = vmatprep.subr.bf16.mxu0 0
      %1944 = vmatpush1.bf16.msra.mxu0 %v1914
      %1945 = vmatprep.subr.bf16.mxu0 0
      %1946 = vmatpush1.bf16.msra.mxu0 %v1915
      %1947 = vmatprep.subr.bf16.mxu0 0
      %1948 = vmatpush1.bf16.msra.mxu0 %v1916
      %1949 = vmatprep.subr.bf16.mxu0 0
      %1950 = vmatpush1.bf16.msra.mxu0 %v1917
      %1951 = vmatprep.subr.bf16.mxu0 0
      %1952 = vmatpush1.bf16.msra.mxu0 %v1918
      %1953 = vmatprep.subr.bf16.mxu0 0
      %1954 = vmatpush1.bf16.msra.mxu0 %v1919
      %1955 = vmatprep.subr.bf16.mxu0 0
      %1956 = vmatpush1.bf16.msra.mxu0 %v1920
      %1957 = vmatprep.subr.bf16.mxu0 0
      %1958 = vmatpush1.bf16.msra.mxu0 0
      %1959 = vmatprep.subr.bf16.mxu0 0
      %1960 = vmatpush1.bf16.msra.mxu0 0
      %1961 = vmatprep.subr.bf16.mxu0 0
      %1962 = vmatpush1.bf16.msra.mxu0 0
      %1963 = vmatprep.subr.bf16.mxu0 0
      %1964 = vmatpush1.bf16.msra.mxu0 0
      %1965 = vmatprep.subr.bf16.mxu0 0
      %1966 = vmatpush1.bf16.msra.mxu0 0
      %1967 = vmatprep.subr.bf16.mxu0 0
      %1968 = vmatpush1.bf16.msra.mxu0 0
      %1969 = vmatprep.mubr.bf16.mxu0 %v1935
      %1970 = vmatmul.mubr.bf16.gmra.mrb[0].mxu0 %v1848
      %v1971 = vpop.f32.mrb[0].mxu0
      %v1972 = vadd.f32 %v1932, %v1971
      %v1973 = vpop.f32.mrb[0].mxu0
      %v1974 = vpop.f32.mrb[0].mxu0
      %v1975 = vadd.f32 %v1932, %v1974
      %v1976 = vpop.f32.mrb[0].mxu0
      %1977 = vdwg.mxu0
      %s1978 = scalar_lea.vmem %s6, 400
      %v1979 = vld [vmem:[%s1978] sm:$0xf]
      %v1980 = vld [vmem:[%s1978 + $0x4] sm:$0xf]
      %v1981 = vld [vmem:[%s1978 + $0x8] sm:$0xf]
      %v1982 = vld [vmem:[%s1978 + $0xc] sm:$0xf]
      %v1983 = vld [vmem:[%s1978 + $0x10] sm:$0xf]
      %v1984 = vld [vmem:[%s1978 + $0x14] sm:$0xf]
      %v1985 = vld [vmem:[%s1978 + $0x18] sm:$0xf]
      %v1986 = vld [vmem:[%s1978 + $0x1c] sm:$0xf]
      %v1987 = vld [vmem:[%s1978 + $0x20] sm:$0xf]
      %v1988 = vld [vmem:[%s1978 + $0x24] sm:$0xf]
      %v1989 = vld [vmem:[%s1978 + $0x28] sm:$0xf]
      %v1990 = vld [vmem:[%s1978 + $0x2c] sm:$0xf]
      %v1991 = vld [vmem:[%s1978 + $0x30] sm:$0xf]
      %v1992 = vld [vmem:[%s1978 + $0x34] sm:$0xf]
      %v1993 = vld [vmem:[%s1978 + $0x38] sm:$0xf]
      %v1994 = vld [vmem:[%s1978 + $0x3c] sm:$0xf]
      %v1995 = vld [vmem:[%s1978 + $0x40] sm:$0xf]
      %v1996 = vld [vmem:[%s1978 + $0x44] sm:$0xf]
      %v1997 = vld [vmem:[%s1978 + $0x48] sm:$0xf]
      %v1998 = vld [vmem:[%s1978 + $0x4c] sm:$0xf]
      %v2019 = vunpack.c.l.b16 %v1979
      %v2020 = vunpack.c.l.b16 %v1980
      %v2021 = vunpack.c.l.b16 %v1981
      %v2022 = vunpack.c.l.b16 %v1982
      %v2023 = vunpack.c.l.b16 %v1983
      %v2024 = vunpack.c.l.b16 %v1984
      %v2025 = vunpack.c.l.b16 %v1985
      %v2026 = vunpack.c.l.b16 %v1986
      %v2027 = vunpack.c.l.b16 %v1987
      %v2028 = vunpack.c.l.b16 %v1988
      %v2029 = vunpack.c.l.b16 %v1989
      %v2030 = vunpack.c.l.b16 %v1990
      %v2031 = vunpack.c.l.b16 %v1991
      %v2032 = vunpack.c.l.b16 %v1992
      %v2033 = vunpack.c.l.b16 %v1993
      %v2034 = vunpack.c.l.b16 %v1994
      %v2035 = vunpack.c.l.b16 %v1995
      %v2036 = vunpack.c.l.b16 %v1996
      %v2037 = vunpack.c.l.b16 %v1997
      %v2038 = vunpack.c.l.b16 %v1998
      %v2039 = vpack.c.b16 %v2020, %v2019
      %v2040 = vpack.c.b16 %v2022, %v2021
      %v2041 = vpack.c.b16 %v2024, %v2023
      %v2042 = vpack.c.b16 %v2026, %v2025
      %v2043 = vpack.c.b16 %v2028, %v2027
      %v2044 = vpack.c.b16 %v2030, %v2029
      %v2045 = vpack.c.b16 %v2032, %v2031
      %v2046 = vpack.c.b16 %v2034, %v2033
      %v2047 = vpack.c.b16 %v2036, %v2035
      %v2048 = vpack.c.b16 %v2038, %v2037
      %2059 = vrot.lane.b32.xlu0 %v1067, 64
      %v2060 = vpop.permute.xlu0 %2059
      %2062 = vmatprep.subr.bf16.mxu0 0
      %2063 = vmatpush1.bf16.msra.mxu0 %v2039
      %2064 = vmatprep.subr.bf16.mxu0 0
      %2065 = vmatpush1.bf16.msra.mxu0 %v2040
      %2066 = vmatprep.subr.bf16.mxu0 0
      %2067 = vmatpush1.bf16.msra.mxu0 %v2041
      %2068 = vmatprep.subr.bf16.mxu0 0
      %2069 = vmatpush1.bf16.msra.mxu0 %v2042
      %2070 = vmatprep.subr.bf16.mxu0 0
      %2071 = vmatpush1.bf16.msra.mxu0 %v2043
      %2072 = vmatprep.subr.bf16.mxu0 0
      %2073 = vmatpush1.bf16.msra.mxu0 %v2044
      %2074 = vmatprep.subr.bf16.mxu0 0
      %2075 = vmatpush1.bf16.msra.mxu0 %v2045
      %2076 = vmatprep.subr.bf16.mxu0 0
      %2077 = vmatpush1.bf16.msra.mxu0 %v2046
      %2078 = vmatprep.subr.bf16.mxu0 0
      %2079 = vmatpush1.bf16.msra.mxu0 %v2047
      %2080 = vmatprep.subr.bf16.mxu0 0
      %2081 = vmatpush1.bf16.msra.mxu0 %v2048
      %2082 = vmatprep.subr.bf16.mxu0 0
      %2083 = vmatpush1.bf16.msra.mxu0 0
      %2084 = vmatprep.subr.bf16.mxu0 0
      %2085 = vmatpush1.bf16.msra.mxu0 0
      %2086 = vmatprep.subr.bf16.mxu0 0
      %2087 = vmatpush1.bf16.msra.mxu0 0
      %2088 = vmatprep.subr.bf16.mxu0 0
      %2089 = vmatpush1.bf16.msra.mxu0 0
      %2090 = vmatprep.subr.bf16.mxu0 0
      %2091 = vmatpush1.bf16.msra.mxu0 0
      %2092 = vmatprep.subr.bf16.mxu0 0
      %2093 = vmatpush1.bf16.msra.mxu0 0
      %2094 = vmatprep.mubr.bf16.mxu0 %v1935
      %2095 = vmatmul.mubr.bf16.gmra.mrb[0].mxu0 %v1848
      %v2096 = vpop.f32.mrb[0].mxu0
      %v2097 = vadd.f32 %v2060, %v2096
      %v2098 = vpop.f32.mrb[0].mxu0
      %v2099 = vpop.f32.mrb[0].mxu0
      %v2100 = vadd.f32 %v2060, %v2099
      %v2101 = vpop.f32.mrb[0].mxu0
      %2102 = vdwg.mxu0
      %v2103 = vtanh.pop %v1972
      %v2104 = vtanh.pop %v1975
      %v2105 = vxor.u32 %v2097, 2147483648
      %v2106 = vxor.u32 %v2100, 2147483648
      %v2107 = vmul.f32 %v2105, 1.442695
      %v2108 = vpow.pop %v2107
      %v2109 = vmul.f32 %v2106, 1.442695
      %v2110 = vpow.pop %v2109
      %v2111 = vadd.f32 %v2108, 1.0
      %v2112 = vadd.f32 %v2110, 1.0
      %v2113 = vrcp.pop %v2111
      %v2114 = vmul.f32 1.0, %v2113
      %v2115 = vrcp.pop %v2112
      %v2116 = vmul.f32 1.0, %v2115
      %v2117 = vmul.f32 %v2103, %v2114
      %v2118 = vmul.f32 %v2104, %v2116
      %v2119 = vpack.c.bf16 %v2118, %v2117
      %s2120 = scalar_lea.vmem %s9, 80
      %v2121 = vld [vmem:[%s2120] sm:$0xf]
      %v2122 = vld [vmem:[%s2120 + $0x4] sm:$0xf]
      %v2123 = vld [vmem:[%s2120 + $0x8] sm:$0xf]
      %v2124 = vld [vmem:[%s2120 + $0xc] sm:$0xf]
      %v2129 = vunpack.c.l.b16 %v2121
      %v2130 = vunpack.c.l.b16 %v2122
      %v2131 = vunpack.c.l.b16 %v2123
      %v2132 = vunpack.c.l.b16 %v2124
      %v2133 = vpack.c.b16 %v2130, %v2129
      %v2134 = vpack.c.b16 %v2132, %v2131
      %v2138 = vsel %vm904, %v2119, 0
      %2140 = vmatprep.subr.bf16.mxu0 0
      %2141 = vmatpush1.bf16.msra.mxu0 %v2133
      %2142 = vmatprep.subr.bf16.mxu0 0
      %2143 = vmatpush1.bf16.msra.mxu0 %v2134
      %2144 = vmatprep.subr.bf16.mxu0 0
      %2145 = vmatpush1.bf16.msra.mxu0 0
      %2146 = vmatprep.subr.bf16.mxu0 0
      %2147 = vmatpush1.bf16.msra.mxu0 0
      %2148 = vmatprep.subr.bf16.mxu0 0
      %2149 = vmatpush1.bf16.msra.mxu0 0
      %2150 = vmatprep.subr.bf16.mxu0 0
      %2151 = vmatpush1.bf16.msra.mxu0 0
      %2152 = vmatprep.subr.bf16.mxu0 0
      %2153 = vmatpush1.bf16.msra.mxu0 0
      %2154 = vmatprep.subr.bf16.mxu0 0
      %2155 = vmatpush1.bf16.msra.mxu0 0
      %2156 = vmatprep.subr.bf16.mxu0 0
      %2157 = vmatpush1.bf16.msra.mxu0 0
      %2158 = vmatprep.subr.bf16.mxu0 0
      %2159 = vmatpush1.bf16.msra.mxu0 0
      %2160 = vmatprep.subr.bf16.mxu0 0
      %2161 = vmatpush1.bf16.msra.mxu0 0
      %2162 = vmatprep.subr.bf16.mxu0 0
      %2163 = vmatpush1.bf16.msra.mxu0 0
      %2164 = vmatprep.subr.bf16.mxu0 0
      %2165 = vmatpush1.bf16.msra.mxu0 0
      %2166 = vmatprep.subr.bf16.mxu0 0
      %2167 = vmatpush1.bf16.msra.mxu0 0
      %2168 = vmatprep.subr.bf16.mxu0 0
      %2169 = vmatpush1.bf16.msra.mxu0 0
      %2170 = vmatprep.subr.bf16.mxu0 0
      %2171 = vmatpush1.bf16.msra.mxu0 0
      %2172 = vmatprep.mubr.bf16.mxu0 0
      %2173 = vmatmul.mubr.bf16.gmra.mrb[0].mxu0 %v2138
      %v2174 = vpop.f32.mrb[0].mxu0
      %v2175 = vadd.f32 0.0, %v2174
      %v2176 = vpop.f32.mrb[0].mxu0
      %v2177 = vpop.f32.mrb[0].mxu0
      %v2178 = vadd.f32 0.0, %v2177
      %v2179 = vpop.f32.mrb[0].mxu0
      %2180 = vdwg.mxu0
      %v2181 = vadd.f32 %v1722, %v2175
      %v2182 = vadd.f32 %v1723, %v2178
      %s2183 = scalar_lea.vmem %s10, 5
      %v2184 = vld [vmem:[%s2183] sm:$0x1]
      %v2186 = vlaneseq
      %v2187 = vshrl.u32 %v2186, 7
      %v2188 = vsub.s32 0, %v2187
      %v2189 = vrot.slane %v2184, %v2188
      %v2191 = vadd.f32 %v2181, %v2189
      %v2192 = vadd.f32 %v2182, %v2189
      %s2193 = scalar_lea.vmem %s9, 64
      %v2194 = vld [vmem:[%s2193] sm:$0xf]
      %v2195 = vld [vmem:[%s2193 + $0x4] sm:$0xf]
      %v2196 = vld [vmem:[%s2193 + $0x8] sm:$0xf]
      %v2197 = vld [vmem:[%s2193 + $0xc] sm:$0xf]
      %s2198 = scalar_lea.vmem %s10, 4
      %v2199 = vld [vmem:[%s2198] sm:$0x1]
      %v2201 = vlaneseq
      %v2202 = vshrl.u32 %v2201, 7
      %v2203 = vsub.s32 0, %v2202
      %v2204 = vrot.slane %v2199, %v2203
      %v2210 = vunpack.c.l.b16 %v2194
      %v2211 = vunpack.c.l.b16 %v2195
      %v2212 = vunpack.c.l.b16 %v2196
      %v2213 = vunpack.c.l.b16 %v2197
      %v2214 = vpack.c.b16 %v2211, %v2210
      %v2215 = vpack.c.b16 %v2213, %v2212
      %2218 = vmatprep.subr.bf16.mxu0 0
      %2219 = vmatpush1.bf16.msra.mxu0 %v2214
      %2220 = vmatprep.subr.bf16.mxu0 0
      %2221 = vmatpush1.bf16.msra.mxu0 %v2215
      %2222 = vmatprep.subr.bf16.mxu0 0
      %2223 = vmatpush1.bf16.msra.mxu0 0
      %2224 = vmatprep.subr.bf16.mxu0 0
      %2225 = vmatpush1.bf16.msra.mxu0 0
      %2226 = vmatprep.subr.bf16.mxu0 0
      %2227 = vmatpush1.bf16.msra.mxu0 0
      %2228 = vmatprep.subr.bf16.mxu0 0
      %2229 = vmatpush1.bf16.msra.mxu0 0
      %2230 = vmatprep.subr.bf16.mxu0 0
      %2231 = vmatpush1.bf16.msra.mxu0 0
      %2232 = vmatprep.subr.bf16.mxu0 0
      %2233 = vmatpush1.bf16.msra.mxu0 0
      %2234 = vmatprep.subr.bf16.mxu0 0
      %2235 = vmatpush1.bf16.msra.mxu0 0
      %2236 = vmatprep.subr.bf16.mxu0 0
      %2237 = vmatpush1.bf16.msra.mxu0 0
      %2238 = vmatprep.subr.bf16.mxu0 0
      %2239 = vmatpush1.bf16.msra.mxu0 0
      %2240 = vmatprep.subr.bf16.mxu0 0
      %2241 = vmatpush1.bf16.msra.mxu0 0
      %2242 = vmatprep.subr.bf16.mxu0 0
      %2243 = vmatpush1.bf16.msra.mxu0 0
      %2244 = vmatprep.subr.bf16.mxu0 0
      %2245 = vmatpush1.bf16.msra.mxu0 0
      %2246 = vmatprep.subr.bf16.mxu0 0
      %2247 = vmatpush1.bf16.msra.mxu0 0
      %2248 = vmatprep.subr.bf16.mxu0 0
      %2249 = vmatpush1.bf16.msra.mxu0 0
      %2250 = vmatprep.mubr.bf16.mxu0 0
      %2251 = vmatmul.mubr.bf16.gmra.mrb[0].mxu0 %v2138
      %v2252 = vpop.f32.mrb[0].mxu0
      %v2253 = vadd.f32 %v2204, %v2252
      %v2254 = vpop.f32.mrb[0].mxu0
      %v2255 = vpop.f32.mrb[0].mxu0
      %v2256 = vadd.f32 %v2204, %v2255
      %v2257 = vpop.f32.mrb[0].mxu0
      %2258 = vdwg.mxu0
      %v2259 = vadd.f32 %v1792, %v2253
      %v2260 = vadd.f32 %v1793, %v2256
      %v2261 = vmul.f32 %v2259, %v792
      %v2262 = vmul.f32 %v2260, %v797
      %v2263 = vrot.slane %v2261, 6
      %v2264 = vrot.slane %v2262, 6
      %v2265 = vsel %vm806, %v2263, %v2264
      %v2266 = vsel %vm806, %v2264, %v2263
      %v2267 = vsel %vm819, %v2266, 0.0
      %v2268 = vsel %vm820, %v2265, 0.0
      %v2269 = vrot.slane %v2261, 7
      %v2270 = vrot.slane %v2262, 7
      %v2271 = vsel %vm825, %v2269, %v2270
      %v2272 = vsel %vm825, %v2270, %v2269
      %v2273 = vsel %vm838, %v2272, 0.0
      %v2274 = vsel %vm839, %v2271, 0.0
      %v2275 = vrot.slane %v2261, 1
      %v2276 = vrot.slane %v2262, 1
      %v2277 = vsel %vm844, %v2275, %v2276
      %v2278 = vsel %vm844, %v2276, %v2275
      %v2279 = vsel %vm857, %v2277, 0.0
      %v2280 = vsel %vm858, %v2278, 0.0
      %v2281 = vrot.slane %v2261, 2
      %v2282 = vrot.slane %v2262, 2
      %v2283 = vsel %vm863, %v2281, %v2282
      %v2284 = vsel %vm863, %v2282, %v2281
      %v2285 = vsel %vm876, %v2283, 0.0
      %v2286 = vsel %vm877, %v2284, 0.0
      %2289 = vrot.lane.b32.xlu0 %v2273, 32
      %v2290 = vpop.permute.xlu0 %2289
      %2291 = vrot.lane.b32.xlu0 %v2274, 32
      %v2292 = vpop.permute.xlu0 %2291
      %2297 = vrot.lane.b32.xlu0 %v2261, 64
      %v2298 = vpop.permute.xlu0 %2297
      %2299 = vrot.lane.b32.xlu0 %v2262, 64
      %v2300 = vpop.permute.xlu0 %2299
      %2305 = vrot.lane.b32.xlu0 %v2279, 96
      %v2306 = vpop.permute.xlu0 %2305
      %2307 = vrot.lane.b32.xlu0 %v2280, 96
      %v2308 = vpop.permute.xlu0 %2307
      %v2311 = vsel %vm904, %v2267, %v2290
      %v2312 = vsel %vm904, %v2268, %v2292
      %v2313 = vsel %vm907, %v2311, %v2298
      %v2314 = vsel %vm907, %v2312, %v2300
      %v2315 = vsel %vm910, %v2313, %v2306
      %v2316 = vsel %vm910, %v2314, %v2308
      %v2317 = vpack.c.bf16 %v2316, %v2315
      %v2318 = vpack.c.bf16 %v2286, %v2285
      %s2319 = scalar_lea.vmem %s6, 480
      %v2320 = vld [vmem:[%s2319] sm:$0xf]
      %v2321 = vld [vmem:[%s2319 + $0x4] sm:$0xf]
      %v2322 = vld [vmem:[%s2319 + $0x8] sm:$0xf]
      %v2323 = vld [vmem:[%s2319 + $0xc] sm:$0xf]
      %v2324 = vld [vmem:[%s2319 + $0x10] sm:$0xf]
      %v2325 = vld [vmem:[%s2319 + $0x14] sm:$0xf]
      %v2326 = vld [vmem:[%s2319 + $0x18] sm:$0xf]
      %v2327 = vld [vmem:[%s2319 + $0x1c] sm:$0xf]
      %v2328 = vld [vmem:[%s2319 + $0x20] sm:$0xf]
      %v2329 = vld [vmem:[%s2319 + $0x24] sm:$0xf]
      %v2330 = vld [vmem:[%s2319 + $0x28] sm:$0xf]
      %v2331 = vld [vmem:[%s2319 + $0x2c] sm:$0xf]
      %v2332 = vld [vmem:[%s2319 + $0x30] sm:$0xf]
      %v2333 = vld [vmem:[%s2319 + $0x34] sm:$0xf]
      %v2334 = vld [vmem:[%s2319 + $0x38] sm:$0xf]
      %v2335 = vld [vmem:[%s2319 + $0x3c] sm:$0xf]
      %v2336 = vld [vmem:[%s2319 + $0x40] sm:$0xf]
      %v2337 = vld [vmem:[%s2319 + $0x44] sm:$0xf]
      %v2338 = vld [vmem:[%s2319 + $0x48] sm:$0xf]
      %v2339 = vld [vmem:[%s2319 + $0x4c] sm:$0xf]
      %v2360 = vunpack.c.l.b16 %v2320
      %v2361 = vunpack.c.l.b16 %v2321
      %v2362 = vunpack.c.l.b16 %v2322
      %v2363 = vunpack.c.l.b16 %v2323
      %v2364 = vunpack.c.l.b16 %v2324
      %v2365 = vunpack.c.l.b16 %v2325
      %v2366 = vunpack.c.l.b16 %v2326
      %v2367 = vunpack.c.l.b16 %v2327
      %v2368 = vunpack.c.l.b16 %v2328
      %v2369 = vunpack.c.l.b16 %v2329
      %v2370 = vunpack.c.l.b16 %v2330
      %v2371 = vunpack.c.l.b16 %v2331
      %v2372 = vunpack.c.l.b16 %v2332
      %v2373 = vunpack.c.l.b16 %v2333
      %v2374 = vunpack.c.l.b16 %v2334
      %v2375 = vunpack.c.l.b16 %v2335
      %v2376 = vunpack.c.l.b16 %v2336
      %v2377 = vunpack.c.l.b16 %v2337
      %v2378 = vunpack.c.l.b16 %v2338
      %v2379 = vunpack.c.l.b16 %v2339
      %v2380 = vpack.c.b16 %v2361, %v2360
      %v2381 = vpack.c.b16 %v2363, %v2362
      %v2382 = vpack.c.b16 %v2365, %v2364
      %v2383 = vpack.c.b16 %v2367, %v2366
      %v2384 = vpack.c.b16 %v2369, %v2368
      %v2385 = vpack.c.b16 %v2371, %v2370
      %v2386 = vpack.c.b16 %v2373, %v2372
      %v2387 = vpack.c.b16 %v2375, %v2374
      %v2388 = vpack.c.b16 %v2377, %v2376
      %v2389 = vpack.c.b16 %v2379, %v2378
      %2400 = vrot.lane.b32.xlu0 %v938, 32
      %v2401 = vpop.permute.xlu0 %2400
      %v2404 = vsel %vm904, %v2318, 0
      %2406 = vmatprep.subr.bf16.mxu0 0
      %2407 = vmatpush1.bf16.msra.mxu0 %v2380
      %2408 = vmatprep.subr.bf16.mxu0 0
      %2409 = vmatpush1.bf16.msra.mxu0 %v2381
      %2410 = vmatprep.subr.bf16.mxu0 0
      %2411 = vmatpush1.bf16.msra.mxu0 %v2382
      %2412 = vmatprep.subr.bf16.mxu0 0
      %2413 = vmatpush1.bf16.msra.mxu0 %v2383
      %2414 = vmatprep.subr.bf16.mxu0 0
      %2415 = vmatpush1.bf16.msra.mxu0 %v2384
      %2416 = vmatprep.subr.bf16.mxu0 0
      %2417 = vmatpush1.bf16.msra.mxu0 %v2385
      %2418 = vmatprep.subr.bf16.mxu0 0
      %2419 = vmatpush1.bf16.msra.mxu0 %v2386
      %2420 = vmatprep.subr.bf16.mxu0 0
      %2421 = vmatpush1.bf16.msra.mxu0 %v2387
      %2422 = vmatprep.subr.bf16.mxu0 0
      %2423 = vmatpush1.bf16.msra.mxu0 %v2388
      %2424 = vmatprep.subr.bf16.mxu0 0
      %2425 = vmatpush1.bf16.msra.mxu0 %v2389
      %2426 = vmatprep.subr.bf16.mxu0 0
      %2427 = vmatpush1.bf16.msra.mxu0 0
      %2428 = vmatprep.subr.bf16.mxu0 0
      %2429 = vmatpush1.bf16.msra.mxu0 0
      %2430 = vmatprep.subr.bf16.mxu0 0
      %2431 = vmatpush1.bf16.msra.mxu0 0
      %2432 = vmatprep.subr.bf16.mxu0 0
      %2433 = vmatpush1.bf16.msra.mxu0 0
      %2434 = vmatprep.subr.bf16.mxu0 0
      %2435 = vmatpush1.bf16.msra.mxu0 0
      %2436 = vmatprep.subr.bf16.mxu0 0
      %2437 = vmatpush1.bf16.msra.mxu0 0
      %2438 = vmatprep.mubr.bf16.mxu0 %v2404
      %2439 = vmatmul.mubr.bf16.gmra.mrb[0].mxu0 %v2317
      %v2440 = vpop.f32.mrb[0].mxu0
      %v2441 = vadd.f32 %v2401, %v2440
      %v2442 = vpop.f32.mrb[0].mxu0
      %v2443 = vpop.f32.mrb[0].mxu0
      %v2444 = vadd.f32 %v2401, %v2443
      %v2445 = vpop.f32.mrb[0].mxu0
      %2446 = vdwg.mxu0
      %s2447 = scalar_lea.vmem %s6, 560
      %v2448 = vld [vmem:[%s2447] sm:$0xf]
      %v2449 = vld [vmem:[%s2447 + $0x4] sm:$0xf]
      %v2450 = vld [vmem:[%s2447 + $0x8] sm:$0xf]
      %v2451 = vld [vmem:[%s2447 + $0xc] sm:$0xf]
      %v2452 = vld [vmem:[%s2447 + $0x10] sm:$0xf]
      %v2453 = vld [vmem:[%s2447 + $0x14] sm:$0xf]
      %v2454 = vld [vmem:[%s2447 + $0x18] sm:$0xf]
      %v2455 = vld [vmem:[%s2447 + $0x1c] sm:$0xf]
      %v2456 = vld [vmem:[%s2447 + $0x20] sm:$0xf]
      %v2457 = vld [vmem:[%s2447 + $0x24] sm:$0xf]
      %v2458 = vld [vmem:[%s2447 + $0x28] sm:$0xf]
      %v2459 = vld [vmem:[%s2447 + $0x2c] sm:$0xf]
      %v2460 = vld [vmem:[%s2447 + $0x30] sm:$0xf]
      %v2461 = vld [vmem:[%s2447 + $0x34] sm:$0xf]
      %v2462 = vld [vmem:[%s2447 + $0x38] sm:$0xf]
      %v2463 = vld [vmem:[%s2447 + $0x3c] sm:$0xf]
      %v2464 = vld [vmem:[%s2447 + $0x40] sm:$0xf]
      %v2465 = vld [vmem:[%s2447 + $0x44] sm:$0xf]
      %v2466 = vld [vmem:[%s2447 + $0x48] sm:$0xf]
      %v2467 = vld [vmem:[%s2447 + $0x4c] sm:$0xf]
      %v2488 = vunpack.c.l.b16 %v2448
      %v2489 = vunpack.c.l.b16 %v2449
      %v2490 = vunpack.c.l.b16 %v2450
      %v2491 = vunpack.c.l.b16 %v2451
      %v2492 = vunpack.c.l.b16 %v2452
      %v2493 = vunpack.c.l.b16 %v2453
      %v2494 = vunpack.c.l.b16 %v2454
      %v2495 = vunpack.c.l.b16 %v2455
      %v2496 = vunpack.c.l.b16 %v2456
      %v2497 = vunpack.c.l.b16 %v2457
      %v2498 = vunpack.c.l.b16 %v2458
      %v2499 = vunpack.c.l.b16 %v2459
      %v2500 = vunpack.c.l.b16 %v2460
      %v2501 = vunpack.c.l.b16 %v2461
      %v2502 = vunpack.c.l.b16 %v2462
      %v2503 = vunpack.c.l.b16 %v2463
      %v2504 = vunpack.c.l.b16 %v2464
      %v2505 = vunpack.c.l.b16 %v2465
      %v2506 = vunpack.c.l.b16 %v2466
      %v2507 = vunpack.c.l.b16 %v2467
      %v2508 = vpack.c.b16 %v2489, %v2488
      %v2509 = vpack.c.b16 %v2491, %v2490
      %v2510 = vpack.c.b16 %v2493, %v2492
      %v2511 = vpack.c.b16 %v2495, %v2494
      %v2512 = vpack.c.b16 %v2497, %v2496
      %v2513 = vpack.c.b16 %v2499, %v2498
      %v2514 = vpack.c.b16 %v2501, %v2500
      %v2515 = vpack.c.b16 %v2503, %v2502
      %v2516 = vpack.c.b16 %v2505, %v2504
      %v2517 = vpack.c.b16 %v2507, %v2506
      %2528 = vrot.lane.b32.xlu0 %v1067, 32
      %v2529 = vpop.permute.xlu0 %2528
      %2531 = vmatprep.subr.bf16.mxu0 0
      %2532 = vmatpush1.bf16.msra.mxu0 %v2508
      %2533 = vmatprep.subr.bf16.mxu0 0
      %2534 = vmatpush1.bf16.msra.mxu0 %v2509
      %2535 = vmatprep.subr.bf16.mxu0 0
      %2536 = vmatpush1.bf16.msra.mxu0 %v2510
      %2537 = vmatprep.subr.bf16.mxu0 0
      %2538 = vmatpush1.bf16.msra.mxu0 %v2511
      %2539 = vmatprep.subr.bf16.mxu0 0
      %2540 = vmatpush1.bf16.msra.mxu0 %v2512
      %2541 = vmatprep.subr.bf16.mxu0 0
      %2542 = vmatpush1.bf16.msra.mxu0 %v2513
      %2543 = vmatprep.subr.bf16.mxu0 0
      %2544 = vmatpush1.bf16.msra.mxu0 %v2514
      %2545 = vmatprep.subr.bf16.mxu0 0
      %2546 = vmatpush1.bf16.msra.mxu0 %v2515
      %2547 = vmatprep.subr.bf16.mxu0 0
      %2548 = vmatpush1.bf16.msra.mxu0 %v2516
      %2549 = vmatprep.subr.bf16.mxu0 0
      %2550 = vmatpush1.bf16.msra.mxu0 %v2517
      %2551 = vmatprep.subr.bf16.mxu0 0
      %2552 = vmatpush1.bf16.msra.mxu0 0
      %2553 = vmatprep.subr.bf16.mxu0 0
      %2554 = vmatpush1.bf16.msra.mxu0 0
      %2555 = vmatprep.subr.bf16.mxu0 0
      %2556 = vmatpush1.bf16.msra.mxu0 0
      %2557 = vmatprep.subr.bf16.mxu0 0
      %2558 = vmatpush1.bf16.msra.mxu0 0
      %2559 = vmatprep.subr.bf16.mxu0 0
      %2560 = vmatpush1.bf16.msra.mxu0 0
      %2561 = vmatprep.subr.bf16.mxu0 0
      %2562 = vmatpush1.bf16.msra.mxu0 0
      %2563 = vmatprep.mubr.bf16.mxu0 %v2404
      %2564 = vmatmul.mubr.bf16.gmra.mrb[0].mxu0 %v2317
      %v2565 = vpop.f32.mrb[0].mxu0
      %v2566 = vadd.f32 %v2529, %v2565
      %v2567 = vpop.f32.mrb[0].mxu0
      %v2568 = vpop.f32.mrb[0].mxu0
      %v2569 = vadd.f32 %v2529, %v2568
      %v2570 = vpop.f32.mrb[0].mxu0
      %2571 = vdwg.mxu0
      %v2572 = vtanh.pop %v2441
      %v2573 = vtanh.pop %v2444
      %v2574 = vxor.u32 %v2566, 2147483648
      %v2575 = vxor.u32 %v2569, 2147483648
      %v2576 = vmul.f32 %v2574, 1.442695
      %v2577 = vpow.pop %v2576
      %v2578 = vmul.f32 %v2575, 1.442695
      %v2579 = vpow.pop %v2578
      %v2580 = vadd.f32 %v2577, 1.0
      %v2581 = vadd.f32 %v2579, 1.0
      %v2582 = vrcp.pop %v2580
      %v2583 = vmul.f32 1.0, %v2582
      %v2584 = vrcp.pop %v2581
      %v2585 = vmul.f32 1.0, %v2584
      %v2586 = vmul.f32 %v2572, %v2583
      %v2587 = vmul.f32 %v2573, %v2585
      %v2588 = vpack.c.bf16 %v2587, %v2586
      %s2589 = scalar_lea.vmem %s9, 112
      %v2590 = vld [vmem:[%s2589] sm:$0xf]
      %v2591 = vld [vmem:[%s2589 + $0x4] sm:$0xf]
      %v2592 = vld [vmem:[%s2589 + $0x8] sm:$0xf]
      %v2593 = vld [vmem:[%s2589 + $0xc] sm:$0xf]
      %v2598 = vunpack.c.l.b16 %v2590
      %v2599 = vunpack.c.l.b16 %v2591
      %v2600 = vunpack.c.l.b16 %v2592
      %v2601 = vunpack.c.l.b16 %v2593
      %v2602 = vpack.c.b16 %v2599, %v2598
      %v2603 = vpack.c.b16 %v2601, %v2600
      %v2607 = vsel %vm904, %v2588, 0
      %2609 = vmatprep.subr.bf16.mxu0 0
      %2610 = vmatpush1.bf16.msra.mxu0 %v2602
      %2611 = vmatprep.subr.bf16.mxu0 0
      %2612 = vmatpush1.bf16.msra.mxu0 %v2603
      %2613 = vmatprep.subr.bf16.mxu0 0
      %2614 = vmatpush1.bf16.msra.mxu0 0
      %2615 = vmatprep.subr.bf16.mxu0 0
      %2616 = vmatpush1.bf16.msra.mxu0 0
      %2617 = vmatprep.subr.bf16.mxu0 0
      %2618 = vmatpush1.bf16.msra.mxu0 0
      %2619 = vmatprep.subr.bf16.mxu0 0
      %2620 = vmatpush1.bf16.msra.mxu0 0
      %2621 = vmatprep.subr.bf16.mxu0 0
      %2622 = vmatpush1.bf16.msra.mxu0 0
      %2623 = vmatprep.subr.bf16.mxu0 0
      %2624 = vmatpush1.bf16.msra.mxu0 0
      %2625 = vmatprep.subr.bf16.mxu0 0
      %2626 = vmatpush1.bf16.msra.mxu0 0
      %2627 = vmatprep.subr.bf16.mxu0 0
      %2628 = vmatpush1.bf16.msra.mxu0 0
      %2629 = vmatprep.subr.bf16.mxu0 0
      %2630 = vmatpush1.bf16.msra.mxu0 0
      %2631 = vmatprep.subr.bf16.mxu0 0
      %2632 = vmatpush1.bf16.msra.mxu0 0
      %2633 = vmatprep.subr.bf16.mxu0 0
      %2634 = vmatpush1.bf16.msra.mxu0 0
      %2635 = vmatprep.subr.bf16.mxu0 0
      %2636 = vmatpush1.bf16.msra.mxu0 0
      %2637 = vmatprep.subr.bf16.mxu0 0
      %2638 = vmatpush1.bf16.msra.mxu0 0
      %2639 = vmatprep.subr.bf16.mxu0 0
      %2640 = vmatpush1.bf16.msra.mxu0 0
      %2641 = vmatprep.mubr.bf16.mxu0 0
      %2642 = vmatmul.mubr.bf16.gmra.mrb[0].mxu0 %v2607
      %v2643 = vpop.f32.mrb[0].mxu0
      %v2644 = vadd.f32 0.0, %v2643
      %v2645 = vpop.f32.mrb[0].mxu0
      %v2646 = vpop.f32.mrb[0].mxu0
      %v2647 = vadd.f32 0.0, %v2646
      %v2648 = vpop.f32.mrb[0].mxu0
      %2649 = vdwg.mxu0
      %v2650 = vadd.f32 %v2191, %v2644
      %v2651 = vadd.f32 %v2192, %v2647
      %s2652 = scalar_lea.vmem %s10, 7
      %v2653 = vld [vmem:[%s2652] sm:$0x1]
      %v2655 = vlaneseq
      %v2656 = vshrl.u32 %v2655, 7
      %v2657 = vsub.s32 0, %v2656
      %v2658 = vrot.slane %v2653, %v2657
      %v2660 = vadd.f32 %v2650, %v2658
      %v2661 = vadd.f32 %v2651, %v2658
      %v2662 = vmul.f32 %v2660, %v792
      %v2663 = vmul.f32 %v2661, %v797
      %v2664 = vld [vmem:[%s11] sm:$0xff]
      %v2665 = vld [vmem:[%s11 + $0x8] sm:$0xff]
      %v2666 = vld [vmem:[%s11 + $0x10] sm:$0xff]
      %v2667 = vld [vmem:[%s11 + $0x18] sm:$0xff]
      %v2668 = vld [vmem:[%s12] sm:$0x1]
      %v2670 = vlaneseq
      %v2671 = vshrl.u32 %v2670, 7
      %v2672 = vsub.s32 0, %v2671
      %v2673 = vrot.slane %v2668, %v2672
      %v2676 = vsel %vm904, %v2662, 0
      %v2679 = vsel %vm904, %v2663, 0
      %2681 = vmatprep.subr.mxu0 0.0
      %2682 = vmatpush1.msra.mxu0 %v2664
      %2683 = vmatprep.subr.mxu0 0.0
      %2684 = vmatpush1.msra.mxu0 %v2665
      %2685 = vmatprep.subr.mxu0 0.0
      %2686 = vmatpush1.msra.mxu0 %v2666
      %2687 = vmatprep.subr.mxu0 0.0
      %2688 = vmatpush1.msra.mxu0 %v2667
      %2689 = vmatprep.subr.mxu0 0.0
      %2690 = vmatpush1.msra.mxu0 0.0
      %2691 = vmatprep.subr.mxu0 0.0
      %2692 = vmatpush1.msra.mxu0 0.0
      %2693 = vmatprep.subr.mxu0 0.0
      %2694 = vmatpush1.msra.mxu0 0.0
      %2695 = vmatprep.subr.mxu0 0.0
      %2696 = vmatpush1.msra.mxu0 0.0
      %2697 = vmatprep.subr.mxu0 0.0
      %2698 = vmatpush1.msra.mxu0 0.0
      %2699 = vmatprep.subr.mxu0 0.0
      %2700 = vmatpush1.msra.mxu0 0.0
      %2701 = vmatprep.subr.mxu0 0.0
      %2702 = vmatpush1.msra.mxu0 0.0
      %2703 = vmatprep.subr.mxu0 0.0
      %2704 = vmatpush1.msra.mxu0 0.0
      %2705 = vmatprep.subr.mxu0 0.0
      %2706 = vmatpush1.msra.mxu0 0.0
      %2707 = vmatprep.subr.mxu0 0.0
      %2708 = vmatpush1.msra.mxu0 0.0
      %2709 = vmatprep.subr.mxu0 0.0
      %2710 = vmatpush1.msra.mxu0 0.0
      %2711 = vmatprep.subr.mxu0 0.0
      %2712 = vmatpush1.msra.mxu0 0.0
      %2713 = vmatprep.subr.mxu0 0.0
      %2714 = vmatpush1.msra.mxu0 0.0
      %2715 = vmatprep.subr.mxu0 0.0
      %2716 = vmatpush1.msra.mxu0 0.0
      %2717 = vmatprep.subr.mxu0 0.0
      %2718 = vmatpush1.msra.mxu0 0.0
      %2719 = vmatprep.subr.mxu0 0.0
      %2720 = vmatpush1.msra.mxu0 0.0
      %2721 = vmatprep.subr.mxu0 0.0
      %2722 = vmatpush1.msra.mxu0 0.0
      %2723 = vmatprep.subr.mxu0 0.0
      %2724 = vmatpush1.msra.mxu0 0.0
      %2725 = vmatprep.subr.mxu0 0.0
      %2726 = vmatpush1.msra.mxu0 0.0
      %2727 = vmatprep.subr.mxu0 0.0
      %2728 = vmatpush1.msra.mxu0 0.0
      %2729 = vmatprep.subr.mxu0 0.0
      %2730 = vmatpush1.msra.mxu0 0.0
      %2731 = vmatprep.subr.mxu0 0.0
      %2732 = vmatpush1.msra.mxu0 0.0
      %2733 = vmatprep.subr.mxu0 0.0
      %2734 = vmatpush1.msra.mxu0 0.0
      %2735 = vmatprep.subr.mxu0 0.0
      %2736 = vmatpush1.msra.mxu0 0.0
      %2737 = vmatprep.subr.mxu0 0.0
      %2738 = vmatpush1.msra.mxu0 0.0
      %2739 = vmatprep.subr.mxu0 0.0
      %2740 = vmatpush1.msra.mxu0 0.0
      %2741 = vmatprep.subr.mxu0 0.0
      %2742 = vmatpush1.msra.mxu0 0.0
      %2743 = vmatprep.subr.mxu0 0.0
      %2744 = vmatpush1.msra.mxu0 0.0
      %2745 = vmatprep.mubr.f32.mxu0 0.0
      %2746 = vmatmul.mubr.f32.gmra.mrb[0].mxu0 %v2676
      %v2747 = vpop.f32.mrb[0].mxu0
      %v2748 = vadd.f32 %v2673, %v2747
      %v2749 = vpop.f32.mrb[0].mxu0
      %2750 = vmatprep.mubr.f32.mxu0 0.0
      %2751 = vmatmul.mubr.f32.gmra.mrb[0].mxu0 %v2679
      %v2752 = vpop.f32.mrb[0].mxu0
      %v2753 = vadd.f32 %v2673, %v2752
      %v2754 = vpop.f32.mrb[0].mxu0
      %2755 = vdwg.mxu0
      %v2756 = vmul.f32 %v2748, %v792
      %v2757 = vmul.f32 %v2753, %v797
      %s2758 = scalar_lea.vmem %s11, 32
      %v2759 = vld [vmem:[%s2758] sm:$0xff]
      %v2760 = vld [vmem:[%s2758 + $0x8] sm:$0xff]
      %v2761 = vld [vmem:[%s2758 + $0x10] sm:$0xff]
      %v2762 = vld [vmem:[%s2758 + $0x18] sm:$0xff]
      %s2763 = scalar_lea.vmem %s12, 1
      %v2764 = vld [vmem:[%s2763] sm:$0x1]
      %v2766 = vlaneseq
      %v2767 = vshrl.u32 %v2766, 7
      %v2768 = vsub.s32 0, %v2767
      %v2769 = vrot.slane %v2764, %v2768
      %2771 = vmatprep.subr.mxu0 0.0
      %2772 = vmatpush1.msra.mxu0 %v2759
      %2773 = vmatprep.subr.mxu0 0.0
      %2774 = vmatpush1.msra.mxu0 %v2760
      %2775 = vmatprep.subr.mxu0 0.0
      %2776 = vmatpush1.msra.mxu0 %v2761
      %2777 = vmatprep.subr.mxu0 0.0
      %2778 = vmatpush1.msra.mxu0 %v2762
      %2779 = vmatprep.subr.mxu0 0.0
      %2780 = vmatpush1.msra.mxu0 0.0
      %2781 = vmatprep.subr.mxu0 0.0
      %2782 = vmatpush1.msra.mxu0 0.0
      %2783 = vmatprep.subr.mxu0 0.0
      %2784 = vmatpush1.msra.mxu0 0.0
      %2785 = vmatprep.subr.mxu0 0.0
      %2786 = vmatpush1.msra.mxu0 0.0
      %2787 = vmatprep.subr.mxu0 0.0
      %2788 = vmatpush1.msra.mxu0 0.0
      %2789 = vmatprep.subr.mxu0 0.0
      %2790 = vmatpush1.msra.mxu0 0.0
      %2791 = vmatprep.subr.mxu0 0.0
      %2792 = vmatpush1.msra.mxu0 0.0
      %2793 = vmatprep.subr.mxu0 0.0
      %2794 = vmatpush1.msra.mxu0 0.0
      %2795 = vmatprep.subr.mxu0 0.0
      %2796 = vmatpush1.msra.mxu0 0.0
      %2797 = vmatprep.subr.mxu0 0.0
      %2798 = vmatpush1.msra.mxu0 0.0
      %2799 = vmatprep.subr.mxu0 0.0
      %2800 = vmatpush1.msra.mxu0 0.0
      %2801 = vmatprep.subr.mxu0 0.0
      %2802 = vmatpush1.msra.mxu0 0.0
      %2803 = vmatprep.subr.mxu0 0.0
      %2804 = vmatpush1.msra.mxu0 0.0
      %2805 = vmatprep.subr.mxu0 0.0
      %2806 = vmatpush1.msra.mxu0 0.0
      %2807 = vmatprep.subr.mxu0 0.0
      %2808 = vmatpush1.msra.mxu0 0.0
      %2809 = vmatprep.subr.mxu0 0.0
      %2810 = vmatpush1.msra.mxu0 0.0
      %2811 = vmatprep.subr.mxu0 0.0
      %2812 = vmatpush1.msra.mxu0 0.0
      %2813 = vmatprep.subr.mxu0 0.0
      %2814 = vmatpush1.msra.mxu0 0.0
      %2815 = vmatprep.subr.mxu0 0.0
      %2816 = vmatpush1.msra.mxu0 0.0
      %2817 = vmatprep.subr.mxu0 0.0
      %2818 = vmatpush1.msra.mxu0 0.0
      %2819 = vmatprep.subr.mxu0 0.0
      %2820 = vmatpush1.msra.mxu0 0.0
      %2821 = vmatprep.subr.mxu0 0.0
      %2822 = vmatpush1.msra.mxu0 0.0
      %2823 = vmatprep.subr.mxu0 0.0
      %2824 = vmatpush1.msra.mxu0 0.0
      %2825 = vmatprep.subr.mxu0 0.0
      %2826 = vmatpush1.msra.mxu0 0.0
      %2827 = vmatprep.subr.mxu0 0.0
      %2828 = vmatpush1.msra.mxu0 0.0
      %2829 = vmatprep.subr.mxu0 0.0
      %2830 = vmatpush1.msra.mxu0 0.0
      %2831 = vmatprep.subr.mxu0 0.0
      %2832 = vmatpush1.msra.mxu0 0.0
      %2833 = vmatprep.subr.mxu0 0.0
      %2834 = vmatpush1.msra.mxu0 0.0
      %2835 = vmatprep.mubr.f32.mxu0 0.0
      %2836 = vmatmul.mubr.f32.gmra.mrb[0].mxu0 %v2676
      %v2837 = vpop.f32.mrb[0].mxu0
      %v2838 = vadd.f32 %v2769, %v2837
      %v2839 = vpop.f32.mrb[0].mxu0
      %2840 = vmatprep.mubr.f32.mxu0 0.0
      %2841 = vmatmul.mubr.f32.gmra.mrb[0].mxu0 %v2679
      %v2842 = vpop.f32.mrb[0].mxu0
      %v2843 = vadd.f32 %v2769, %v2842
      %v2844 = vpop.f32.mrb[0].mxu0
      %2845 = vdwg.mxu0
      %v2846 = vmul.f32 %v2838, %v792
      %v2847 = vmul.f32 %v2843, %v797
      %v2848 = vmul.f32 %v2846, 1.442695
      %v2849 = vpow.pop %v2848
      %v2850 = vmul.f32 %v2847, 1.442695
      %v2851 = vpow.pop %v2850
      %v2852 = vmul.f32 %v538, %v2849
      %v2853 = vmul.f32 %v539, %v2851
      %v2854 = vmul.f32 %v2852, %v792
      %v2855 = vmul.f32 %v2853, %v797
      %v2856 = vadd.f32 %v2756, %v2854
      %v2857 = vadd.f32 %v2757, %v2855
      %2858 = vst.msk [vmem:[%s529] sm:$0xff] %vm703, %v2856
      %2859 = vst.msk [vmem:[%s529 + $0x8] sm:$0xff] %vm703, %v2857
      %v2860 = vsel %vm703, %v2846, 0.0
      %2861 = vadd.xlane.f32.xlu0 %v2860
      %v2862 = vpop.xlane.xlu0 %2861
      %v2863 = vsel %vm703, %v2847, 0.0
      %2864 = vadd.xlane.f32.xlu0 %v2863
      %v2865 = vpop.xlane.xlu0 %2864
      %vm2866 = vcmask 7168
      %2867 = vst.msk [vmem:[%s534] sm:$0xff] %vm2866, %v2862
      %2868 = vst.msk [vmem:[%s534 + $0x8] sm:$0xff] %vm2866, %v2865
      %p2869 = scmp.lt.s32.totalorder %s26, 1
      %s2870 = scalar_select %p2869, %s26, 1
      %s2871 = smul.addr %s2870, 2
      %s2872 = smul.addr %s2871, 8
      %s2873 = scalar_lea.vmem %s13, %s2872
      %p2874 = scmp.lt.s32.totalorder %s26, 1
      %s2875 = scalar_select %p2874, %s26, 1
      %s2876 = smul.addr %s2875, 2
      %s2877 = smul.addr %s2876, 8
      %s2878 = scalar_lea.vmem %s14, %s2877
      // Predicated region
      $region73: #{tpu_custom_call.1} parent=71 // pred_check
        %p2879 = pneg %p337
      $region74: #{tpu_custom_call.1} parent=71 // pred_check_branch
        %2881 = sbr.rel (%p2879) target = $region76
      $region75: #{tpu_custom_call.1} parent=71 // pred_region
        _
      $region76: #{tpu_custom_call.1} parent=71 // pred_fallthru
        _
      // Predicated region
      $region77: #{tpu_custom_call.1} parent=71 // pred_check
        %p2882 = pneg %p363
      $region78: #{tpu_custom_call.1} parent=71 // pred_check_branch
        %2884 = sbr.rel (%p2882) target = $region80
      $region79: #{tpu_custom_call.1} parent=71 // pred_region
        _
      $region80: #{tpu_custom_call.1} parent=71 // pred_fallthru
        _
    $region72: #{tpu_custom_call.1} parent=5 // pred_fallthru
      _
    %p2885 = scmp.le.s32.totalorder 2, %s21
    // Predicated region
    $region81: #{tpu_custom_call.1} parent=5 // pred_check
      %p2886 = pneg %p2885
    $region82: #{tpu_custom_call.1} parent=5 // pred_check_branch
      %2888 = sbr.rel (%p2886) target = $region84
    $region83: #{tpu_custom_call.1} parent=5 // pred_region
      %s2889 = ssub.s32 %s21, 2
      // Predicated region
      $region85: #{tpu_custom_call.1} parent=83 // pred_check
        %p2890 = pneg %p343
      $region86: #{tpu_custom_call.1} parent=83 // pred_check_branch
        %2892 = sbr.rel (%p2890) target = $region88
      $region87: #{tpu_custom_call.1} parent=83 // pred_region
        %p2893 = scmp.lt.s32.totalorder %s27, 1
        %s2894 = scalar_select %p2893, %s27, 1
        %s2895 = smul.addr %s2894, 2
        %s2896 = smul.addr %s2895, 8
        %s2897 = scalar_lea.vmem %s13, %s2896
      $region88: #{tpu_custom_call.1} parent=83 // pred_fallthru
        _
      // Predicated region
      $region89: #{tpu_custom_call.1} parent=83 // pred_check
        %p2898 = pneg %p369
      $region90: #{tpu_custom_call.1} parent=83 // pred_check_branch
        %2900 = sbr.rel (%p2898) target = $region92
      $region91: #{tpu_custom_call.1} parent=83 // pred_region
        %p2901 = scmp.lt.s32.totalorder %s27, 1
        %s2902 = scalar_select %p2901, %s27, 1
        %s2903 = smul.addr %s2902, 2
        %s2904 = smul.addr %s2903, 8
        %s2905 = scalar_lea.vmem %s14, %s2904
      $region92: #{tpu_custom_call.1} parent=83 // pred_fallthru
        _
    $region84: #{tpu_custom_call.1} parent=5 // pred_fallthru
      _
  $region6: #{tpu_custom_call.1} parent=0 // loop_footer
    %s25 = sadd.s32 1, %s21
  $region7: #{tpu_custom_call.1} parent=0 // loop_footer_branch
    %20 = sbr.rel target = $region3
  $region8: #{tpu_custom_call.1} parent=0 // loop_exit
    _

</llo_original>
